<compile_context>
chip_gen: v5e
topology: v5e:2x2
jax: 0.10.0
libtpu: 0.0.40
codegen_flags: <defaults>
</compile_context>

<pallas_src>
import functools

import jax
import jax.numpy as jnp
from jax import lax
from jax.experimental import pallas as pl
from jax.experimental.pallas import tpu as pltpu

# ---- small, decoder-consistent hyper-parameters -----------------------------
NUM_LAYERS = 2
MODEL_DIM = 32
NUM_HEADS = 4
FFN_DIM = 64
DIM_PER_HEAD = MODEL_DIM // NUM_HEADS
LN_EPS = 1e-5  # PyTorch nn.LayerNorm default

# Packed per-layer vector parameters: one (L, 8, 128) array, one row per param
# (lane-padded to 128).  Replaces 8-10 tiny separate operands (review item).
(VEC_BQKV, VEC_BO, VEC_LN1_G, VEC_LN1_B,
 VEC_B1, VEC_B2, VEC_LN2_G, VEC_LN2_B) = range(8)
NUM_VEC_SLOTS = 8
VEC_WIDTH = 128


def decoder_kernel(dec_ref, enc_ref, wqkv_ref, wo_ref, w1_ref, w2_ref, vec_ref,
                   out_ref, self_attn_ref, ctx_attn_ref, *, B, S):
    D, F, H, dph = MODEL_DIM, FFN_DIM, NUM_HEADS, DIM_PER_HEAD
    BS = B * S
    scale = dph ** -0.5

    x = dec_ref[...]      # (B*S, D) decoder residual stream, stays in vregs/VMEM
    enc = enc_ref[...]    # (B*S, D) encoder output (fixed across layers)

    def vparam(l, slot, n):
        # (1, n) slice of the packed vector-parameter slab (broadcasts over rows).
        return vec_ref[l, slot:slot + 1, 0:n]

    def layernorm(t, l, gslot, bslot):
        g = vparam(l, gslot, D)
        b = vparam(l, bslot, D)
        mu = jnp.mean(t, axis=-1, keepdims=True)
        var = jnp.mean((t - mu) ** 2, axis=-1, keepdims=True)
        return (t - mu) * lax.rsqrt(var + LN_EPS) * g + b

    def split_heads(t2):
        # (B*S, D) -> (B*H, S, dph), heads split along the feature dim.
        # Built from static slices + stack only (no lane-restructuring reshapes).
        pieces = [t2[b * S:(b + 1) * S, h * dph:(h + 1) * dph]
                  for b in range(B) for h in range(H)]
        return jnp.stack(pieces, axis=0)

    def merge_heads(t3):
        # (B*H, S, dph) -> (B*S, D): lane-concat heads, sublane-concat batches.
        rows = [jnp.concatenate([t3[b * H + h] for h in range(H)], axis=-1)
                for b in range(B)]
        return jnp.concatenate(rows, axis=0)

    def attend(q2, k2, v2):
        """All heads in one batched einsum; batched softmax reductions.

        q2/k2/v2: (B*S, D).  Returns (context (B*S, D), dense attention map
        (S, B*H*S) laid out lane-dense as [q, n*S + k]).
        """
        q = split_heads(q2)
        k = split_heads(k2)
        v = split_heads(v2)
        s = jnp.einsum('nqd,nkd->nqk', q, k,
                       preferred_element_type=jnp.float32) * scale
        s = s - jnp.max(s, axis=-1, keepdims=True)        # one batched reduce
        e = jnp.exp(s)                                    # EUP
        p = e / jnp.sum(e, axis=-1, keepdims=True)        # exact softmax (parity)
        ctx = jnp.einsum('nqk,nkd->nqd', p, v,
                         preferred_element_type=jnp.float32)
        # Lane-dense layout for the attention map output (review item): pack all
        # B*H head maps side by side along lanes -> (S, B*H*S) = (8, 64).
        dense = jnp.concatenate([p[n] for n in range(B * H)], axis=-1)
        return merge_heads(ctx), dense

    self_maps = []
    ctx_maps = []
    for l in range(NUM_LAYERS):            # static unroll; weights indexed in VMEM
        wqkv = wqkv_ref[l]                 # (D, 3D) fused [Wq|Wk|Wv]
        wo = wo_ref[l]                     # (D, D)
        bqkv = vparam(l, VEC_BQKV, 3 * D)  # (1, 3D)
        bo = vparam(l, VEC_BO, D)          # (1, D)

        # ---- fused projection: one MXU pass (M = 2*B*S) computes the
        #      self-attention Q/K/V of x AND this layer's context-attention
        #      K/V of enc (enc's Q third is unused but costs no extra launch).
        lhs = jnp.concatenate([x, enc], axis=0)                       # (2*BS, D)
        proj = jnp.dot(lhs, wqkv, preferred_element_type=jnp.float32) + bqkv
        sq = proj[0:BS, 0:D]
        sk = proj[0:BS, D:2 * D]
        sv = proj[0:BS, 2 * D:3 * D]
        ek = proj[BS:2 * BS, D:2 * D]
        ev = proj[BS:2 * BS, 2 * D:3 * D]

        # ---- self-attention: attention(dec, dec, dec) ----
        ctx, p_self = attend(sq, sk, sv)
        o = jnp.dot(ctx, wo, preferred_element_type=jnp.float32) + bo
        x = layernorm(x + o, l, VEC_LN1_G, VEC_LN1_B)   # dropout p=0.0 -> identity
        self_maps.append(p_self)

        # ---- context attention (same module / same weights):
        #      attention(enc_output, enc_output, dec_output)
        #      -> only the query projection of x' is needed here (D x D).
        cq = (jnp.dot(x, wqkv[:, 0:D], preferred_element_type=jnp.float32)
              + vparam(l, VEC_BQKV, D))
        ctx2, p_ctx = attend(cq, ek, ev)
        o2 = jnp.dot(ctx2, wo, preferred_element_type=jnp.float32) + bo
        x = layernorm(x + o2, l, VEC_LN1_G, VEC_LN1_B)
        ctx_maps.append(p_ctx)

        # ---- position-wise feed-forward (Conv1d k=1 pair == Linear pair) ----
        h1 = jnp.maximum(
            jnp.dot(x, w1_ref[l], preferred_element_type=jnp.float32)
            + vparam(l, VEC_B1, F), 0.0)
        y = jnp.dot(h1, w2_ref[l], preferred_element_type=jnp.float32) \
            + vparam(l, VEC_B2, D)
        x = layernorm(x + y, l, VEC_LN2_G, VEC_LN2_B)

    out_ref[...] = x
    # Lane-dense attention-map writeback: one (S, L*B*H*S) = (8, 128) unmasked
    # full-vreg store per output (previously many masked 8-lane stores).
    self_attn_ref[...] = jnp.concatenate(self_maps, axis=-1)
    ctx_attn_ref[...] = jnp.concatenate(ctx_maps, axis=-1)


def decoder_forward(inputs, encode_output, params, context_attn_mask=None):
    # TODO(synk): context_attn_mask is accepted but never used by the reference
    # decoderLayer.forward (it is never threaded into the layers), so it is
    # ignored here as well.
    B, S, D = inputs.shape
    L, H = NUM_LAYERS, NUM_HEADS

    dec2 = inputs.reshape(B * S, D)
    enc2 = encode_output.reshape(B * S, D)
    args = (dec2, enc2, params["wqkv"], params["wo"], params["w1"],
            params["w2"], params["vecs"])

    vmem = pl.BlockSpec(memory_space=pltpu.MemorySpace.VMEM)  # whole array, resident
    out2, self_d, ctx_d = pl.pallas_call(
        functools.partial(decoder_kernel, B=B, S=S),
        out_shape=(jax.ShapeDtypeStruct((B * S, D), jnp.float32),
                   jax.ShapeDtypeStruct((S, L * B * H * S), jnp.float32),
                   jax.ShapeDtypeStruct((S, L * B * H * S), jnp.float32)),
        in_specs=[vmem] * len(args),
        out_specs=(vmem, vmem, vmem),
    )(*args)

    output = out2.reshape(B, S, D)

    def unpack(dense):
        # (S, L*B*H*S) lane-dense slab -> list of L maps (B*H, S, S).
        a = dense.reshape(S, L, B * H, S)
        a = jnp.transpose(a, (1, 2, 0, 3))          # (L, B*H, S, S), cheap XLA op
        return [a[l] for l in range(L)]

    return output, unpack(self_d), unpack(ctx_d)


# ---------------------------------------------------------------------------
# Deterministic parameter init (synthetic weights, no checkpoint).  Matrices
# are stacked along a leading layer axis; the 8 tiny vector params are packed
# into one (L, 8, 128) slab so the kernel has 7 operands total.
# ---------------------------------------------------------------------------
def init_params(key):
    def nrm(k, shape, scale=0.05):
        return jax.random.normal(k, shape, jnp.float32) * scale

    L = NUM_LAYERS
    wqkv, wo, w1, w2 = [], [], [], []
    vecs = jnp.zeros((L, NUM_VEC_SLOTS, VEC_WIDTH), jnp.float32)
    for l in range(L):
        key, kq, kk, kv, ko, k1, k2, kb = jax.random.split(key, 8)
        # fused [Wq | Wk | Wv], each (D, D), already (in, out) for x @ W
        wqkv.append(jnp.concatenate([nrm(kq, (MODEL_DIM, MODEL_DIM)),
                                     nrm(kk, (MODEL_DIM, MODEL_DIM)),
                                     nrm(kv, (MODEL_DIM, MODEL_DIM))], axis=-1))
        wo.append(nrm(ko, (MODEL_DIM, MODEL_DIM)))
        w1.append(nrm(k1, (MODEL_DIM, FFN_DIM)))
        w2.append(nrm(k2, (FFN_DIM, MODEL_DIM)))
        kb1, kb2, kb3, kb4 = jax.random.split(kb, 4)
        vecs = vecs.at[l, VEC_BQKV, :3 * MODEL_DIM].set(nrm(kb1, (3 * MODEL_DIM,), 0.02))
        vecs = vecs.at[l, VEC_BO, :MODEL_DIM].set(nrm(kb2, (MODEL_DIM,), 0.02))
        vecs = vecs.at[l, VEC_B1, :FFN_DIM].set(nrm(kb3, (FFN_DIM,), 0.02))
        vecs = vecs.at[l, VEC_B2, :MODEL_DIM].set(nrm(kb4, (MODEL_DIM,), 0.02))
        vecs = vecs.at[l, VEC_LN1_G, :MODEL_DIM].set(1.0)   # LayerNorm gamma = 1
        vecs = vecs.at[l, VEC_LN2_G, :MODEL_DIM].set(1.0)   # LayerNorm beta = 0

    return dict(wqkv=jnp.stack(wqkv), wo=jnp.stack(wo),
                w1=jnp.stack(w1), w2=jnp.stack(w2), vecs=vecs)


if __name__ == "__main__":
    root = jax.random.PRNGKey(0)
    k_in, k_enc, k_par = jax.random.split(root, 3)

    B, S = 2, 8
    dec_inputs = jax.random.normal(k_in, (B, S, MODEL_DIM), jnp.float32)
    encode_output = jax.random.normal(k_enc, (B, S, MODEL_DIM), jnp.float32)
    params = init_params(k_par)

    fwd = jax.jit(decoder_forward)
    output, self_attns, ctx_attns = fwd(dec_inputs, encode_output, params)

    jax.block_until_ready(output)
    for a in self_attns + ctx_attns:
        jax.block_until_ready(a)

    assert output.shape == (B, S, MODEL_DIM)
    assert all(a.shape == (B * NUM_HEADS, S, S) for a in self_attns)
    assert all(a.shape == (B * NUM_HEADS, S, S) for a in ctx_attns)
    assert bool(jnp.all(jnp.isfinite(output)))
    # softmax rows must sum to 1 (also validates the lane-dense map unpacking)
    for a in self_attns + ctx_attns:
        assert bool(jnp.allclose(jnp.sum(a, axis=-1), 1.0, atol=1e-4))
    print("KERNEL_OK")
</pallas_src>

<mosaic_0001>
module attributes {stable_mosaic.version = 11 : i64} {
  func.func @decoder_kernel(%arg0: memref<16x32xf32, #tpu.memory_space<vmem>>, %arg1: memref<16x32xf32, #tpu.memory_space<vmem>>, %arg2: memref<2x32x96xf32, #tpu.memory_space<vmem>>, %arg3: memref<2x32x32xf32, #tpu.memory_space<vmem>>, %arg4: memref<2x32x64xf32, #tpu.memory_space<vmem>>, %arg5: memref<2x64x32xf32, #tpu.memory_space<vmem>>, %arg6: memref<2x8x128xf32, #tpu.memory_space<vmem>>, %arg7: memref<16x32xf32, #tpu.memory_space<vmem>>, %arg8: memref<8x128xf32, #tpu.memory_space<vmem>>, %arg9: memref<8x128xf32, #tpu.memory_space<vmem>>) attributes {dimension_semantics = [], scalar_prefetch = 0 : i64, scratch_operands = 0 : i64, tpu.core_type = #tpu.core_type<tc>} {
    %c0 = arith.constant 0 : index
    %c0_0 = arith.constant 0 : index
    %0 = vector.load %arg0[%c0, %c0_0] : memref<16x32xf32, #tpu.memory_space<vmem>>, vector<16x32xf32>
    %c0_1 = arith.constant 0 : index
    %c0_2 = arith.constant 0 : index
    %1 = vector.load %arg1[%c0_1, %c0_2] : memref<16x32xf32, #tpu.memory_space<vmem>>, vector<16x32xf32>
    %c0_3 = arith.constant 0 : index
    %c0_4 = arith.constant 0 : index
    %c0_5 = arith.constant 0 : index
    %2 = vector.load %arg2[%c0_3, %c0_4, %c0_5] : memref<2x32x96xf32, #tpu.memory_space<vmem>>, vector<1x32x96xf32>
    %3 = vector.shape_cast %2 : vector<1x32x96xf32> to vector<32x96xf32>
    %c0_6 = arith.constant 0 : index
    %c0_7 = arith.constant 0 : index
    %c0_8 = arith.constant 0 : index
    %4 = vector.load %arg3[%c0_6, %c0_7, %c0_8] : memref<2x32x32xf32, #tpu.memory_space<vmem>>, vector<1x32x32xf32>
    %5 = vector.shape_cast %4 : vector<1x32x32xf32> to vector<32x32xf32>
    %c0_9 = arith.constant 0 : index
    %c0_10 = arith.constant 0 : index
    %c0_11 = arith.constant 0 : index
    %6 = vector.load %arg6[%c0_9, %c0_10, %c0_11] : memref<2x8x128xf32, #tpu.memory_space<vmem>>, vector<1x1x96xf32>
    %7 = vector.shape_cast %6 : vector<1x1x96xf32> to vector<1x96xf32>
    %c0_12 = arith.constant 0 : index
    %c1 = arith.constant 1 : index
    %c0_13 = arith.constant 0 : index
    %8 = vector.load %arg6[%c0_12, %c1, %c0_13] : memref<2x8x128xf32, #tpu.memory_space<vmem>>, vector<1x1x32xf32>
    %9 = vector.shape_cast %8 : vector<1x1x32xf32> to vector<1x32xf32>
    %10 = tpu.concatenate %0, %1 in 0 : vector<16x32xf32>, vector<16x32xf32> -> vector<32x32xf32>
    %cst = arith.constant dense<0.000000e+00> : vector<32x96xf32>
    %11 = tpu.matmul %10, %3, %cst {dimension_numbers = #tpu.dot_dimension_numbers<[1], [0], [0], [1], [0, 0, 1, 1], [], []>} : vector<32x32xf32>, vector<32x96xf32>, vector<32x96xf32> -> vector<32x96xf32>
    %12 = vector.broadcast %7 : vector<1x96xf32> to vector<32x96xf32>
    %13 = arith.addf %11, %12 : vector<32x96xf32>
    %14 = vector.extract_strided_slice %13 {offsets = [0, 0], sizes = [16, 32], strides = [1, 1]} : vector<32x96xf32> to vector<16x32xf32>
    %15 = vector.extract_strided_slice %13 {offsets = [0, 32], sizes = [16, 32], strides = [1, 1]} : vector<32x96xf32> to vector<16x32xf32>
    %16 = vector.extract_strided_slice %13 {offsets = [0, 64], sizes = [16, 32], strides = [1, 1]} : vector<32x96xf32> to vector<16x32xf32>
    %17 = vector.extract_strided_slice %13 {offsets = [16, 32], sizes = [16, 32], strides = [1, 1]} : vector<32x96xf32> to vector<16x32xf32>
    %18 = vector.extract_strided_slice %13 {offsets = [16, 64], sizes = [16, 32], strides = [1, 1]} : vector<32x96xf32> to vector<16x32xf32>
    %19 = vector.extract_strided_slice %14 {offsets = [0, 0], sizes = [8, 8], strides = [1, 1]} : vector<16x32xf32> to vector<8x8xf32>
    %20 = vector.extract_strided_slice %14 {offsets = [0, 8], sizes = [8, 8], strides = [1, 1]} : vector<16x32xf32> to vector<8x8xf32>
    %21 = vector.extract_strided_slice %14 {offsets = [0, 16], sizes = [8, 8], strides = [1, 1]} : vector<16x32xf32> to vector<8x8xf32>
    %22 = vector.extract_strided_slice %14 {offsets = [0, 24], sizes = [8, 8], strides = [1, 1]} : vector<16x32xf32> to vector<8x8xf32>
    %23 = vector.extract_strided_slice %14 {offsets = [8, 0], sizes = [8, 8], strides = [1, 1]} : vector<16x32xf32> to vector<8x8xf32>
    %24 = vector.extract_strided_slice %14 {offsets = [8, 8], sizes = [8, 8], strides = [1, 1]} : vector<16x32xf32> to vector<8x8xf32>
    %25 = vector.extract_strided_slice %14 {offsets = [8, 16], sizes = [8, 8], strides = [1, 1]} : vector<16x32xf32> to vector<8x8xf32>
    %26 = vector.extract_strided_slice %14 {offsets = [8, 24], sizes = [8, 8], strides = [1, 1]} : vector<16x32xf32> to vector<8x8xf32>
    %27 = vector.shape_cast %19 : vector<8x8xf32> to vector<1x8x8xf32>
    %28 = vector.shape_cast %20 : vector<8x8xf32> to vector<1x8x8xf32>
    %29 = vector.shape_cast %21 : vector<8x8xf32> to vector<1x8x8xf32>
    %30 = vector.shape_cast %22 : vector<8x8xf32> to vector<1x8x8xf32>
    %31 = vector.shape_cast %23 : vector<8x8xf32> to vector<1x8x8xf32>
    %32 = vector.shape_cast %24 : vector<8x8xf32> to vector<1x8x8xf32>
    %33 = vector.shape_cast %25 : vector<8x8xf32> to vector<1x8x8xf32>
    %34 = vector.shape_cast %26 : vector<8x8xf32> to vector<1x8x8xf32>
    %35 = tpu.concatenate %27, %28, %29, %30, %31, %32, %33, %34 in 0 : vector<1x8x8xf32>, vector<1x8x8xf32>, vector<1x8x8xf32>, vector<1x8x8xf32>, vector<1x8x8xf32>, vector<1x8x8xf32>, vector<1x8x8xf32>, vector<1x8x8xf32> -> vector<8x8x8xf32>
    %36 = vector.extract_strided_slice %15 {offsets = [0, 0], sizes = [8, 8], strides = [1, 1]} : vector<16x32xf32> to vector<8x8xf32>
    %37 = vector.extract_strided_slice %15 {offsets = [0, 8], sizes = [8, 8], strides = [1, 1]} : vector<16x32xf32> to vector<8x8xf32>
    %38 = vector.extract_strided_slice %15 {offsets = [0, 16], sizes = [8, 8], strides = [1, 1]} : vector<16x32xf32> to vector<8x8xf32>
    %39 = vector.extract_strided_slice %15 {offsets = [0, 24], sizes = [8, 8], strides = [1, 1]} : vector<16x32xf32> to vector<8x8xf32>
    %40 = vector.extract_strided_slice %15 {offsets = [8, 0], sizes = [8, 8], strides = [1, 1]} : vector<16x32xf32> to vector<8x8xf32>
    %41 = vector.extract_strided_slice %15 {offsets = [8, 8], sizes = [8, 8], strides = [1, 1]} : vector<16x32xf32> to vector<8x8xf32>
    %42 = vector.extract_strided_slice %15 {offsets = [8, 16], sizes = [8, 8], strides = [1, 1]} : vector<16x32xf32> to vector<8x8xf32>
    %43 = vector.extract_strided_slice %15 {offsets = [8, 24], sizes = [8, 8], strides = [1, 1]} : vector<16x32xf32> to vector<8x8xf32>
    %44 = vector.shape_cast %36 : vector<8x8xf32> to vector<1x8x8xf32>
    %45 = vector.shape_cast %37 : vector<8x8xf32> to vector<1x8x8xf32>
    %46 = vector.shape_cast %38 : vector<8x8xf32> to vector<1x8x8xf32>
    %47 = vector.shape_cast %39 : vector<8x8xf32> to vector<1x8x8xf32>
    %48 = vector.shape_cast %40 : vector<8x8xf32> to vector<1x8x8xf32>
    %49 = vector.shape_cast %41 : vector<8x8xf32> to vector<1x8x8xf32>
    %50 = vector.shape_cast %42 : vector<8x8xf32> to vector<1x8x8xf32>
    %51 = vector.shape_cast %43 : vector<8x8xf32> to vector<1x8x8xf32>
    %52 = tpu.concatenate %44, %45, %46, %47, %48, %49, %50, %51 in 0 : vector<1x8x8xf32>, vector<1x8x8xf32>, vector<1x8x8xf32>, vector<1x8x8xf32>, vector<1x8x8xf32>, vector<1x8x8xf32>, vector<1x8x8xf32>, vector<1x8x8xf32> -> vector<8x8x8xf32>
    %53 = vector.extract_strided_slice %16 {offsets = [0, 0], sizes = [8, 8], strides = [1, 1]} : vector<16x32xf32> to vector<8x8xf32>
    %54 = vector.extract_strided_slice %16 {offsets = [0, 8], sizes = [8, 8], strides = [1, 1]} : vector<16x32xf32> to vector<8x8xf32>
    %55 = vector.extract_strided_slice %16 {offsets = [0, 16], sizes = [8, 8], strides = [1, 1]} : vector<16x32xf32> to vector<8x8xf32>
    %56 = vector.extract_strided_slice %16 {offsets = [0, 24], sizes = [8, 8], strides = [1, 1]} : vector<16x32xf32> to vector<8x8xf32>
    %57 = vector.extract_strided_slice %16 {offsets = [8, 0], sizes = [8, 8], strides = [1, 1]} : vector<16x32xf32> to vector<8x8xf32>
    %58 = vector.extract_strided_slice %16 {offsets = [8, 8], sizes = [8, 8], strides = [1, 1]} : vector<16x32xf32> to vector<8x8xf32>
    %59 = vector.extract_strided_slice %16 {offsets = [8, 16], sizes = [8, 8], strides = [1, 1]} : vector<16x32xf32> to vector<8x8xf32>
    %60 = vector.extract_strided_slice %16 {offsets = [8, 24], sizes = [8, 8], strides = [1, 1]} : vector<16x32xf32> to vector<8x8xf32>
    %61 = vector.shape_cast %53 : vector<8x8xf32> to vector<1x8x8xf32>
    %62 = vector.shape_cast %54 : vector<8x8xf32> to vector<1x8x8xf32>
    %63 = vector.shape_cast %55 : vector<8x8xf32> to vector<1x8x8xf32>
    %64 = vector.shape_cast %56 : vector<8x8xf32> to vector<1x8x8xf32>
    %65 = vector.shape_cast %57 : vector<8x8xf32> to vector<1x8x8xf32>
    %66 = vector.shape_cast %58 : vector<8x8xf32> to vector<1x8x8xf32>
    %67 = vector.shape_cast %59 : vector<8x8xf32> to vector<1x8x8xf32>
    %68 = vector.shape_cast %60 : vector<8x8xf32> to vector<1x8x8xf32>
    %69 = tpu.concatenate %61, %62, %63, %64, %65, %66, %67, %68 in 0 : vector<1x8x8xf32>, vector<1x8x8xf32>, vector<1x8x8xf32>, vector<1x8x8xf32>, vector<1x8x8xf32>, vector<1x8x8xf32>, vector<1x8x8xf32>, vector<1x8x8xf32> -> vector<8x8x8xf32>
    "tpu.trace_start"() <{level = 10 : i32, message = "nqd,nkd->nqk"}> : () -> ()
    %cst_14 = arith.constant dense<0.000000e+00> : vector<8x8x8xf32>
    %70 = tpu.matmul %35, %52, %cst_14 {dimension_numbers = #tpu.dot_dimension_numbers<[2], [2], [1], [1], [0, 0, 0, 1, 1, 1], [0], [0]>} : vector<8x8x8xf32>, vector<8x8x8xf32>, vector<8x8x8xf32> -> vector<8x8x8xf32>
    "tpu.trace_stop"() : () -> ()
    %cst_15 = arith.constant 0.353553385 : f32
    %71 = vector.broadcast %cst_15 : f32 to vector<8x8x8xf32>
    %72 = arith.mulf %70, %71 : vector<8x8x8xf32>
    %cst_16 = arith.constant dense<0xFF800000> : vector<8x8xf32>
    %73 = vector.multi_reduction <maximumf>, %72, %cst_16 [2] : vector<8x8x8xf32> to vector<8x8xf32>
    %74 = vector.shape_cast %73 : vector<8x8xf32> to vector<8x8x1xf32>
    %75 = vector.broadcast %74 : vector<8x8x1xf32> to vector<8x8x8xf32>
    %76 = arith.subf %72, %75 : vector<8x8x8xf32>
    %77 = math.exp %76 : vector<8x8x8xf32>
    %cst_17 = arith.constant dense<0.000000e+00> : vector<8x8xf32>
    %78 = vector.multi_reduction <add>, %77, %cst_17 [2] : vector<8x8x8xf32> to vector<8x8xf32>
    %79 = vector.shape_cast %78 : vector<8x8xf32> to vector<8x8x1xf32>
    %80 = vector.broadcast %79 : vector<8x8x1xf32> to vector<8x8x8xf32>
    %81 = arith.divf %77, %80 : vector<8x8x8xf32>
    "tpu.trace_start"() <{level = 10 : i32, message = "nqk,nkd->nqd"}> : () -> ()
    %cst_18 = arith.constant dense<0.000000e+00> : vector<8x8x8xf32>
    %82 = tpu.matmul %81, %69, %cst_18 {dimension_numbers = #tpu.dot_dimension_numbers<[2], [1], [1], [2], [0, 0, 0, 1, 1, 2], [0], [0]>} : vector<8x8x8xf32>, vector<8x8x8xf32>, vector<8x8x8xf32> -> vector<8x8x8xf32>
    "tpu.trace_stop"() : () -> ()
    %83 = vector.extract_strided_slice %81 {offsets = [0, 0, 0], sizes = [1, 8, 8], strides = [1, 1, 1]} : vector<8x8x8xf32> to vector<1x8x8xf32>
    %84 = vector.shape_cast %83 : vector<1x8x8xf32> to vector<8x8xf32>
    %85 = vector.extract_strided_slice %81 {offsets = [1, 0, 0], sizes = [1, 8, 8], strides = [1, 1, 1]} : vector<8x8x8xf32> to vector<1x8x8xf32>
    %86 = vector.shape_cast %85 : vector<1x8x8xf32> to vector<8x8xf32>
    %87 = vector.extract_strided_slice %81 {offsets = [2, 0, 0], sizes = [1, 8, 8], strides = [1, 1, 1]} : vector<8x8x8xf32> to vector<1x8x8xf32>
    %88 = vector.shape_cast %87 : vector<1x8x8xf32> to vector<8x8xf32>
    %89 = vector.extract_strided_slice %81 {offsets = [3, 0, 0], sizes = [1, 8, 8], strides = [1, 1, 1]} : vector<8x8x8xf32> to vector<1x8x8xf32>
    %90 = vector.shape_cast %89 : vector<1x8x8xf32> to vector<8x8xf32>
    %91 = vector.extract_strided_slice %81 {offsets = [4, 0, 0], sizes = [1, 8, 8], strides = [1, 1, 1]} : vector<8x8x8xf32> to vector<1x8x8xf32>
    %92 = vector.shape_cast %91 : vector<1x8x8xf32> to vector<8x8xf32>
    %93 = vector.extract_strided_slice %81 {offsets = [5, 0, 0], sizes = [1, 8, 8], strides = [1, 1, 1]} : vector<8x8x8xf32> to vector<1x8x8xf32>
    %94 = vector.shape_cast %93 : vector<1x8x8xf32> to vector<8x8xf32>
    %95 = vector.extract_strided_slice %81 {offsets = [6, 0, 0], sizes = [1, 8, 8], strides = [1, 1, 1]} : vector<8x8x8xf32> to vector<1x8x8xf32>
    %96 = vector.shape_cast %95 : vector<1x8x8xf32> to vector<8x8xf32>
    %97 = vector.extract_strided_slice %81 {offsets = [7, 0, 0], sizes = [1, 8, 8], strides = [1, 1, 1]} : vector<8x8x8xf32> to vector<1x8x8xf32>
    %98 = vector.shape_cast %97 : vector<1x8x8xf32> to vector<8x8xf32>
    %99 = tpu.concatenate %84, %86, %88, %90, %92, %94, %96, %98 in 1 : vector<8x8xf32>, vector<8x8xf32>, vector<8x8xf32>, vector<8x8xf32>, vector<8x8xf32>, vector<8x8xf32>, vector<8x8xf32>, vector<8x8xf32> -> vector<8x64xf32>
    %100 = vector.extract_strided_slice %82 {offsets = [0, 0, 0], sizes = [1, 8, 8], strides = [1, 1, 1]} : vector<8x8x8xf32> to vector<1x8x8xf32>
    %101 = vector.shape_cast %100 : vector<1x8x8xf32> to vector<8x8xf32>
    %102 = vector.extract_strided_slice %82 {offsets = [1, 0, 0], sizes = [1, 8, 8], strides = [1, 1, 1]} : vector<8x8x8xf32> to vector<1x8x8xf32>
    %103 = vector.shape_cast %102 : vector<1x8x8xf32> to vector<8x8xf32>
    %104 = vector.extract_strided_slice %82 {offsets = [2, 0, 0], sizes = [1, 8, 8], strides = [1, 1, 1]} : vector<8x8x8xf32> to vector<1x8x8xf32>
    %105 = vector.shape_cast %104 : vector<1x8x8xf32> to vector<8x8xf32>
    %106 = vector.extract_strided_slice %82 {offsets = [3, 0, 0], sizes = [1, 8, 8], strides = [1, 1, 1]} : vector<8x8x8xf32> to vector<1x8x8xf32>
    %107 = vector.shape_cast %106 : vector<1x8x8xf32> to vector<8x8xf32>
    %108 = tpu.concatenate %101, %103, %105, %107 in 1 : vector<8x8xf32>, vector<8x8xf32>, vector<8x8xf32>, vector<8x8xf32> -> vector<8x32xf32>
    %109 = vector.extract_strided_slice %82 {offsets = [4, 0, 0], sizes = [1, 8, 8], strides = [1, 1, 1]} : vector<8x8x8xf32> to vector<1x8x8xf32>
    %110 = vector.shape_cast %109 : vector<1x8x8xf32> to vector<8x8xf32>
    %111 = vector.extract_strided_slice %82 {offsets = [5, 0, 0], sizes = [1, 8, 8], strides = [1, 1, 1]} : vector<8x8x8xf32> to vector<1x8x8xf32>
    %112 = vector.shape_cast %111 : vector<1x8x8xf32> to vector<8x8xf32>
    %113 = vector.extract_strided_slice %82 {offsets = [6, 0, 0], sizes = [1, 8, 8], strides = [1, 1, 1]} : vector<8x8x8xf32> to vector<1x8x8xf32>
    %114 = vector.shape_cast %113 : vector<1x8x8xf32> to vector<8x8xf32>
    %115 = vector.extract_strided_slice %82 {offsets = [7, 0, 0], sizes = [1, 8, 8], strides = [1, 1, 1]} : vector<8x8x8xf32> to vector<1x8x8xf32>
    %116 = vector.shape_cast %115 : vector<1x8x8xf32> to vector<8x8xf32>
    %117 = tpu.concatenate %110, %112, %114, %116 in 1 : vector<8x8xf32>, vector<8x8xf32>, vector<8x8xf32>, vector<8x8xf32> -> vector<8x32xf32>
    %118 = tpu.concatenate %108, %117 in 0 : vector<8x32xf32>, vector<8x32xf32> -> vector<16x32xf32>
    %cst_19 = arith.constant dense<0.000000e+00> : vector<16x32xf32>
    %119 = tpu.matmul %118, %5, %cst_19 {dimension_numbers = #tpu.dot_dimension_numbers<[1], [0], [0], [1], [0, 0, 1, 1], [], []>} : vector<16x32xf32>, vector<32x32xf32>, vector<16x32xf32> -> vector<16x32xf32>
    %120 = vector.broadcast %9 : vector<1x32xf32> to vector<16x32xf32>
    %121 = arith.addf %119, %120 : vector<16x32xf32>
    %122 = arith.addf %0, %121 : vector<16x32xf32>
    %c0_20 = arith.constant 0 : index
    %c2 = arith.constant 2 : index
    %c0_21 = arith.constant 0 : index
    %123 = vector.load %arg6[%c0_20, %c2, %c0_21] : memref<2x8x128xf32, #tpu.memory_space<vmem>>, vector<1x1x32xf32>
    %124 = vector.shape_cast %123 : vector<1x1x32xf32> to vector<1x32xf32>
    %c0_22 = arith.constant 0 : index
    %c3 = arith.constant 3 : index
    %c0_23 = arith.constant 0 : index
    %125 = vector.load %arg6[%c0_22, %c3, %c0_23] : memref<2x8x128xf32, #tpu.memory_space<vmem>>, vector<1x1x32xf32>
    %126 = vector.shape_cast %125 : vector<1x1x32xf32> to vector<1x32xf32>
    %cst_24 = arith.constant dense<0.000000e+00> : vector<16xf32>
    %127 = vector.multi_reduction <add>, %122, %cst_24 [1] : vector<16x32xf32> to vector<16xf32>
    %128 = vector.shape_cast %127 : vector<16xf32> to vector<16x1xf32>
    %cst_25 = arith.constant 3.200000e+01 : f32
    %129 = vector.broadcast %cst_25 : f32 to vector<16x1xf32>
    %130 = arith.divf %128, %129 : vector<16x1xf32>
    %131 = vector.broadcast %130 : vector<16x1xf32> to vector<16x32xf32>
    %132 = arith.subf %122, %131 : vector<16x32xf32>
    %133 = arith.mulf %132, %132 : vector<16x32xf32>
    %cst_26 = arith.constant dense<0.000000e+00> : vector<16xf32>
    %134 = vector.multi_reduction <add>, %133, %cst_26 [1] : vector<16x32xf32> to vector<16xf32>
    %135 = vector.shape_cast %134 : vector<16xf32> to vector<16x1xf32>
    %cst_27 = arith.constant 3.200000e+01 : f32
    %136 = vector.broadcast %cst_27 : f32 to vector<16x1xf32>
    %137 = arith.divf %135, %136 : vector<16x1xf32>
    %138 = vector.broadcast %130 : vector<16x1xf32> to vector<16x32xf32>
    %139 = arith.subf %122, %138 : vector<16x32xf32>
    %cst_28 = arith.constant 9.99999974E-6 : f32
    %140 = vector.broadcast %cst_28 : f32 to vector<16x1xf32>
    %141 = arith.addf %137, %140 : vector<16x1xf32>
    %142 = math.rsqrt %141 : vector<16x1xf32>
    %143 = vector.broadcast %142 : vector<16x1xf32> to vector<16x32xf32>
    %144 = arith.mulf %139, %143 : vector<16x32xf32>
    %145 = vector.broadcast %124 : vector<1x32xf32> to vector<16x32xf32>
    %146 = arith.mulf %144, %145 : vector<16x32xf32>
    %147 = vector.broadcast %126 : vector<1x32xf32> to vector<16x32xf32>
    %148 = arith.addf %146, %147 : vector<16x32xf32>
    %149 = vector.extract_strided_slice %3 {offsets = [0, 0], sizes = [32, 32], strides = [1, 1]} : vector<32x96xf32> to vector<32x32xf32>
    %cst_29 = arith.constant dense<0.000000e+00> : vector<16x32xf32>
    %150 = tpu.matmul %148, %149, %cst_29 {dimension_numbers = #tpu.dot_dimension_numbers<[1], [0], [0], [1], [0, 0, 1, 1], [], []>} : vector<16x32xf32>, vector<32x32xf32>, vector<16x32xf32> -> vector<16x32xf32>
    %c0_30 = arith.constant 0 : index
    %c0_31 = arith.constant 0 : index
    %c0_32 = arith.constant 0 : index
    %151 = vector.load %arg6[%c0_30, %c0_31, %c0_32] : memref<2x8x128xf32, #tpu.memory_space<vmem>>, vector<1x1x32xf32>
    %152 = vector.shape_cast %151 : vector<1x1x32xf32> to vector<1x32xf32>
    %153 = vector.broadcast %152 : vector<1x32xf32> to vector<16x32xf32>
    %154 = arith.addf %150, %153 : vector<16x32xf32>
    %155 = vector.extract_strided_slice %154 {offsets = [0, 0], sizes = [8, 8], strides = [1, 1]} : vector<16x32xf32> to vector<8x8xf32>
    %156 = vector.extract_strided_slice %154 {offsets = [0, 8], sizes = [8, 8], strides = [1, 1]} : vector<16x32xf32> to vector<8x8xf32>
    %157 = vector.extract_strided_slice %154 {offsets = [0, 16], sizes = [8, 8], strides = [1, 1]} : vector<16x32xf32> to vector<8x8xf32>
    %158 = vector.extract_strided_slice %154 {offsets = [0, 24], sizes = [8, 8], strides = [1, 1]} : vector<16x32xf32> to vector<8x8xf32>
    %159 = vector.extract_strided_slice %154 {offsets = [8, 0], sizes = [8, 8], strides = [1, 1]} : vector<16x32xf32> to vector<8x8xf32>
    %160 = vector.extract_strided_slice %154 {offsets = [8, 8], sizes = [8, 8], strides = [1, 1]} : vector<16x32xf32> to vector<8x8xf32>
    %161 = vector.extract_strided_slice %154 {offsets = [8, 16], sizes = [8, 8], strides = [1, 1]} : vector<16x32xf32> to vector<8x8xf32>
    %162 = vector.extract_strided_slice %154 {offsets = [8, 24], sizes = [8, 8], strides = [1, 1]} : vector<16x32xf32> to vector<8x8xf32>
    %163 = vector.shape_cast %155 : vector<8x8xf32> to vector<1x8x8xf32>
    %164 = vector.shape_cast %156 : vector<8x8xf32> to vector<1x8x8xf32>
    %165 = vector.shape_cast %157 : vector<8x8xf32> to vector<1x8x8xf32>
    %166 = vector.shape_cast %158 : vector<8x8xf32> to vector<1x8x8xf32>
    %167 = vector.shape_cast %159 : vector<8x8xf32> to vector<1x8x8xf32>
    %168 = vector.shape_cast %160 : vector<8x8xf32> to vector<1x8x8xf32>
    %169 = vector.shape_cast %161 : vector<8x8xf32> to vector<1x8x8xf32>
    %170 = vector.shape_cast %162 : vector<8x8xf32> to vector<1x8x8xf32>
    %171 = tpu.concatenate %163, %164, %165, %166, %167, %168, %169, %170 in 0 : vector<1x8x8xf32>, vector<1x8x8xf32>, vector<1x8x8xf32>, vector<1x8x8xf32>, vector<1x8x8xf32>, vector<1x8x8xf32>, vector<1x8x8xf32>, vector<1x8x8xf32> -> vector<8x8x8xf32>
    %172 = vector.extract_strided_slice %17 {offsets = [0, 0], sizes = [8, 8], strides = [1, 1]} : vector<16x32xf32> to vector<8x8xf32>
    %173 = vector.extract_strided_slice %17 {offsets = [0, 8], sizes = [8, 8], strides = [1, 1]} : vector<16x32xf32> to vector<8x8xf32>
    %174 = vector.extract_strided_slice %17 {offsets = [0, 16], sizes = [8, 8], strides = [1, 1]} : vector<16x32xf32> to vector<8x8xf32>
    %175 = vector.extract_strided_slice %17 {offsets = [0, 24], sizes = [8, 8], strides = [1, 1]} : vector<16x32xf32> to vector<8x8xf32>
    %176 = vector.extract_strided_slice %17 {offsets = [8, 0], sizes = [8, 8], strides = [1, 1]} : vector<16x32xf32> to vector<8x8xf32>
    %177 = vector.extract_strided_slice %17 {offsets = [8, 8], sizes = [8, 8], strides = [1, 1]} : vector<16x32xf32> to vector<8x8xf32>
    %178 = vector.extract_strided_slice %17 {offsets = [8, 16], sizes = [8, 8], strides = [1, 1]} : vector<16x32xf32> to vector<8x8xf32>
    %179 = vector.extract_strided_slice %17 {offsets = [8, 24], sizes = [8, 8], strides = [1, 1]} : vector<16x32xf32> to vector<8x8xf32>
    %180 = vector.shape_cast %172 : vector<8x8xf32> to vector<1x8x8xf32>
    %181 = vector.shape_cast %173 : vector<8x8xf32> to vector<1x8x8xf32>
    %182 = vector.shape_cast %174 : vector<8x8xf32> to vector<1x8x8xf32>
    %183 = vector.shape_cast %175 : vector<8x8xf32> to vector<1x8x8xf32>
    %184 = vector.shape_cast %176 : vector<8x8xf32> to vector<1x8x8xf32>
    %185 = vector.shape_cast %177 : vector<8x8xf32> to vector<1x8x8xf32>
    %186 = vector.shape_cast %178 : vector<8x8xf32> to vector<1x8x8xf32>
    %187 = vector.shape_cast %179 : vector<8x8xf32> to vector<1x8x8xf32>
    %188 = tpu.concatenate %180, %181, %182, %183, %184, %185, %186, %187 in 0 : vector<1x8x8xf32>, vector<1x8x8xf32>, vector<1x8x8xf32>, vector<1x8x8xf32>, vector<1x8x8xf32>, vector<1x8x8xf32>, vector<1x8x8xf32>, vector<1x8x8xf32> -> vector<8x8x8xf32>
    %189 = vector.extract_strided_slice %18 {offsets = [0, 0], sizes = [8, 8], strides = [1, 1]} : vector<16x32xf32> to vector<8x8xf32>
    %190 = vector.extract_strided_slice %18 {offsets = [0, 8], sizes = [8, 8], strides = [1, 1]} : vector<16x32xf32> to vector<8x8xf32>
    %191 = vector.extract_strided_slice %18 {offsets = [0, 16], sizes = [8, 8], strides = [1, 1]} : vector<16x32xf32> to vector<8x8xf32>
    %192 = vector.extract_strided_slice %18 {offsets = [0, 24], sizes = [8, 8], strides = [1, 1]} : vector<16x32xf32> to vector<8x8xf32>
    %193 = vector.extract_strided_slice %18 {offsets = [8, 0], sizes = [8, 8], strides = [1, 1]} : vector<16x32xf32> to vector<8x8xf32>
    %194 = vector.extract_strided_slice %18 {offsets = [8, 8], sizes = [8, 8], strides = [1, 1]} : vector<16x32xf32> to vector<8x8xf32>
    %195 = vector.extract_strided_slice %18 {offsets = [8, 16], sizes = [8, 8], strides = [1, 1]} : vector<16x32xf32> to vector<8x8xf32>
    %196 = vector.extract_strided_slice %18 {offsets = [8, 24], sizes = [8, 8], strides = [1, 1]} : vector<16x32xf32> to vector<8x8xf32>
    %197 = vector.shape_cast %189 : vector<8x8xf32> to vector<1x8x8xf32>
    %198 = vector.shape_cast %190 : vector<8x8xf32> to vector<1x8x8xf32>
    %199 = vector.shape_cast %191 : vector<8x8xf32> to vector<1x8x8xf32>
    %200 = vector.shape_cast %192 : vector<8x8xf32> to vector<1x8x8xf32>
    %201 = vector.shape_cast %193 : vector<8x8xf32> to vector<1x8x8xf32>
    %202 = vector.shape_cast %194 : vector<8x8xf32> to vector<1x8x8xf32>
    %203 = vector.shape_cast %195 : vector<8x8xf32> to vector<1x8x8xf32>
    %204 = vector.shape_cast %196 : vector<8x8xf32> to vector<1x8x8xf32>
    %205 = tpu.concatenate %197, %198, %199, %200, %201, %202, %203, %204 in 0 : vector<1x8x8xf32>, vector<1x8x8xf32>, vector<1x8x8xf32>, vector<1x8x8xf32>, vector<1x8x8xf32>, vector<1x8x8xf32>, vector<1x8x8xf32>, vector<1x8x8xf32> -> vector<8x8x8xf32>
    "tpu.trace_start"() <{level = 10 : i32, message = "nqd,nkd->nqk"}> : () -> ()
    %cst_33 = arith.constant dense<0.000000e+00> : vector<8x8x8xf32>
    %206 = tpu.matmul %171, %188, %cst_33 {dimension_numbers = #tpu.dot_dimension_numbers<[2], [2], [1], [1], [0, 0, 0, 1, 1, 1], [0], [0]>} : vector<8x8x8xf32>, vector<8x8x8xf32>, vector<8x8x8xf32> -> vector<8x8x8xf32>
    "tpu.trace_stop"() : () -> ()
    %cst_34 = arith.constant 0.353553385 : f32
    %207 = vector.broadcast %cst_34 : f32 to vector<8x8x8xf32>
    %208 = arith.mulf %206, %207 : vector<8x8x8xf32>
    %cst_35 = arith.constant dense<0xFF800000> : vector<8x8xf32>
    %209 = vector.multi_reduction <maximumf>, %208, %cst_35 [2] : vector<8x8x8xf32> to vector<8x8xf32>
    %210 = vector.shape_cast %209 : vector<8x8xf32> to vector<8x8x1xf32>
    %211 = vector.broadcast %210 : vector<8x8x1xf32> to vector<8x8x8xf32>
    %212 = arith.subf %208, %211 : vector<8x8x8xf32>
    %213 = math.exp %212 : vector<8x8x8xf32>
    %cst_36 = arith.constant dense<0.000000e+00> : vector<8x8xf32>
    %214 = vector.multi_reduction <add>, %213, %cst_36 [2] : vector<8x8x8xf32> to vector<8x8xf32>
    %215 = vector.shape_cast %214 : vector<8x8xf32> to vector<8x8x1xf32>
    %216 = vector.broadcast %215 : vector<8x8x1xf32> to vector<8x8x8xf32>
    %217 = arith.divf %213, %216 : vector<8x8x8xf32>
    "tpu.trace_start"() <{level = 10 : i32, message = "nqk,nkd->nqd"}> : () -> ()
    %cst_37 = arith.constant dense<0.000000e+00> : vector<8x8x8xf32>
    %218 = tpu.matmul %217, %205, %cst_37 {dimension_numbers = #tpu.dot_dimension_numbers<[2], [1], [1], [2], [0, 0, 0, 1, 1, 2], [0], [0]>} : vector<8x8x8xf32>, vector<8x8x8xf32>, vector<8x8x8xf32> -> vector<8x8x8xf32>
    "tpu.trace_stop"() : () -> ()
    %219 = vector.extract_strided_slice %217 {offsets = [0, 0, 0], sizes = [1, 8, 8], strides = [1, 1, 1]} : vector<8x8x8xf32> to vector<1x8x8xf32>
    %220 = vector.shape_cast %219 : vector<1x8x8xf32> to vector<8x8xf32>
    %221 = vector.extract_strided_slice %217 {offsets = [1, 0, 0], sizes = [1, 8, 8], strides = [1, 1, 1]} : vector<8x8x8xf32> to vector<1x8x8xf32>
    %222 = vector.shape_cast %221 : vector<1x8x8xf32> to vector<8x8xf32>
    %223 = vector.extract_strided_slice %217 {offsets = [2, 0, 0], sizes = [1, 8, 8], strides = [1, 1, 1]} : vector<8x8x8xf32> to vector<1x8x8xf32>
    %224 = vector.shape_cast %223 : vector<1x8x8xf32> to vector<8x8xf32>
    %225 = vector.extract_strided_slice %217 {offsets = [3, 0, 0], sizes = [1, 8, 8], strides = [1, 1, 1]} : vector<8x8x8xf32> to vector<1x8x8xf32>
    %226 = vector.shape_cast %225 : vector<1x8x8xf32> to vector<8x8xf32>
    %227 = vector.extract_strided_slice %217 {offsets = [4, 0, 0], sizes = [1, 8, 8], strides = [1, 1, 1]} : vector<8x8x8xf32> to vector<1x8x8xf32>
    %228 = vector.shape_cast %227 : vector<1x8x8xf32> to vector<8x8xf32>
    %229 = vector.extract_strided_slice %217 {offsets = [5, 0, 0], sizes = [1, 8, 8], strides = [1, 1, 1]} : vector<8x8x8xf32> to vector<1x8x8xf32>
    %230 = vector.shape_cast %229 : vector<1x8x8xf32> to vector<8x8xf32>
    %231 = vector.extract_strided_slice %217 {offsets = [6, 0, 0], sizes = [1, 8, 8], strides = [1, 1, 1]} : vector<8x8x8xf32> to vector<1x8x8xf32>
    %232 = vector.shape_cast %231 : vector<1x8x8xf32> to vector<8x8xf32>
    %233 = vector.extract_strided_slice %217 {offsets = [7, 0, 0], sizes = [1, 8, 8], strides = [1, 1, 1]} : vector<8x8x8xf32> to vector<1x8x8xf32>
    %234 = vector.shape_cast %233 : vector<1x8x8xf32> to vector<8x8xf32>
    %235 = tpu.concatenate %220, %222, %224, %226, %228, %230, %232, %234 in 1 : vector<8x8xf32>, vector<8x8xf32>, vector<8x8xf32>, vector<8x8xf32>, vector<8x8xf32>, vector<8x8xf32>, vector<8x8xf32>, vector<8x8xf32> -> vector<8x64xf32>
    %236 = vector.extract_strided_slice %218 {offsets = [0, 0, 0], sizes = [1, 8, 8], strides = [1, 1, 1]} : vector<8x8x8xf32> to vector<1x8x8xf32>
    %237 = vector.shape_cast %236 : vector<1x8x8xf32> to vector<8x8xf32>
    %238 = vector.extract_strided_slice %218 {offsets = [1, 0, 0], sizes = [1, 8, 8], strides = [1, 1, 1]} : vector<8x8x8xf32> to vector<1x8x8xf32>
    %239 = vector.shape_cast %238 : vector<1x8x8xf32> to vector<8x8xf32>
    %240 = vector.extract_strided_slice %218 {offsets = [2, 0, 0], sizes = [1, 8, 8], strides = [1, 1, 1]} : vector<8x8x8xf32> to vector<1x8x8xf32>
    %241 = vector.shape_cast %240 : vector<1x8x8xf32> to vector<8x8xf32>
    %242 = vector.extract_strided_slice %218 {offsets = [3, 0, 0], sizes = [1, 8, 8], strides = [1, 1, 1]} : vector<8x8x8xf32> to vector<1x8x8xf32>
    %243 = vector.shape_cast %242 : vector<1x8x8xf32> to vector<8x8xf32>
    %244 = tpu.concatenate %237, %239, %241, %243 in 1 : vector<8x8xf32>, vector<8x8xf32>, vector<8x8xf32>, vector<8x8xf32> -> vector<8x32xf32>
    %245 = vector.extract_strided_slice %218 {offsets = [4, 0, 0], sizes = [1, 8, 8], strides = [1, 1, 1]} : vector<8x8x8xf32> to vector<1x8x8xf32>
    %246 = vector.shape_cast %245 : vector<1x8x8xf32> to vector<8x8xf32>
    %247 = vector.extract_strided_slice %218 {offsets = [5, 0, 0], sizes = [1, 8, 8], strides = [1, 1, 1]} : vector<8x8x8xf32> to vector<1x8x8xf32>
    %248 = vector.shape_cast %247 : vector<1x8x8xf32> to vector<8x8xf32>
    %249 = vector.extract_strided_slice %218 {offsets = [6, 0, 0], sizes = [1, 8, 8], strides = [1, 1, 1]} : vector<8x8x8xf32> to vector<1x8x8xf32>
    %250 = vector.shape_cast %249 : vector<1x8x8xf32> to vector<8x8xf32>
    %251 = vector.extract_strided_slice %218 {offsets = [7, 0, 0], sizes = [1, 8, 8], strides = [1, 1, 1]} : vector<8x8x8xf32> to vector<1x8x8xf32>
    %252 = vector.shape_cast %251 : vector<1x8x8xf32> to vector<8x8xf32>
    %253 = tpu.concatenate %246, %248, %250, %252 in 1 : vector<8x8xf32>, vector<8x8xf32>, vector<8x8xf32>, vector<8x8xf32> -> vector<8x32xf32>
    %254 = tpu.concatenate %244, %253 in 0 : vector<8x32xf32>, vector<8x32xf32> -> vector<16x32xf32>
    %cst_38 = arith.constant dense<0.000000e+00> : vector<16x32xf32>
    %255 = tpu.matmul %254, %5, %cst_38 {dimension_numbers = #tpu.dot_dimension_numbers<[1], [0], [0], [1], [0, 0, 1, 1], [], []>} : vector<16x32xf32>, vector<32x32xf32>, vector<16x32xf32> -> vector<16x32xf32>
    %256 = vector.broadcast %9 : vector<1x32xf32> to vector<16x32xf32>
    %257 = arith.addf %255, %256 : vector<16x32xf32>
    %258 = arith.addf %148, %257 : vector<16x32xf32>
    %c0_39 = arith.constant 0 : index
    %c2_40 = arith.constant 2 : index
    %c0_41 = arith.constant 0 : index
    %259 = vector.load %arg6[%c0_39, %c2_40, %c0_41] : memref<2x8x128xf32, #tpu.memory_space<vmem>>, vector<1x1x32xf32>
    %260 = vector.shape_cast %259 : vector<1x1x32xf32> to vector<1x32xf32>
    %c0_42 = arith.constant 0 : index
    %c3_43 = arith.constant 3 : index
    %c0_44 = arith.constant 0 : index
    %261 = vector.load %arg6[%c0_42, %c3_43, %c0_44] : memref<2x8x128xf32, #tpu.memory_space<vmem>>, vector<1x1x32xf32>
    %262 = vector.shape_cast %261 : vector<1x1x32xf32> to vector<1x32xf32>
    %cst_45 = arith.constant dense<0.000000e+00> : vector<16xf32>
    %263 = vector.multi_reduction <add>, %258, %cst_45 [1] : vector<16x32xf32> to vector<16xf32>
    %264 = vector.shape_cast %263 : vector<16xf32> to vector<16x1xf32>
    %cst_46 = arith.constant 3.200000e+01 : f32
    %265 = vector.broadcast %cst_46 : f32 to vector<16x1xf32>
    %266 = arith.divf %264, %265 : vector<16x1xf32>
    %267 = vector.broadcast %266 : vector<16x1xf32> to vector<16x32xf32>
    %268 = arith.subf %258, %267 : vector<16x32xf32>
    %269 = arith.mulf %268, %268 : vector<16x32xf32>
    %cst_47 = arith.constant dense<0.000000e+00> : vector<16xf32>
    %270 = vector.multi_reduction <add>, %269, %cst_47 [1] : vector<16x32xf32> to vector<16xf32>
    %271 = vector.shape_cast %270 : vector<16xf32> to vector<16x1xf32>
    %cst_48 = arith.constant 3.200000e+01 : f32
    %272 = vector.broadcast %cst_48 : f32 to vector<16x1xf32>
    %273 = arith.divf %271, %272 : vector<16x1xf32>
    %274 = vector.broadcast %266 : vector<16x1xf32> to vector<16x32xf32>
    %275 = arith.subf %258, %274 : vector<16x32xf32>
    %cst_49 = arith.constant 9.99999974E-6 : f32
    %276 = vector.broadcast %cst_49 : f32 to vector<16x1xf32>
    %277 = arith.addf %273, %276 : vector<16x1xf32>
    %278 = math.rsqrt %277 : vector<16x1xf32>
    %279 = vector.broadcast %278 : vector<16x1xf32> to vector<16x32xf32>
    %280 = arith.mulf %275, %279 : vector<16x32xf32>
    %281 = vector.broadcast %260 : vector<1x32xf32> to vector<16x32xf32>
    %282 = arith.mulf %280, %281 : vector<16x32xf32>
    %283 = vector.broadcast %262 : vector<1x32xf32> to vector<16x32xf32>
    %284 = arith.addf %282, %283 : vector<16x32xf32>
    %c0_50 = arith.constant 0 : index
    %c0_51 = arith.constant 0 : index
    %c0_52 = arith.constant 0 : index
    %285 = vector.load %arg4[%c0_50, %c0_51, %c0_52] : memref<2x32x64xf32, #tpu.memory_space<vmem>>, vector<1x32x64xf32>
    %286 = vector.shape_cast %285 : vector<1x32x64xf32> to vector<32x64xf32>
    %cst_53 = arith.constant dense<0.000000e+00> : vector<16x64xf32>
    %287 = tpu.matmul %284, %286, %cst_53 {dimension_numbers = #tpu.dot_dimension_numbers<[1], [0], [0], [1], [0, 0, 1, 1], [], []>} : vector<16x32xf32>, vector<32x64xf32>, vector<16x64xf32> -> vector<16x64xf32>
    %c0_54 = arith.constant 0 : index
    %c4 = arith.constant 4 : index
    %c0_55 = arith.constant 0 : index
    %288 = vector.load %arg6[%c0_54, %c4, %c0_55] : memref<2x8x128xf32, #tpu.memory_space<vmem>>, vector<1x1x64xf32>
    %289 = vector.shape_cast %288 : vector<1x1x64xf32> to vector<1x64xf32>
    %290 = vector.broadcast %289 : vector<1x64xf32> to vector<16x64xf32>
    %291 = arith.addf %287, %290 : vector<16x64xf32>
    %cst_56 = arith.constant 0.000000e+00 : f32
    %292 = vector.broadcast %cst_56 : f32 to vector<16x64xf32>
    %293 = arith.maximumf %291, %292 : vector<16x64xf32>
    %c0_57 = arith.constant 0 : index
    %c0_58 = arith.constant 0 : index
    %c0_59 = arith.constant 0 : index
    %294 = vector.load %arg5[%c0_57, %c0_58, %c0_59] : memref<2x64x32xf32, #tpu.memory_space<vmem>>, vector<1x64x32xf32>
    %295 = vector.shape_cast %294 : vector<1x64x32xf32> to vector<64x32xf32>
    %cst_60 = arith.constant dense<0.000000e+00> : vector<16x32xf32>
    %296 = tpu.matmul %293, %295, %cst_60 {dimension_numbers = #tpu.dot_dimension_numbers<[1], [0], [0], [1], [0, 0, 1, 1], [], []>} : vector<16x64xf32>, vector<64x32xf32>, vector<16x32xf32> -> vector<16x32xf32>
    %c0_61 = arith.constant 0 : index
    %c5 = arith.constant 5 : index
    %c0_62 = arith.constant 0 : index
    %297 = vector.load %arg6[%c0_61, %c5, %c0_62] : memref<2x8x128xf32, #tpu.memory_space<vmem>>, vector<1x1x32xf32>
    %298 = vector.shape_cast %297 : vector<1x1x32xf32> to vector<1x32xf32>
    %299 = vector.broadcast %298 : vector<1x32xf32> to vector<16x32xf32>
    %300 = arith.addf %296, %299 : vector<16x32xf32>
    %301 = arith.addf %284, %300 : vector<16x32xf32>
    %c0_63 = arith.constant 0 : index
    %c6 = arith.constant 6 : index
    %c0_64 = arith.constant 0 : index
    %302 = vector.load %arg6[%c0_63, %c6, %c0_64] : memref<2x8x128xf32, #tpu.memory_space<vmem>>, vector<1x1x32xf32>
    %303 = vector.shape_cast %302 : vector<1x1x32xf32> to vector<1x32xf32>
    %c0_65 = arith.constant 0 : index
    %c7 = arith.constant 7 : index
    %c0_66 = arith.constant 0 : index
    %304 = vector.load %arg6[%c0_65, %c7, %c0_66] : memref<2x8x128xf32, #tpu.memory_space<vmem>>, vector<1x1x32xf32>
    %305 = vector.shape_cast %304 : vector<1x1x32xf32> to vector<1x32xf32>
    %cst_67 = arith.constant dense<0.000000e+00> : vector<16xf32>
    %306 = vector.multi_reduction <add>, %301, %cst_67 [1] : vector<16x32xf32> to vector<16xf32>
    %307 = vector.shape_cast %306 : vector<16xf32> to vector<16x1xf32>
    %cst_68 = arith.constant 3.200000e+01 : f32
    %308 = vector.broadcast %cst_68 : f32 to vector<16x1xf32>
    %309 = arith.divf %307, %308 : vector<16x1xf32>
    %310 = vector.broadcast %309 : vector<16x1xf32> to vector<16x32xf32>
    %311 = arith.subf %301, %310 : vector<16x32xf32>
    %312 = arith.mulf %311, %311 : vector<16x32xf32>
    %cst_69 = arith.constant dense<0.000000e+00> : vector<16xf32>
    %313 = vector.multi_reduction <add>, %312, %cst_69 [1] : vector<16x32xf32> to vector<16xf32>
    %314 = vector.shape_cast %313 : vector<16xf32> to vector<16x1xf32>
    %cst_70 = arith.constant 3.200000e+01 : f32
    %315 = vector.broadcast %cst_70 : f32 to vector<16x1xf32>
    %316 = arith.divf %314, %315 : vector<16x1xf32>
    %317 = vector.broadcast %309 : vector<16x1xf32> to vector<16x32xf32>
    %318 = arith.subf %301, %317 : vector<16x32xf32>
    %cst_71 = arith.constant 9.99999974E-6 : f32
    %319 = vector.broadcast %cst_71 : f32 to vector<16x1xf32>
    %320 = arith.addf %316, %319 : vector<16x1xf32>
    %321 = math.rsqrt %320 : vector<16x1xf32>
    %322 = vector.broadcast %321 : vector<16x1xf32> to vector<16x32xf32>
    %323 = arith.mulf %318, %322 : vector<16x32xf32>
    %324 = vector.broadcast %303 : vector<1x32xf32> to vector<16x32xf32>
    %325 = arith.mulf %323, %324 : vector<16x32xf32>
    %326 = vector.broadcast %305 : vector<1x32xf32> to vector<16x32xf32>
    %327 = arith.addf %325, %326 : vector<16x32xf32>
    %c1_72 = arith.constant 1 : index
    %c0_73 = arith.constant 0 : index
    %c0_74 = arith.constant 0 : index
    %328 = vector.load %arg2[%c1_72, %c0_73, %c0_74] : memref<2x32x96xf32, #tpu.memory_space<vmem>>, vector<1x32x96xf32>
    %329 = vector.shape_cast %328 : vector<1x32x96xf32> to vector<32x96xf32>
    %c1_75 = arith.constant 1 : index
    %c0_76 = arith.constant 0 : index
    %c0_77 = arith.constant 0 : index
    %330 = vector.load %arg3[%c1_75, %c0_76, %c0_77] : memref<2x32x32xf32, #tpu.memory_space<vmem>>, vector<1x32x32xf32>
    %331 = vector.shape_cast %330 : vector<1x32x32xf32> to vector<32x32xf32>
    %c1_78 = arith.constant 1 : index
    %c0_79 = arith.constant 0 : index
    %c0_80 = arith.constant 0 : index
    %332 = vector.load %arg6[%c1_78, %c0_79, %c0_80] : memref<2x8x128xf32, #tpu.memory_space<vmem>>, vector<1x1x96xf32>
    %333 = vector.shape_cast %332 : vector<1x1x96xf32> to vector<1x96xf32>
    %c1_81 = arith.constant 1 : index
    %c1_82 = arith.constant 1 : index
    %c0_83 = arith.constant 0 : index
    %334 = vector.load %arg6[%c1_81, %c1_82, %c0_83] : memref<2x8x128xf32, #tpu.memory_space<vmem>>, vector<1x1x32xf32>
    %335 = vector.shape_cast %334 : vector<1x1x32xf32> to vector<1x32xf32>
    %336 = tpu.concatenate %327, %1 in 0 : vector<16x32xf32>, vector<16x32xf32> -> vector<32x32xf32>
    %cst_84 = arith.constant dense<0.000000e+00> : vector<32x96xf32>
    %337 = tpu.matmul %336, %329, %cst_84 {dimension_numbers = #tpu.dot_dimension_numbers<[1], [0], [0], [1], [0, 0, 1, 1], [], []>} : vector<32x32xf32>, vector<32x96xf32>, vector<32x96xf32> -> vector<32x96xf32>
    %338 = vector.broadcast %333 : vector<1x96xf32> to vector<32x96xf32>
    %339 = arith.addf %337, %338 : vector<32x96xf32>
    %340 = vector.extract_strided_slice %339 {offsets = [0, 0], sizes = [16, 32], strides = [1, 1]} : vector<32x96xf32> to vector<16x32xf32>
    %341 = vector.extract_strided_slice %339 {offsets = [0, 32], sizes = [16, 32], strides = [1, 1]} : vector<32x96xf32> to vector<16x32xf32>
    %342 = vector.extract_strided_slice %339 {offsets = [0, 64], sizes = [16, 32], strides = [1, 1]} : vector<32x96xf32> to vector<16x32xf32>
    %343 = vector.extract_strided_slice %339 {offsets = [16, 32], sizes = [16, 32], strides = [1, 1]} : vector<32x96xf32> to vector<16x32xf32>
    %344 = vector.extract_strided_slice %339 {offsets = [16, 64], sizes = [16, 32], strides = [1, 1]} : vector<32x96xf32> to vector<16x32xf32>
    %345 = vector.extract_strided_slice %340 {offsets = [0, 0], sizes = [8, 8], strides = [1, 1]} : vector<16x32xf32> to vector<8x8xf32>
    %346 = vector.extract_strided_slice %340 {offsets = [0, 8], sizes = [8, 8], strides = [1, 1]} : vector<16x32xf32> to vector<8x8xf32>
    %347 = vector.extract_strided_slice %340 {offsets = [0, 16], sizes = [8, 8], strides = [1, 1]} : vector<16x32xf32> to vector<8x8xf32>
    %348 = vector.extract_strided_slice %340 {offsets = [0, 24], sizes = [8, 8], strides = [1, 1]} : vector<16x32xf32> to vector<8x8xf32>
    %349 = vector.extract_strided_slice %340 {offsets = [8, 0], sizes = [8, 8], strides = [1, 1]} : vector<16x32xf32> to vector<8x8xf32>
    %350 = vector.extract_strided_slice %340 {offsets = [8, 8], sizes = [8, 8], strides = [1, 1]} : vector<16x32xf32> to vector<8x8xf32>
    %351 = vector.extract_strided_slice %340 {offsets = [8, 16], sizes = [8, 8], strides = [1, 1]} : vector<16x32xf32> to vector<8x8xf32>
    %352 = vector.extract_strided_slice %340 {offsets = [8, 24], sizes = [8, 8], strides = [1, 1]} : vector<16x32xf32> to vector<8x8xf32>
    %353 = vector.shape_cast %345 : vector<8x8xf32> to vector<1x8x8xf32>
    %354 = vector.shape_cast %346 : vector<8x8xf32> to vector<1x8x8xf32>
    %355 = vector.shape_cast %347 : vector<8x8xf32> to vector<1x8x8xf32>
    %356 = vector.shape_cast %348 : vector<8x8xf32> to vector<1x8x8xf32>
    %357 = vector.shape_cast %349 : vector<8x8xf32> to vector<1x8x8xf32>
    %358 = vector.shape_cast %350 : vector<8x8xf32> to vector<1x8x8xf32>
    %359 = vector.shape_cast %351 : vector<8x8xf32> to vector<1x8x8xf32>
    %360 = vector.shape_cast %352 : vector<8x8xf32> to vector<1x8x8xf32>
    %361 = tpu.concatenate %353, %354, %355, %356, %357, %358, %359, %360 in 0 : vector<1x8x8xf32>, vector<1x8x8xf32>, vector<1x8x8xf32>, vector<1x8x8xf32>, vector<1x8x8xf32>, vector<1x8x8xf32>, vector<1x8x8xf32>, vector<1x8x8xf32> -> vector<8x8x8xf32>
    %362 = vector.extract_strided_slice %341 {offsets = [0, 0], sizes = [8, 8], strides = [1, 1]} : vector<16x32xf32> to vector<8x8xf32>
    %363 = vector.extract_strided_slice %341 {offsets = [0, 8], sizes = [8, 8], strides = [1, 1]} : vector<16x32xf32> to vector<8x8xf32>
    %364 = vector.extract_strided_slice %341 {offsets = [0, 16], sizes = [8, 8], strides = [1, 1]} : vector<16x32xf32> to vector<8x8xf32>
    %365 = vector.extract_strided_slice %341 {offsets = [0, 24], sizes = [8, 8], strides = [1, 1]} : vector<16x32xf32> to vector<8x8xf32>
    %366 = vector.extract_strided_slice %341 {offsets = [8, 0], sizes = [8, 8], strides = [1, 1]} : vector<16x32xf32> to vector<8x8xf32>
    %367 = vector.extract_strided_slice %341 {offsets = [8, 8], sizes = [8, 8], strides = [1, 1]} : vector<16x32xf32> to vector<8x8xf32>
    %368 = vector.extract_strided_slice %341 {offsets = [8, 16], sizes = [8, 8], strides = [1, 1]} : vector<16x32xf32> to vector<8x8xf32>
    %369 = vector.extract_strided_slice %341 {offsets = [8, 24], sizes = [8, 8], strides = [1, 1]} : vector<16x32xf32> to vector<8x8xf32>
    %370 = vector.shape_cast %362 : vector<8x8xf32> to vector<1x8x8xf32>
    %371 = vector.shape_cast %363 : vector<8x8xf32> to vector<1x8x8xf32>
    %372 = vector.shape_cast %364 : vector<8x8xf32> to vector<1x8x8xf32>
    %373 = vector.shape_cast %365 : vector<8x8xf32> to vector<1x8x8xf32>
    %374 = vector.shape_cast %366 : vector<8x8xf32> to vector<1x8x8xf32>
    %375 = vector.shape_cast %367 : vector<8x8xf32> to vector<1x8x8xf32>
    %376 = vector.shape_cast %368 : vector<8x8xf32> to vector<1x8x8xf32>
    %377 = vector.shape_cast %369 : vector<8x8xf32> to vector<1x8x8xf32>
    %378 = tpu.concatenate %370, %371, %372, %373, %374, %375, %376, %377 in 0 : vector<1x8x8xf32>, vector<1x8x8xf32>, vector<1x8x8xf32>, vector<1x8x8xf32>, vector<1x8x8xf32>, vector<1x8x8xf32>, vector<1x8x8xf32>, vector<1x8x8xf32> -> vector<8x8x8xf32>
    %379 = vector.extract_strided_slice %342 {offsets = [0, 0], sizes = [8, 8], strides = [1, 1]} : vector<16x32xf32> to vector<8x8xf32>
    %380 = vector.extract_strided_slice %342 {offsets = [0, 8], sizes = [8, 8], strides = [1, 1]} : vector<16x32xf32> to vector<8x8xf32>
    %381 = vector.extract_strided_slice %342 {offsets = [0, 16], sizes = [8, 8], strides = [1, 1]} : vector<16x32xf32> to vector<8x8xf32>
    %382 = vector.extract_strided_slice %342 {offsets = [0, 24], sizes = [8, 8], strides = [1, 1]} : vector<16x32xf32> to vector<8x8xf32>
    %383 = vector.extract_strided_slice %342 {offsets = [8, 0], sizes = [8, 8], strides = [1, 1]} : vector<16x32xf32> to vector<8x8xf32>
    %384 = vector.extract_strided_slice %342 {offsets = [8, 8], sizes = [8, 8], strides = [1, 1]} : vector<16x32xf32> to vector<8x8xf32>
    %385 = vector.extract_strided_slice %342 {offsets = [8, 16], sizes = [8, 8], strides = [1, 1]} : vector<16x32xf32> to vector<8x8xf32>
    %386 = vector.extract_strided_slice %342 {offsets = [8, 24], sizes = [8, 8], strides = [1, 1]} : vector<16x32xf32> to vector<8x8xf32>
    %387 = vector.shape_cast %379 : vector<8x8xf32> to vector<1x8x8xf32>
    %388 = vector.shape_cast %380 : vector<8x8xf32> to vector<1x8x8xf32>
    %389 = vector.shape_cast %381 : vector<8x8xf32> to vector<1x8x8xf32>
    %390 = vector.shape_cast %382 : vector<8x8xf32> to vector<1x8x8xf32>
    %391 = vector.shape_cast %383 : vector<8x8xf32> to vector<1x8x8xf32>
    %392 = vector.shape_cast %384 : vector<8x8xf32> to vector<1x8x8xf32>
    %393 = vector.shape_cast %385 : vector<8x8xf32> to vector<1x8x8xf32>
    %394 = vector.shape_cast %386 : vector<8x8xf32> to vector<1x8x8xf32>
    %395 = tpu.concatenate %387, %388, %389, %390, %391, %392, %393, %394 in 0 : vector<1x8x8xf32>, vector<1x8x8xf32>, vector<1x8x8xf32>, vector<1x8x8xf32>, vector<1x8x8xf32>, vector<1x8x8xf32>, vector<1x8x8xf32>, vector<1x8x8xf32> -> vector<8x8x8xf32>
    "tpu.trace_start"() <{level = 10 : i32, message = "nqd,nkd->nqk"}> : () -> ()
    %cst_85 = arith.constant dense<0.000000e+00> : vector<8x8x8xf32>
    %396 = tpu.matmul %361, %378, %cst_85 {dimension_numbers = #tpu.dot_dimension_numbers<[2], [2], [1], [1], [0, 0, 0, 1, 1, 1], [0], [0]>} : vector<8x8x8xf32>, vector<8x8x8xf32>, vector<8x8x8xf32> -> vector<8x8x8xf32>
    "tpu.trace_stop"() : () -> ()
    %cst_86 = arith.constant 0.353553385 : f32
    %397 = vector.broadcast %cst_86 : f32 to vector<8x8x8xf32>
    %398 = arith.mulf %396, %397 : vector<8x8x8xf32>
    %cst_87 = arith.constant dense<0xFF800000> : vector<8x8xf32>
    %399 = vector.multi_reduction <maximumf>, %398, %cst_87 [2] : vector<8x8x8xf32> to vector<8x8xf32>
    %400 = vector.shape_cast %399 : vector<8x8xf32> to vector<8x8x1xf32>
    %401 = vector.broadcast %400 : vector<8x8x1xf32> to vector<8x8x8xf32>
    %402 = arith.subf %398, %401 : vector<8x8x8xf32>
    %403 = math.exp %402 : vector<8x8x8xf32>
    %cst_88 = arith.constant dense<0.000000e+00> : vector<8x8xf32>
    %404 = vector.multi_reduction <add>, %403, %cst_88 [2] : vector<8x8x8xf32> to vector<8x8xf32>
    %405 = vector.shape_cast %404 : vector<8x8xf32> to vector<8x8x1xf32>
    %406 = vector.broadcast %405 : vector<8x8x1xf32> to vector<8x8x8xf32>
    %407 = arith.divf %403, %406 : vector<8x8x8xf32>
    "tpu.trace_start"() <{level = 10 : i32, message = "nqk,nkd->nqd"}> : () -> ()
    %cst_89 = arith.constant dense<0.000000e+00> : vector<8x8x8xf32>
    %408 = tpu.matmul %407, %395, %cst_89 {dimension_numbers = #tpu.dot_dimension_numbers<[2], [1], [1], [2], [0, 0, 0, 1, 1, 2], [0], [0]>} : vector<8x8x8xf32>, vector<8x8x8xf32>, vector<8x8x8xf32> -> vector<8x8x8xf32>
    "tpu.trace_stop"() : () -> ()
    %409 = vector.extract_strided_slice %407 {offsets = [0, 0, 0], sizes = [1, 8, 8], strides = [1, 1, 1]} : vector<8x8x8xf32> to vector<1x8x8xf32>
    %410 = vector.shape_cast %409 : vector<1x8x8xf32> to vector<8x8xf32>
    %411 = vector.extract_strided_slice %407 {offsets = [1, 0, 0], sizes = [1, 8, 8], strides = [1, 1, 1]} : vector<8x8x8xf32> to vector<1x8x8xf32>
    %412 = vector.shape_cast %411 : vector<1x8x8xf32> to vector<8x8xf32>
    %413 = vector.extract_strided_slice %407 {offsets = [2, 0, 0], sizes = [1, 8, 8], strides = [1, 1, 1]} : vector<8x8x8xf32> to vector<1x8x8xf32>
    %414 = vector.shape_cast %413 : vector<1x8x8xf32> to vector<8x8xf32>
    %415 = vector.extract_strided_slice %407 {offsets = [3, 0, 0], sizes = [1, 8, 8], strides = [1, 1, 1]} : vector<8x8x8xf32> to vector<1x8x8xf32>
    %416 = vector.shape_cast %415 : vector<1x8x8xf32> to vector<8x8xf32>
    %417 = vector.extract_strided_slice %407 {offsets = [4, 0, 0], sizes = [1, 8, 8], strides = [1, 1, 1]} : vector<8x8x8xf32> to vector<1x8x8xf32>
    %418 = vector.shape_cast %417 : vector<1x8x8xf32> to vector<8x8xf32>
    %419 = vector.extract_strided_slice %407 {offsets = [5, 0, 0], sizes = [1, 8, 8], strides = [1, 1, 1]} : vector<8x8x8xf32> to vector<1x8x8xf32>
    %420 = vector.shape_cast %419 : vector<1x8x8xf32> to vector<8x8xf32>
    %421 = vector.extract_strided_slice %407 {offsets = [6, 0, 0], sizes = [1, 8, 8], strides = [1, 1, 1]} : vector<8x8x8xf32> to vector<1x8x8xf32>
    %422 = vector.shape_cast %421 : vector<1x8x8xf32> to vector<8x8xf32>
    %423 = vector.extract_strided_slice %407 {offsets = [7, 0, 0], sizes = [1, 8, 8], strides = [1, 1, 1]} : vector<8x8x8xf32> to vector<1x8x8xf32>
    %424 = vector.shape_cast %423 : vector<1x8x8xf32> to vector<8x8xf32>
    %425 = tpu.concatenate %410, %412, %414, %416, %418, %420, %422, %424 in 1 : vector<8x8xf32>, vector<8x8xf32>, vector<8x8xf32>, vector<8x8xf32>, vector<8x8xf32>, vector<8x8xf32>, vector<8x8xf32>, vector<8x8xf32> -> vector<8x64xf32>
    %426 = vector.extract_strided_slice %408 {offsets = [0, 0, 0], sizes = [1, 8, 8], strides = [1, 1, 1]} : vector<8x8x8xf32> to vector<1x8x8xf32>
    %427 = vector.shape_cast %426 : vector<1x8x8xf32> to vector<8x8xf32>
    %428 = vector.extract_strided_slice %408 {offsets = [1, 0, 0], sizes = [1, 8, 8], strides = [1, 1, 1]} : vector<8x8x8xf32> to vector<1x8x8xf32>
    %429 = vector.shape_cast %428 : vector<1x8x8xf32> to vector<8x8xf32>
    %430 = vector.extract_strided_slice %408 {offsets = [2, 0, 0], sizes = [1, 8, 8], strides = [1, 1, 1]} : vector<8x8x8xf32> to vector<1x8x8xf32>
    %431 = vector.shape_cast %430 : vector<1x8x8xf32> to vector<8x8xf32>
    %432 = vector.extract_strided_slice %408 {offsets = [3, 0, 0], sizes = [1, 8, 8], strides = [1, 1, 1]} : vector<8x8x8xf32> to vector<1x8x8xf32>
    %433 = vector.shape_cast %432 : vector<1x8x8xf32> to vector<8x8xf32>
    %434 = tpu.concatenate %427, %429, %431, %433 in 1 : vector<8x8xf32>, vector<8x8xf32>, vector<8x8xf32>, vector<8x8xf32> -> vector<8x32xf32>
    %435 = vector.extract_strided_slice %408 {offsets = [4, 0, 0], sizes = [1, 8, 8], strides = [1, 1, 1]} : vector<8x8x8xf32> to vector<1x8x8xf32>
    %436 = vector.shape_cast %435 : vector<1x8x8xf32> to vector<8x8xf32>
    %437 = vector.extract_strided_slice %408 {offsets = [5, 0, 0], sizes = [1, 8, 8], strides = [1, 1, 1]} : vector<8x8x8xf32> to vector<1x8x8xf32>
    %438 = vector.shape_cast %437 : vector<1x8x8xf32> to vector<8x8xf32>
    %439 = vector.extract_strided_slice %408 {offsets = [6, 0, 0], sizes = [1, 8, 8], strides = [1, 1, 1]} : vector<8x8x8xf32> to vector<1x8x8xf32>
    %440 = vector.shape_cast %439 : vector<1x8x8xf32> to vector<8x8xf32>
    %441 = vector.extract_strided_slice %408 {offsets = [7, 0, 0], sizes = [1, 8, 8], strides = [1, 1, 1]} : vector<8x8x8xf32> to vector<1x8x8xf32>
    %442 = vector.shape_cast %441 : vector<1x8x8xf32> to vector<8x8xf32>
    %443 = tpu.concatenate %436, %438, %440, %442 in 1 : vector<8x8xf32>, vector<8x8xf32>, vector<8x8xf32>, vector<8x8xf32> -> vector<8x32xf32>
    %444 = tpu.concatenate %434, %443 in 0 : vector<8x32xf32>, vector<8x32xf32> -> vector<16x32xf32>
    %cst_90 = arith.constant dense<0.000000e+00> : vector<16x32xf32>
    %445 = tpu.matmul %444, %331, %cst_90 {dimension_numbers = #tpu.dot_dimension_numbers<[1], [0], [0], [1], [0, 0, 1, 1], [], []>} : vector<16x32xf32>, vector<32x32xf32>, vector<16x32xf32> -> vector<16x32xf32>
    %446 = vector.broadcast %335 : vector<1x32xf32> to vector<16x32xf32>
    %447 = arith.addf %445, %446 : vector<16x32xf32>
    %448 = arith.addf %327, %447 : vector<16x32xf32>
    %c1_91 = arith.constant 1 : index
    %c2_92 = arith.constant 2 : index
    %c0_93 = arith.constant 0 : index
    %449 = vector.load %arg6[%c1_91, %c2_92, %c0_93] : memref<2x8x128xf32, #tpu.memory_space<vmem>>, vector<1x1x32xf32>
    %450 = vector.shape_cast %449 : vector<1x1x32xf32> to vector<1x32xf32>
    %c1_94 = arith.constant 1 : index
    %c3_95 = arith.constant 3 : index
    %c0_96 = arith.constant 0 : index
    %451 = vector.load %arg6[%c1_94, %c3_95, %c0_96] : memref<2x8x128xf32, #tpu.memory_space<vmem>>, vector<1x1x32xf32>
    %452 = vector.shape_cast %451 : vector<1x1x32xf32> to vector<1x32xf32>
    %cst_97 = arith.constant dense<0.000000e+00> : vector<16xf32>
    %453 = vector.multi_reduction <add>, %448, %cst_97 [1] : vector<16x32xf32> to vector<16xf32>
    %454 = vector.shape_cast %453 : vector<16xf32> to vector<16x1xf32>
    %cst_98 = arith.constant 3.200000e+01 : f32
    %455 = vector.broadcast %cst_98 : f32 to vector<16x1xf32>
    %456 = arith.divf %454, %455 : vector<16x1xf32>
    %457 = vector.broadcast %456 : vector<16x1xf32> to vector<16x32xf32>
    %458 = arith.subf %448, %457 : vector<16x32xf32>
    %459 = arith.mulf %458, %458 : vector<16x32xf32>
    %cst_99 = arith.constant dense<0.000000e+00> : vector<16xf32>
    %460 = vector.multi_reduction <add>, %459, %cst_99 [1] : vector<16x32xf32> to vector<16xf32>
    %461 = vector.shape_cast %460 : vector<16xf32> to vector<16x1xf32>
    %cst_100 = arith.constant 3.200000e+01 : f32
    %462 = vector.broadcast %cst_100 : f32 to vector<16x1xf32>
    %463 = arith.divf %461, %462 : vector<16x1xf32>
    %464 = vector.broadcast %456 : vector<16x1xf32> to vector<16x32xf32>
    %465 = arith.subf %448, %464 : vector<16x32xf32>
    %cst_101 = arith.constant 9.99999974E-6 : f32
    %466 = vector.broadcast %cst_101 : f32 to vector<16x1xf32>
    %467 = arith.addf %463, %466 : vector<16x1xf32>
    %468 = math.rsqrt %467 : vector<16x1xf32>
    %469 = vector.broadcast %468 : vector<16x1xf32> to vector<16x32xf32>
    %470 = arith.mulf %465, %469 : vector<16x32xf32>
    %471 = vector.broadcast %450 : vector<1x32xf32> to vector<16x32xf32>
    %472 = arith.mulf %470, %471 : vector<16x32xf32>
    %473 = vector.broadcast %452 : vector<1x32xf32> to vector<16x32xf32>
    %474 = arith.addf %472, %473 : vector<16x32xf32>
    %475 = vector.extract_strided_slice %329 {offsets = [0, 0], sizes = [32, 32], strides = [1, 1]} : vector<32x96xf32> to vector<32x32xf32>
    %cst_102 = arith.constant dense<0.000000e+00> : vector<16x32xf32>
    %476 = tpu.matmul %474, %475, %cst_102 {dimension_numbers = #tpu.dot_dimension_numbers<[1], [0], [0], [1], [0, 0, 1, 1], [], []>} : vector<16x32xf32>, vector<32x32xf32>, vector<16x32xf32> -> vector<16x32xf32>
    %c1_103 = arith.constant 1 : index
    %c0_104 = arith.constant 0 : index
    %c0_105 = arith.constant 0 : index
    %477 = vector.load %arg6[%c1_103, %c0_104, %c0_105] : memref<2x8x128xf32, #tpu.memory_space<vmem>>, vector<1x1x32xf32>
    %478 = vector.shape_cast %477 : vector<1x1x32xf32> to vector<1x32xf32>
    %479 = vector.broadcast %478 : vector<1x32xf32> to vector<16x32xf32>
    %480 = arith.addf %476, %479 : vector<16x32xf32>
    %481 = vector.extract_strided_slice %480 {offsets = [0, 0], sizes = [8, 8], strides = [1, 1]} : vector<16x32xf32> to vector<8x8xf32>
    %482 = vector.extract_strided_slice %480 {offsets = [0, 8], sizes = [8, 8], strides = [1, 1]} : vector<16x32xf32> to vector<8x8xf32>
    %483 = vector.extract_strided_slice %480 {offsets = [0, 16], sizes = [8, 8], strides = [1, 1]} : vector<16x32xf32> to vector<8x8xf32>
    %484 = vector.extract_strided_slice %480 {offsets = [0, 24], sizes = [8, 8], strides = [1, 1]} : vector<16x32xf32> to vector<8x8xf32>
    %485 = vector.extract_strided_slice %480 {offsets = [8, 0], sizes = [8, 8], strides = [1, 1]} : vector<16x32xf32> to vector<8x8xf32>
    %486 = vector.extract_strided_slice %480 {offsets = [8, 8], sizes = [8, 8], strides = [1, 1]} : vector<16x32xf32> to vector<8x8xf32>
    %487 = vector.extract_strided_slice %480 {offsets = [8, 16], sizes = [8, 8], strides = [1, 1]} : vector<16x32xf32> to vector<8x8xf32>
    %488 = vector.extract_strided_slice %480 {offsets = [8, 24], sizes = [8, 8], strides = [1, 1]} : vector<16x32xf32> to vector<8x8xf32>
    %489 = vector.shape_cast %481 : vector<8x8xf32> to vector<1x8x8xf32>
    %490 = vector.shape_cast %482 : vector<8x8xf32> to vector<1x8x8xf32>
    %491 = vector.shape_cast %483 : vector<8x8xf32> to vector<1x8x8xf32>
    %492 = vector.shape_cast %484 : vector<8x8xf32> to vector<1x8x8xf32>
    %493 = vector.shape_cast %485 : vector<8x8xf32> to vector<1x8x8xf32>
    %494 = vector.shape_cast %486 : vector<8x8xf32> to vector<1x8x8xf32>
    %495 = vector.shape_cast %487 : vector<8x8xf32> to vector<1x8x8xf32>
    %496 = vector.shape_cast %488 : vector<8x8xf32> to vector<1x8x8xf32>
    %497 = tpu.concatenate %489, %490, %491, %492, %493, %494, %495, %496 in 0 : vector<1x8x8xf32>, vector<1x8x8xf32>, vector<1x8x8xf32>, vector<1x8x8xf32>, vector<1x8x8xf32>, vector<1x8x8xf32>, vector<1x8x8xf32>, vector<1x8x8xf32> -> vector<8x8x8xf32>
    %498 = vector.extract_strided_slice %343 {offsets = [0, 0], sizes = [8, 8], strides = [1, 1]} : vector<16x32xf32> to vector<8x8xf32>
    %499 = vector.extract_strided_slice %343 {offsets = [0, 8], sizes = [8, 8], strides = [1, 1]} : vector<16x32xf32> to vector<8x8xf32>
    %500 = vector.extract_strided_slice %343 {offsets = [0, 16], sizes = [8, 8], strides = [1, 1]} : vector<16x32xf32> to vector<8x8xf32>
    %501 = vector.extract_strided_slice %343 {offsets = [0, 24], sizes = [8, 8], strides = [1, 1]} : vector<16x32xf32> to vector<8x8xf32>
    %502 = vector.extract_strided_slice %343 {offsets = [8, 0], sizes = [8, 8], strides = [1, 1]} : vector<16x32xf32> to vector<8x8xf32>
    %503 = vector.extract_strided_slice %343 {offsets = [8, 8], sizes = [8, 8], strides = [1, 1]} : vector<16x32xf32> to vector<8x8xf32>
    %504 = vector.extract_strided_slice %343 {offsets = [8, 16], sizes = [8, 8], strides = [1, 1]} : vector<16x32xf32> to vector<8x8xf32>
    %505 = vector.extract_strided_slice %343 {offsets = [8, 24], sizes = [8, 8], strides = [1, 1]} : vector<16x32xf32> to vector<8x8xf32>
    %506 = vector.shape_cast %498 : vector<8x8xf32> to vector<1x8x8xf32>
    %507 = vector.shape_cast %499 : vector<8x8xf32> to vector<1x8x8xf32>
    %508 = vector.shape_cast %500 : vector<8x8xf32> to vector<1x8x8xf32>
    %509 = vector.shape_cast %501 : vector<8x8xf32> to vector<1x8x8xf32>
    %510 = vector.shape_cast %502 : vector<8x8xf32> to vector<1x8x8xf32>
    %511 = vector.shape_cast %503 : vector<8x8xf32> to vector<1x8x8xf32>
    %512 = vector.shape_cast %504 : vector<8x8xf32> to vector<1x8x8xf32>
    %513 = vector.shape_cast %505 : vector<8x8xf32> to vector<1x8x8xf32>
    %514 = tpu.concatenate %506, %507, %508, %509, %510, %511, %512, %513 in 0 : vector<1x8x8xf32>, vector<1x8x8xf32>, vector<1x8x8xf32>, vector<1x8x8xf32>, vector<1x8x8xf32>, vector<1x8x8xf32>, vector<1x8x8xf32>, vector<1x8x8xf32> -> vector<8x8x8xf32>
    %515 = vector.extract_strided_slice %344 {offsets = [0, 0], sizes = [8, 8], strides = [1, 1]} : vector<16x32xf32> to vector<8x8xf32>
    %516 = vector.extract_strided_slice %344 {offsets = [0, 8], sizes = [8, 8], strides = [1, 1]} : vector<16x32xf32> to vector<8x8xf32>
    %517 = vector.extract_strided_slice %344 {offsets = [0, 16], sizes = [8, 8], strides = [1, 1]} : vector<16x32xf32> to vector<8x8xf32>
    %518 = vector.extract_strided_slice %344 {offsets = [0, 24], sizes = [8, 8], strides = [1, 1]} : vector<16x32xf32> to vector<8x8xf32>
    %519 = vector.extract_strided_slice %344 {offsets = [8, 0], sizes = [8, 8], strides = [1, 1]} : vector<16x32xf32> to vector<8x8xf32>
    %520 = vector.extract_strided_slice %344 {offsets = [8, 8], sizes = [8, 8], strides = [1, 1]} : vector<16x32xf32> to vector<8x8xf32>
    %521 = vector.extract_strided_slice %344 {offsets = [8, 16], sizes = [8, 8], strides = [1, 1]} : vector<16x32xf32> to vector<8x8xf32>
    %522 = vector.extract_strided_slice %344 {offsets = [8, 24], sizes = [8, 8], strides = [1, 1]} : vector<16x32xf32> to vector<8x8xf32>
    %523 = vector.shape_cast %515 : vector<8x8xf32> to vector<1x8x8xf32>
    %524 = vector.shape_cast %516 : vector<8x8xf32> to vector<1x8x8xf32>
    %525 = vector.shape_cast %517 : vector<8x8xf32> to vector<1x8x8xf32>
    %526 = vector.shape_cast %518 : vector<8x8xf32> to vector<1x8x8xf32>
    %527 = vector.shape_cast %519 : vector<8x8xf32> to vector<1x8x8xf32>
    %528 = vector.shape_cast %520 : vector<8x8xf32> to vector<1x8x8xf32>
    %529 = vector.shape_cast %521 : vector<8x8xf32> to vector<1x8x8xf32>
    %530 = vector.shape_cast %522 : vector<8x8xf32> to vector<1x8x8xf32>
    %531 = tpu.concatenate %523, %524, %525, %526, %527, %528, %529, %530 in 0 : vector<1x8x8xf32>, vector<1x8x8xf32>, vector<1x8x8xf32>, vector<1x8x8xf32>, vector<1x8x8xf32>, vector<1x8x8xf32>, vector<1x8x8xf32>, vector<1x8x8xf32> -> vector<8x8x8xf32>
    "tpu.trace_start"() <{level = 10 : i32, message = "nqd,nkd->nqk"}> : () -> ()
    %cst_106 = arith.constant dense<0.000000e+00> : vector<8x8x8xf32>
    %532 = tpu.matmul %497, %514, %cst_106 {dimension_numbers = #tpu.dot_dimension_numbers<[2], [2], [1], [1], [0, 0, 0, 1, 1, 1], [0], [0]>} : vector<8x8x8xf32>, vector<8x8x8xf32>, vector<8x8x8xf32> -> vector<8x8x8xf32>
    "tpu.trace_stop"() : () -> ()
    %cst_107 = arith.constant 0.353553385 : f32
    %533 = vector.broadcast %cst_107 : f32 to vector<8x8x8xf32>
    %534 = arith.mulf %532, %533 : vector<8x8x8xf32>
    %cst_108 = arith.constant dense<0xFF800000> : vector<8x8xf32>
    %535 = vector.multi_reduction <maximumf>, %534, %cst_108 [2] : vector<8x8x8xf32> to vector<8x8xf32>
    %536 = vector.shape_cast %535 : vector<8x8xf32> to vector<8x8x1xf32>
    %537 = vector.broadcast %536 : vector<8x8x1xf32> to vector<8x8x8xf32>
    %538 = arith.subf %534, %537 : vector<8x8x8xf32>
    %539 = math.exp %538 : vector<8x8x8xf32>
    %cst_109 = arith.constant dense<0.000000e+00> : vector<8x8xf32>
    %540 = vector.multi_reduction <add>, %539, %cst_109 [2] : vector<8x8x8xf32> to vector<8x8xf32>
    %541 = vector.shape_cast %540 : vector<8x8xf32> to vector<8x8x1xf32>
    %542 = vector.broadcast %541 : vector<8x8x1xf32> to vector<8x8x8xf32>
    %543 = arith.divf %539, %542 : vector<8x8x8xf32>
    "tpu.trace_start"() <{level = 10 : i32, message = "nqk,nkd->nqd"}> : () -> ()
    %cst_110 = arith.constant dense<0.000000e+00> : vector<8x8x8xf32>
    %544 = tpu.matmul %543, %531, %cst_110 {dimension_numbers = #tpu.dot_dimension_numbers<[2], [1], [1], [2], [0, 0, 0, 1, 1, 2], [0], [0]>} : vector<8x8x8xf32>, vector<8x8x8xf32>, vector<8x8x8xf32> -> vector<8x8x8xf32>
    "tpu.trace_stop"() : () -> ()
    %545 = vector.extract_strided_slice %543 {offsets = [0, 0, 0], sizes = [1, 8, 8], strides = [1, 1, 1]} : vector<8x8x8xf32> to vector<1x8x8xf32>
    %546 = vector.shape_cast %545 : vector<1x8x8xf32> to vector<8x8xf32>
    %547 = vector.extract_strided_slice %543 {offsets = [1, 0, 0], sizes = [1, 8, 8], strides = [1, 1, 1]} : vector<8x8x8xf32> to vector<1x8x8xf32>
    %548 = vector.shape_cast %547 : vector<1x8x8xf32> to vector<8x8xf32>
    %549 = vector.extract_strided_slice %543 {offsets = [2, 0, 0], sizes = [1, 8, 8], strides = [1, 1, 1]} : vector<8x8x8xf32> to vector<1x8x8xf32>
    %550 = vector.shape_cast %549 : vector<1x8x8xf32> to vector<8x8xf32>
    %551 = vector.extract_strided_slice %543 {offsets = [3, 0, 0], sizes = [1, 8, 8], strides = [1, 1, 1]} : vector<8x8x8xf32> to vector<1x8x8xf32>
    %552 = vector.shape_cast %551 : vector<1x8x8xf32> to vector<8x8xf32>
    %553 = vector.extract_strided_slice %543 {offsets = [4, 0, 0], sizes = [1, 8, 8], strides = [1, 1, 1]} : vector<8x8x8xf32> to vector<1x8x8xf32>
    %554 = vector.shape_cast %553 : vector<1x8x8xf32> to vector<8x8xf32>
    %555 = vector.extract_strided_slice %543 {offsets = [5, 0, 0], sizes = [1, 8, 8], strides = [1, 1, 1]} : vector<8x8x8xf32> to vector<1x8x8xf32>
    %556 = vector.shape_cast %555 : vector<1x8x8xf32> to vector<8x8xf32>
    %557 = vector.extract_strided_slice %543 {offsets = [6, 0, 0], sizes = [1, 8, 8], strides = [1, 1, 1]} : vector<8x8x8xf32> to vector<1x8x8xf32>
    %558 = vector.shape_cast %557 : vector<1x8x8xf32> to vector<8x8xf32>
    %559 = vector.extract_strided_slice %543 {offsets = [7, 0, 0], sizes = [1, 8, 8], strides = [1, 1, 1]} : vector<8x8x8xf32> to vector<1x8x8xf32>
    %560 = vector.shape_cast %559 : vector<1x8x8xf32> to vector<8x8xf32>
    %561 = tpu.concatenate %546, %548, %550, %552, %554, %556, %558, %560 in 1 : vector<8x8xf32>, vector<8x8xf32>, vector<8x8xf32>, vector<8x8xf32>, vector<8x8xf32>, vector<8x8xf32>, vector<8x8xf32>, vector<8x8xf32> -> vector<8x64xf32>
    %562 = vector.extract_strided_slice %544 {offsets = [0, 0, 0], sizes = [1, 8, 8], strides = [1, 1, 1]} : vector<8x8x8xf32> to vector<1x8x8xf32>
    %563 = vector.shape_cast %562 : vector<1x8x8xf32> to vector<8x8xf32>
    %564 = vector.extract_strided_slice %544 {offsets = [1, 0, 0], sizes = [1, 8, 8], strides = [1, 1, 1]} : vector<8x8x8xf32> to vector<1x8x8xf32>
    %565 = vector.shape_cast %564 : vector<1x8x8xf32> to vector<8x8xf32>
    %566 = vector.extract_strided_slice %544 {offsets = [2, 0, 0], sizes = [1, 8, 8], strides = [1, 1, 1]} : vector<8x8x8xf32> to vector<1x8x8xf32>
    %567 = vector.shape_cast %566 : vector<1x8x8xf32> to vector<8x8xf32>
    %568 = vector.extract_strided_slice %544 {offsets = [3, 0, 0], sizes = [1, 8, 8], strides = [1, 1, 1]} : vector<8x8x8xf32> to vector<1x8x8xf32>
    %569 = vector.shape_cast %568 : vector<1x8x8xf32> to vector<8x8xf32>
    %570 = tpu.concatenate %563, %565, %567, %569 in 1 : vector<8x8xf32>, vector<8x8xf32>, vector<8x8xf32>, vector<8x8xf32> -> vector<8x32xf32>
    %571 = vector.extract_strided_slice %544 {offsets = [4, 0, 0], sizes = [1, 8, 8], strides = [1, 1, 1]} : vector<8x8x8xf32> to vector<1x8x8xf32>
    %572 = vector.shape_cast %571 : vector<1x8x8xf32> to vector<8x8xf32>
    %573 = vector.extract_strided_slice %544 {offsets = [5, 0, 0], sizes = [1, 8, 8], strides = [1, 1, 1]} : vector<8x8x8xf32> to vector<1x8x8xf32>
    %574 = vector.shape_cast %573 : vector<1x8x8xf32> to vector<8x8xf32>
    %575 = vector.extract_strided_slice %544 {offsets = [6, 0, 0], sizes = [1, 8, 8], strides = [1, 1, 1]} : vector<8x8x8xf32> to vector<1x8x8xf32>
    %576 = vector.shape_cast %575 : vector<1x8x8xf32> to vector<8x8xf32>
    %577 = vector.extract_strided_slice %544 {offsets = [7, 0, 0], sizes = [1, 8, 8], strides = [1, 1, 1]} : vector<8x8x8xf32> to vector<1x8x8xf32>
    %578 = vector.shape_cast %577 : vector<1x8x8xf32> to vector<8x8xf32>
    %579 = tpu.concatenate %572, %574, %576, %578 in 1 : vector<8x8xf32>, vector<8x8xf32>, vector<8x8xf32>, vector<8x8xf32> -> vector<8x32xf32>
    %580 = tpu.concatenate %570, %579 in 0 : vector<8x32xf32>, vector<8x32xf32> -> vector<16x32xf32>
    %cst_111 = arith.constant dense<0.000000e+00> : vector<16x32xf32>
    %581 = tpu.matmul %580, %331, %cst_111 {dimension_numbers = #tpu.dot_dimension_numbers<[1], [0], [0], [1], [0, 0, 1, 1], [], []>} : vector<16x32xf32>, vector<32x32xf32>, vector<16x32xf32> -> vector<16x32xf32>
    %582 = vector.broadcast %335 : vector<1x32xf32> to vector<16x32xf32>
    %583 = arith.addf %581, %582 : vector<16x32xf32>
    %584 = arith.addf %474, %583 : vector<16x32xf32>
    %c1_112 = arith.constant 1 : index
    %c2_113 = arith.constant 2 : index
    %c0_114 = arith.constant 0 : index
    %585 = vector.load %arg6[%c1_112, %c2_113, %c0_114] : memref<2x8x128xf32, #tpu.memory_space<vmem>>, vector<1x1x32xf32>
    %586 = vector.shape_cast %585 : vector<1x1x32xf32> to vector<1x32xf32>
    %c1_115 = arith.constant 1 : index
    %c3_116 = arith.constant 3 : index
    %c0_117 = arith.constant 0 : index
    %587 = vector.load %arg6[%c1_115, %c3_116, %c0_117] : memref<2x8x128xf32, #tpu.memory_space<vmem>>, vector<1x1x32xf32>
    %588 = vector.shape_cast %587 : vector<1x1x32xf32> to vector<1x32xf32>
    %cst_118 = arith.constant dense<0.000000e+00> : vector<16xf32>
    %589 = vector.multi_reduction <add>, %584, %cst_118 [1] : vector<16x32xf32> to vector<16xf32>
    %590 = vector.shape_cast %589 : vector<16xf32> to vector<16x1xf32>
    %cst_119 = arith.constant 3.200000e+01 : f32
    %591 = vector.broadcast %cst_119 : f32 to vector<16x1xf32>
    %592 = arith.divf %590, %591 : vector<16x1xf32>
    %593 = vector.broadcast %592 : vector<16x1xf32> to vector<16x32xf32>
    %594 = arith.subf %584, %593 : vector<16x32xf32>
    %595 = arith.mulf %594, %594 : vector<16x32xf32>
    %cst_120 = arith.constant dense<0.000000e+00> : vector<16xf32>
    %596 = vector.multi_reduction <add>, %595, %cst_120 [1] : vector<16x32xf32> to vector<16xf32>
    %597 = vector.shape_cast %596 : vector<16xf32> to vector<16x1xf32>
    %cst_121 = arith.constant 3.200000e+01 : f32
    %598 = vector.broadcast %cst_121 : f32 to vector<16x1xf32>
    %599 = arith.divf %597, %598 : vector<16x1xf32>
    %600 = vector.broadcast %592 : vector<16x1xf32> to vector<16x32xf32>
    %601 = arith.subf %584, %600 : vector<16x32xf32>
    %cst_122 = arith.constant 9.99999974E-6 : f32
    %602 = vector.broadcast %cst_122 : f32 to vector<16x1xf32>
    %603 = arith.addf %599, %602 : vector<16x1xf32>
    %604 = math.rsqrt %603 : vector<16x1xf32>
    %605 = vector.broadcast %604 : vector<16x1xf32> to vector<16x32xf32>
    %606 = arith.mulf %601, %605 : vector<16x32xf32>
    %607 = vector.broadcast %586 : vector<1x32xf32> to vector<16x32xf32>
    %608 = arith.mulf %606, %607 : vector<16x32xf32>
    %609 = vector.broadcast %588 : vector<1x32xf32> to vector<16x32xf32>
    %610 = arith.addf %608, %609 : vector<16x32xf32>
    %c1_123 = arith.constant 1 : index
    %c0_124 = arith.constant 0 : index
    %c0_125 = arith.constant 0 : index
    %611 = vector.load %arg4[%c1_123, %c0_124, %c0_125] : memref<2x32x64xf32, #tpu.memory_space<vmem>>, vector<1x32x64xf32>
    %612 = vector.shape_cast %611 : vector<1x32x64xf32> to vector<32x64xf32>
    %cst_126 = arith.constant dense<0.000000e+00> : vector<16x64xf32>
    %613 = tpu.matmul %610, %612, %cst_126 {dimension_numbers = #tpu.dot_dimension_numbers<[1], [0], [0], [1], [0, 0, 1, 1], [], []>} : vector<16x32xf32>, vector<32x64xf32>, vector<16x64xf32> -> vector<16x64xf32>
    %c1_127 = arith.constant 1 : index
    %c4_128 = arith.constant 4 : index
    %c0_129 = arith.constant 0 : index
    %614 = vector.load %arg6[%c1_127, %c4_128, %c0_129] : memref<2x8x128xf32, #tpu.memory_space<vmem>>, vector<1x1x64xf32>
    %615 = vector.shape_cast %614 : vector<1x1x64xf32> to vector<1x64xf32>
    %616 = vector.broadcast %615 : vector<1x64xf32> to vector<16x64xf32>
    %617 = arith.addf %613, %616 : vector<16x64xf32>
    %cst_130 = arith.constant 0.000000e+00 : f32
    %618 = vector.broadcast %cst_130 : f32 to vector<16x64xf32>
    %619 = arith.maximumf %617, %618 : vector<16x64xf32>
    %c1_131 = arith.constant 1 : index
    %c0_132 = arith.constant 0 : index
    %c0_133 = arith.constant 0 : index
    %620 = vector.load %arg5[%c1_131, %c0_132, %c0_133] : memref<2x64x32xf32, #tpu.memory_space<vmem>>, vector<1x64x32xf32>
    %621 = vector.shape_cast %620 : vector<1x64x32xf32> to vector<64x32xf32>
    %cst_134 = arith.constant dense<0.000000e+00> : vector<16x32xf32>
    %622 = tpu.matmul %619, %621, %cst_134 {dimension_numbers = #tpu.dot_dimension_numbers<[1], [0], [0], [1], [0, 0, 1, 1], [], []>} : vector<16x64xf32>, vector<64x32xf32>, vector<16x32xf32> -> vector<16x32xf32>
    %c1_135 = arith.constant 1 : index
    %c5_136 = arith.constant 5 : index
    %c0_137 = arith.constant 0 : index
    %623 = vector.load %arg6[%c1_135, %c5_136, %c0_137] : memref<2x8x128xf32, #tpu.memory_space<vmem>>, vector<1x1x32xf32>
    %624 = vector.shape_cast %623 : vector<1x1x32xf32> to vector<1x32xf32>
    %625 = vector.broadcast %624 : vector<1x32xf32> to vector<16x32xf32>
    %626 = arith.addf %622, %625 : vector<16x32xf32>
    %627 = arith.addf %610, %626 : vector<16x32xf32>
    %c1_138 = arith.constant 1 : index
    %c6_139 = arith.constant 6 : index
    %c0_140 = arith.constant 0 : index
    %628 = vector.load %arg6[%c1_138, %c6_139, %c0_140] : memref<2x8x128xf32, #tpu.memory_space<vmem>>, vector<1x1x32xf32>
    %629 = vector.shape_cast %628 : vector<1x1x32xf32> to vector<1x32xf32>
    %c1_141 = arith.constant 1 : index
    %c7_142 = arith.constant 7 : index
    %c0_143 = arith.constant 0 : index
    %630 = vector.load %arg6[%c1_141, %c7_142, %c0_143] : memref<2x8x128xf32, #tpu.memory_space<vmem>>, vector<1x1x32xf32>
    %631 = vector.shape_cast %630 : vector<1x1x32xf32> to vector<1x32xf32>
    %cst_144 = arith.constant dense<0.000000e+00> : vector<16xf32>
    %632 = vector.multi_reduction <add>, %627, %cst_144 [1] : vector<16x32xf32> to vector<16xf32>
    %633 = vector.shape_cast %632 : vector<16xf32> to vector<16x1xf32>
    %cst_145 = arith.constant 3.200000e+01 : f32
    %634 = vector.broadcast %cst_145 : f32 to vector<16x1xf32>
    %635 = arith.divf %633, %634 : vector<16x1xf32>
    %636 = vector.broadcast %635 : vector<16x1xf32> to vector<16x32xf32>
    %637 = arith.subf %627, %636 : vector<16x32xf32>
    %638 = arith.mulf %637, %637 : vector<16x32xf32>
    %cst_146 = arith.constant dense<0.000000e+00> : vector<16xf32>
    %639 = vector.multi_reduction <add>, %638, %cst_146 [1] : vector<16x32xf32> to vector<16xf32>
    %640 = vector.shape_cast %639 : vector<16xf32> to vector<16x1xf32>
    %cst_147 = arith.constant 3.200000e+01 : f32
    %641 = vector.broadcast %cst_147 : f32 to vector<16x1xf32>
    %642 = arith.divf %640, %641 : vector<16x1xf32>
    %643 = vector.broadcast %635 : vector<16x1xf32> to vector<16x32xf32>
    %644 = arith.subf %627, %643 : vector<16x32xf32>
    %cst_148 = arith.constant 9.99999974E-6 : f32
    %645 = vector.broadcast %cst_148 : f32 to vector<16x1xf32>
    %646 = arith.addf %642, %645 : vector<16x1xf32>
    %647 = math.rsqrt %646 : vector<16x1xf32>
    %648 = vector.broadcast %647 : vector<16x1xf32> to vector<16x32xf32>
    %649 = arith.mulf %644, %648 : vector<16x32xf32>
    %650 = vector.broadcast %629 : vector<1x32xf32> to vector<16x32xf32>
    %651 = arith.mulf %649, %650 : vector<16x32xf32>
    %652 = vector.broadcast %631 : vector<1x32xf32> to vector<16x32xf32>
    %653 = arith.addf %651, %652 : vector<16x32xf32>
    %c0_149 = arith.constant 0 : index
    %c0_150 = arith.constant 0 : index
    %654 = vector.load %arg7[%c0_149, %c0_150] : memref<16x32xf32, #tpu.memory_space<vmem>>, vector<16x32xf32>
    tpu.vector_store %arg7[%c0_149, %c0_150], %653 {strides = array<i32>} : memref<16x32xf32, #tpu.memory_space<vmem>>, vector<16x32xf32>,
    %655 = tpu.concatenate %99, %425 in 1 : vector<8x64xf32>, vector<8x64xf32> -> vector<8x128xf32>
    %c0_151 = arith.constant 0 : index
    %c0_152 = arith.constant 0 : index
    %656 = vector.load %arg8[%c0_151, %c0_152] : memref<8x128xf32, #tpu.memory_space<vmem>>, vector<8x128xf32>
    tpu.vector_store %arg8[%c0_151, %c0_152], %655 {strides = array<i32>} : memref<8x128xf32, #tpu.memory_space<vmem>>, vector<8x128xf32>,
    %657 = tpu.concatenate %235, %561 in 1 : vector<8x64xf32>, vector<8x64xf32> -> vector<8x128xf32>
    %c0_153 = arith.constant 0 : index
    %c0_154 = arith.constant 0 : index
    %658 = vector.load %arg9[%c0_153, %c0_154] : memref<8x128xf32, #tpu.memory_space<vmem>>, vector<8x128xf32>
    tpu.vector_store %arg9[%c0_153, %c0_154], %657 {strides = array<i32>} : memref<8x128xf32, #tpu.memory_space<vmem>>, vector<8x128xf32>,
    return
  }
}

</mosaic_0001>

<llo_original>
// kernel: decoder_forward.1
$region0: #{decoder_forward.1}
  #allocation0 [shape = 'u32[]', space=smem, size = 0x4, offset = 0x4, fixed_abs, tag = 'smem constant byte address 0x4 - core index']
  #allocation1 [shape = 'u32[72,128]{1,0:T(1,128)}', space=vmem, size = 0x9000, scoped, tag = 'internal scratch']
  %s0 = inlined_call_operand.hbm [shape: f32[16,32], index: 0, kind: input, shape index: {}]
  %s1 = inlined_call_operand.hbm [shape: f32[16,32], index: 1, kind: input, shape index: {}]
  %s2 = inlined_call_operand.vmem [shape: f32[2,32,96], index: 2, kind: input, shape index: {}]
  %s3 = inlined_call_operand.vmem [shape: f32[2,32,32], index: 3, kind: input, shape index: {}]
  %s4 = inlined_call_operand.vmem [shape: f32[2,32,64], index: 4, kind: input, shape index: {}]
  %s5 = inlined_call_operand.vmem [shape: f32[2,64,32], index: 5, kind: input, shape index: {}]
  %s6 = inlined_call_operand.hbm [shape: f32[2,8,128], index: 6, kind: input, shape index: {}]
  %s7 = inlined_call_operand.hbm [shape: f32[16,32], index: 7, kind: output, shape index: {0}]
  %s8 = inlined_call_operand.vmem [shape: f32[8,128], index: 8, kind: output, shape index: {1}]
  %s9 = inlined_call_operand.vmem [shape: f32[8,128], index: 9, kind: output, shape index: {2}]
  %10 = xla_tuple %s7, %s8, %s9
  %s11 = sld [smem:[#allocation0]]
  $region66: #{decoder_forward.1} parent=0
    _
  %s13 = ssub.s32 1, %s11
  %s14 = scalar_select 0, %s13, %s11
  $region1: #{decoder_forward.1} parent=0
    #allocation2 [shape = 'u8[8192]{0}', space=vmem, size = 0x2000, scoped, tag = 'input window, operand 0, single buffered']
    #allocation3 [shape = 's32[1]{0}', space=sflag, size = 0x4, scoped, tag = 'scoped memory for decoder_forward.1']
    #allocation4 [shape = 's32[1]{0}', space=sflag, size = 0x4, scoped, tag = 'scoped memory for decoder_forward.1']
    #allocation5 [shape = 'u8[8192]{0}', space=vmem, size = 0x2000, scoped, tag = 'input window, operand 1, single buffered']
    #allocation6 [shape = 's32[1]{0}', space=sflag, size = 0x4, scoped, tag = 'scoped memory for decoder_forward.1']
    #allocation7 [shape = 'u8[8192]{0}', space=vmem, size = 0x2000, scoped, tag = 'input window, operand 6, single buffered']
    #allocation8 [shape = 'u8[8192]{0}', space=vmem, size = 0x2000, scoped, tag = 'output window, operand 0, single buffered']
    %15 = vsyncpa [#allocation3], 0
    %16 = vsyncpa [#allocation6], 0
    %17 = vsyncpa [#allocation4], 0
    // Predicated region
    $region2: #{decoder_forward.1} parent=1 // pred_check
      _
    $region3: #{decoder_forward.1} parent=1 // pred_check_branch
      %19 = sbr.rel (0) target = $region5
    $region4: #{decoder_forward.1} parent=1 // pred_region
      %21 = vsyncadd [#allocation3], 0
      %s22 = sshll.u32 %s0, 4
      %s23 = int_to_ptr.hbm [resolvable:$true] %s22
      %s24 = sshll.u32 [#allocation2], 4
      %s25 = int_to_ptr.vmem [resolvable:$true] %s24
      %30 = dma.hbm_to_vmem [thread:$0]  %s23, 256, %s25, [#allocation3], 128, 128, 8
    $region5: #{decoder_forward.1} parent=1 // pred_fallthru
      _
    // Predicated region
    $region6: #{decoder_forward.1} parent=1 // pred_check
      _
    $region7: #{decoder_forward.1} parent=1 // pred_check_branch
      %32 = sbr.rel (0) target = $region9
    $region8: #{decoder_forward.1} parent=1 // pred_region
      %34 = vsyncadd [#allocation6], 0
      %s35 = sshll.u32 %s1, 4
      %s36 = int_to_ptr.hbm [resolvable:$true] %s35
      %s37 = sshll.u32 [#allocation5], 4
      %s38 = int_to_ptr.vmem [resolvable:$true] %s37
      %43 = dma.hbm_to_vmem [thread:$0]  %s36, 256, %s38, [#allocation6], 128, 128, 8
    $region9: #{decoder_forward.1} parent=1 // pred_fallthru
      _
    // Predicated region
    $region10: #{decoder_forward.1} parent=1 // pred_check
      _
    $region11: #{decoder_forward.1} parent=1 // pred_check_branch
      %45 = sbr.rel (0) target = $region13
    $region12: #{decoder_forward.1} parent=1 // pred_region
      _
    $region13: #{decoder_forward.1} parent=1 // pred_fallthru
      _
    // Predicated region
    $region14: #{decoder_forward.1} parent=1 // pred_check
      _
    $region15: #{decoder_forward.1} parent=1 // pred_check_branch
      %47 = sbr.rel (0) target = $region17
    $region16: #{decoder_forward.1} parent=1 // pred_region
      _
    $region17: #{decoder_forward.1} parent=1 // pred_fallthru
      _
    // Predicated region
    $region18: #{decoder_forward.1} parent=1 // pred_check
      _
    $region19: #{decoder_forward.1} parent=1 // pred_check_branch
      %49 = sbr.rel (0) target = $region21
    $region20: #{decoder_forward.1} parent=1 // pred_region
      _
    $region21: #{decoder_forward.1} parent=1 // pred_fallthru
      _
    // Predicated region
    $region22: #{decoder_forward.1} parent=1 // pred_check
      _
    $region23: #{decoder_forward.1} parent=1 // pred_check_branch
      %51 = sbr.rel (0) target = $region25
    $region24: #{decoder_forward.1} parent=1 // pred_region
      _
    $region25: #{decoder_forward.1} parent=1 // pred_fallthru
      _
    // Predicated region
    $region26: #{decoder_forward.1} parent=1 // pred_check
      _
    $region27: #{decoder_forward.1} parent=1 // pred_check_branch
      %53 = sbr.rel (0) target = $region29
    $region28: #{decoder_forward.1} parent=1 // pred_region
      %55 = vsyncadd [#allocation6], 0
      %s56 = sshll.u32 %s6, 4
      %s57 = int_to_ptr.hbm [resolvable:$true] %s56
      %s58 = sshll.u32 [#allocation7], 4
      %s59 = int_to_ptr.vmem [resolvable:$true] %s58
      %64 = dma.hbm_to_vmem [thread:$0]  %s57, 256, %s59, [#allocation6], 128, 128, 8
    $region29: #{decoder_forward.1} parent=1 // pred_fallthru
      _
    // Predicated region
    $region30: #{decoder_forward.1} parent=1 // pred_check
      _
    $region31: #{decoder_forward.1} parent=1 // pred_check_branch
      %66 = sbr.rel (0) target = $region33
    $region32: #{decoder_forward.1} parent=1 // pred_region
      %68 = dma.done [#allocation3], 256
    $region33: #{decoder_forward.1} parent=1 // pred_fallthru
      _
    // Predicated region
    $region34: #{decoder_forward.1} parent=1 // pred_check
      _
    $region35: #{decoder_forward.1} parent=1 // pred_check_branch
      %70 = sbr.rel (0) target = $region37
    $region36: #{decoder_forward.1} parent=1 // pred_region
      %72 = dma.done [#allocation6], 256
    $region37: #{decoder_forward.1} parent=1 // pred_fallthru
      _
    // Predicated region
    $region38: #{decoder_forward.1} parent=1 // pred_check
      _
    $region39: #{decoder_forward.1} parent=1 // pred_check_branch
      %74 = sbr.rel (0) target = $region41
    $region40: #{decoder_forward.1} parent=1 // pred_region
      %76 = dma.done [#allocation6], 256
    $region41: #{decoder_forward.1} parent=1 // pred_fallthru
      _
    %v77 = vld [vmem:[#allocation2] sm:$0xff]
    %v78 = vld [vmem:[#allocation2 + $0x8] sm:$0xff]
    %v79 = vld [vmem:[#allocation5] sm:$0xff]
    %v80 = vld [vmem:[#allocation5 + $0x8] sm:$0xff]
    %v81 = vld [vmem:[%s2] sm:$0xff]
    %v82 = vld [vmem:[%s2 + $0x8] sm:$0xff]
    %v83 = vld [vmem:[%s2 + $0x10] sm:$0xff]
    %v84 = vld [vmem:[%s2 + $0x18] sm:$0xff]
    %v85 = vld [vmem:[%s3] sm:$0xff]
    %v86 = vld [vmem:[%s3 + $0x8] sm:$0xff]
    %v87 = vld [vmem:[%s3 + $0x10] sm:$0xff]
    %v88 = vld [vmem:[%s3 + $0x18] sm:$0xff]
    %v89 = vld [vmem:[#allocation7] sm:$0x1]
    %v90 = vld [vmem:[#allocation7 + $0x1] sm:$0x1]
    %v91 = vperm.slane %v89, 0
    %vm92 = vcmask 261120
    %v94 = vsel %vm92, %v77, 0
    %v97 = vsel %vm92, %v78, 0
    %v100 = vsel %vm92, %v79, 0
    %v103 = vsel %vm92, %v80, 0
    %105 = vmatpush.msra.mxu0 0.0
    %106 = vmatpush.msra.mxu0 0.0
    %107 = vmatpush.msra.mxu0 0.0
    %108 = vmatpush.msra.mxu0 0.0
    %109 = vmatpush.msra.mxu0 0.0
    %110 = vmatpush.msra.mxu0 0.0
    %111 = vmatpush.msra.mxu0 0.0
    %112 = vmatpush.msra.mxu0 0.0
    %113 = vmatpush.msra.mxu0 0.0
    %114 = vmatpush.msra.mxu0 0.0
    %115 = vmatpush.msra.mxu0 0.0
    %116 = vmatpush.msra.mxu0 0.0
    %117 = vmatpush.msra.mxu0 %v84
    %118 = vmatpush.msra.mxu0 %v83
    %119 = vmatpush.msra.mxu0 %v82
    %120 = vmatpush.msra.mxu0 %v81
    %121 = vmatmul.f32.gmra.mxu0 %v94
    %v122 = vpop.f32.mrf.mxu0
    %v123 = vadd.f32 %v91, %v122
    %124 = vmatmul.f32.gmra.mxu0 %v97
    %v125 = vpop.f32.mrf.mxu0
    %v126 = vadd.f32 %v91, %v125
    %127 = vmatmul.f32.gmra.mxu0 %v100
    %v128 = vpop.f32.mrf.mxu0
    %v129 = vadd.f32 %v91, %v128
    %130 = vmatmul.f32.gmra.mxu0 %v103
    %v131 = vpop.f32.mrf.mxu0
    %v132 = vadd.f32 %v91, %v131
    %133 = vdwg.mxu0
    %135 = vrot.lane.b32.xlu0 %v123, 120
    %v136 = vpop.permute.xlu0 %135
    %137 = vrot.lane.b32.xlu0 %v123, 112
    %v138 = vpop.permute.xlu0 %137
    %139 = vrot.lane.b32.xlu0 %v123, 104
    %v140 = vpop.permute.xlu0 %139
    %142 = vrot.lane.b32.xlu0 %v126, 120
    %v143 = vpop.permute.xlu0 %142
    %144 = vrot.lane.b32.xlu0 %v126, 112
    %v145 = vpop.permute.xlu0 %144
    %146 = vrot.lane.b32.xlu0 %v126, 104
    %v147 = vpop.permute.xlu0 %146
    %148 = vrot.lane.b32.xlu0 %v123, 96
    %v149 = vpop.permute.xlu0 %148
    %vm150 = vcmask 64512
    %v151 = vsel %vm150, %v123, 0
    %v153 = vsel %vm150, %v149, 0
    %155 = vmatpush.xpose.msra.mxu0 0.0
    %156 = vmatpush.xpose.msra.mxu0 0.0
    %157 = vmatpush.xpose.msra.mxu0 0.0
    %158 = vmatpush.xpose.msra.mxu0 0.0
    %159 = vmatpush.xpose.msra.mxu0 0.0
    %160 = vmatpush.xpose.msra.mxu0 0.0
    %161 = vmatpush.xpose.msra.mxu0 0.0
    %162 = vmatpush.xpose.msra.mxu0 0.0
    %163 = vmatpush.xpose.msra.mxu0 0.0
    %164 = vmatpush.xpose.msra.mxu0 0.0
    %165 = vmatpush.xpose.msra.mxu0 0.0
    %166 = vmatpush.xpose.msra.mxu0 0.0
    %167 = vmatpush.xpose.msra.mxu0 0.0
    %168 = vmatpush.xpose.msra.mxu0 0.0
    %169 = vmatpush.xpose.msra.mxu0 0.0
    %170 = vmatpush.xpose.msra.mxu0 %v153
    %171 = vmatmul.f32.gmra.mxu0 %v151
    %v172 = vpop.f32.mrf.mxu0
    %v173 = vadd.f32 0.0, %v172
    %174 = vdwg.mxu0
    %175 = vrot.lane.b32.xlu0 %v136, 96
    %v176 = vpop.permute.xlu0 %175
    %v177 = vsel %vm150, %v136, 0
    %v179 = vsel %vm150, %v176, 0
    %181 = vmatpush.xpose.msra.mxu0 0.0
    %182 = vmatpush.xpose.msra.mxu0 0.0
    %183 = vmatpush.xpose.msra.mxu0 0.0
    %184 = vmatpush.xpose.msra.mxu0 0.0
    %185 = vmatpush.xpose.msra.mxu0 0.0
    %186 = vmatpush.xpose.msra.mxu0 0.0
    %187 = vmatpush.xpose.msra.mxu0 0.0
    %188 = vmatpush.xpose.msra.mxu0 0.0
    %189 = vmatpush.xpose.msra.mxu0 0.0
    %190 = vmatpush.xpose.msra.mxu0 0.0
    %191 = vmatpush.xpose.msra.mxu0 0.0
    %192 = vmatpush.xpose.msra.mxu0 0.0
    %193 = vmatpush.xpose.msra.mxu0 0.0
    %194 = vmatpush.xpose.msra.mxu0 0.0
    %195 = vmatpush.xpose.msra.mxu0 0.0
    %196 = vmatpush.xpose.msra.mxu0 %v179
    %197 = vmatmul.f32.gmra.mxu0 %v177
    %v198 = vpop.f32.mrf.mxu0
    %v199 = vadd.f32 0.0, %v198
    %200 = vdwg.mxu0
    %201 = vrot.lane.b32.xlu0 %v138, 96
    %v202 = vpop.permute.xlu0 %201
    %v203 = vsel %vm150, %v138, 0
    %v205 = vsel %vm150, %v202, 0
    %207 = vmatpush.xpose.msra.mxu0 0.0
    %208 = vmatpush.xpose.msra.mxu0 0.0
    %209 = vmatpush.xpose.msra.mxu0 0.0
    %210 = vmatpush.xpose.msra.mxu0 0.0
    %211 = vmatpush.xpose.msra.mxu0 0.0
    %212 = vmatpush.xpose.msra.mxu0 0.0
    %213 = vmatpush.xpose.msra.mxu0 0.0
    %214 = vmatpush.xpose.msra.mxu0 0.0
    %215 = vmatpush.xpose.msra.mxu0 0.0
    %216 = vmatpush.xpose.msra.mxu0 0.0
    %217 = vmatpush.xpose.msra.mxu0 0.0
    %218 = vmatpush.xpose.msra.mxu0 0.0
    %219 = vmatpush.xpose.msra.mxu0 0.0
    %220 = vmatpush.xpose.msra.mxu0 0.0
    %221 = vmatpush.xpose.msra.mxu0 0.0
    %222 = vmatpush.xpose.msra.mxu0 %v205
    %223 = vmatmul.f32.gmra.mxu0 %v203
    %v224 = vpop.f32.mrf.mxu0
    %v225 = vadd.f32 0.0, %v224
    %226 = vdwg.mxu0
    %227 = vrot.lane.b32.xlu0 %v140, 96
    %v228 = vpop.permute.xlu0 %227
    %v229 = vsel %vm150, %v140, 0
    %v231 = vsel %vm150, %v228, 0
    %233 = vmatpush.xpose.msra.mxu0 0.0
    %234 = vmatpush.xpose.msra.mxu0 0.0
    %235 = vmatpush.xpose.msra.mxu0 0.0
    %236 = vmatpush.xpose.msra.mxu0 0.0
    %237 = vmatpush.xpose.msra.mxu0 0.0
    %238 = vmatpush.xpose.msra.mxu0 0.0
    %239 = vmatpush.xpose.msra.mxu0 0.0
    %240 = vmatpush.xpose.msra.mxu0 0.0
    %241 = vmatpush.xpose.msra.mxu0 0.0
    %242 = vmatpush.xpose.msra.mxu0 0.0
    %243 = vmatpush.xpose.msra.mxu0 0.0
    %244 = vmatpush.xpose.msra.mxu0 0.0
    %245 = vmatpush.xpose.msra.mxu0 0.0
    %246 = vmatpush.xpose.msra.mxu0 0.0
    %247 = vmatpush.xpose.msra.mxu0 0.0
    %248 = vmatpush.xpose.msra.mxu0 %v231
    %249 = vmatmul.f32.gmra.mxu0 %v229
    %v250 = vpop.f32.mrf.mxu0
    %v251 = vadd.f32 0.0, %v250
    %252 = vdwg.mxu0
    %253 = vrot.lane.b32.xlu0 %v126, 96
    %v254 = vpop.permute.xlu0 %253
    %v255 = vsel %vm150, %v126, 0
    %v257 = vsel %vm150, %v254, 0
    %259 = vmatpush.xpose.msra.mxu0 0.0
    %260 = vmatpush.xpose.msra.mxu0 0.0
    %261 = vmatpush.xpose.msra.mxu0 0.0
    %262 = vmatpush.xpose.msra.mxu0 0.0
    %263 = vmatpush.xpose.msra.mxu0 0.0
    %264 = vmatpush.xpose.msra.mxu0 0.0
    %265 = vmatpush.xpose.msra.mxu0 0.0
    %266 = vmatpush.xpose.msra.mxu0 0.0
    %267 = vmatpush.xpose.msra.mxu0 0.0
    %268 = vmatpush.xpose.msra.mxu0 0.0
    %269 = vmatpush.xpose.msra.mxu0 0.0
    %270 = vmatpush.xpose.msra.mxu0 0.0
    %271 = vmatpush.xpose.msra.mxu0 0.0
    %272 = vmatpush.xpose.msra.mxu0 0.0
    %273 = vmatpush.xpose.msra.mxu0 0.0
    %274 = vmatpush.xpose.msra.mxu0 %v257
    %275 = vmatmul.f32.gmra.mxu0 %v255
    %v276 = vpop.f32.mrf.mxu0
    %v277 = vadd.f32 0.0, %v276
    %278 = vdwg.mxu0
    %279 = vrot.lane.b32.xlu0 %v143, 96
    %v280 = vpop.permute.xlu0 %279
    %v281 = vsel %vm150, %v143, 0
    %v283 = vsel %vm150, %v280, 0
    %285 = vmatpush.xpose.msra.mxu0 0.0
    %286 = vmatpush.xpose.msra.mxu0 0.0
    %287 = vmatpush.xpose.msra.mxu0 0.0
    %288 = vmatpush.xpose.msra.mxu0 0.0
    %289 = vmatpush.xpose.msra.mxu0 0.0
    %290 = vmatpush.xpose.msra.mxu0 0.0
    %291 = vmatpush.xpose.msra.mxu0 0.0
    %292 = vmatpush.xpose.msra.mxu0 0.0
    %293 = vmatpush.xpose.msra.mxu0 0.0
    %294 = vmatpush.xpose.msra.mxu0 0.0
    %295 = vmatpush.xpose.msra.mxu0 0.0
    %296 = vmatpush.xpose.msra.mxu0 0.0
    %297 = vmatpush.xpose.msra.mxu0 0.0
    %298 = vmatpush.xpose.msra.mxu0 0.0
    %299 = vmatpush.xpose.msra.mxu0 0.0
    %300 = vmatpush.xpose.msra.mxu0 %v283
    %301 = vmatmul.f32.gmra.mxu0 %v281
    %v302 = vpop.f32.mrf.mxu0
    %v303 = vadd.f32 0.0, %v302
    %304 = vdwg.mxu0
    %305 = vrot.lane.b32.xlu0 %v145, 96
    %v306 = vpop.permute.xlu0 %305
    %v307 = vsel %vm150, %v145, 0
    %v309 = vsel %vm150, %v306, 0
    %311 = vmatpush.xpose.msra.mxu0 0.0
    %312 = vmatpush.xpose.msra.mxu0 0.0
    %313 = vmatpush.xpose.msra.mxu0 0.0
    %314 = vmatpush.xpose.msra.mxu0 0.0
    %315 = vmatpush.xpose.msra.mxu0 0.0
    %316 = vmatpush.xpose.msra.mxu0 0.0
    %317 = vmatpush.xpose.msra.mxu0 0.0
    %318 = vmatpush.xpose.msra.mxu0 0.0
    %319 = vmatpush.xpose.msra.mxu0 0.0
    %320 = vmatpush.xpose.msra.mxu0 0.0
    %321 = vmatpush.xpose.msra.mxu0 0.0
    %322 = vmatpush.xpose.msra.mxu0 0.0
    %323 = vmatpush.xpose.msra.mxu0 0.0
    %324 = vmatpush.xpose.msra.mxu0 0.0
    %325 = vmatpush.xpose.msra.mxu0 0.0
    %326 = vmatpush.xpose.msra.mxu0 %v309
    %327 = vmatmul.f32.gmra.mxu0 %v307
    %v328 = vpop.f32.mrf.mxu0
    %v329 = vadd.f32 0.0, %v328
    %330 = vdwg.mxu0
    %331 = vrot.lane.b32.xlu0 %v147, 96
    %v332 = vpop.permute.xlu0 %331
    %v333 = vsel %vm150, %v147, 0
    %v335 = vsel %vm150, %v332, 0
    %337 = vmatpush.xpose.msra.mxu0 0.0
    %338 = vmatpush.xpose.msra.mxu0 0.0
    %339 = vmatpush.xpose.msra.mxu0 0.0
    %340 = vmatpush.xpose.msra.mxu0 0.0
    %341 = vmatpush.xpose.msra.mxu0 0.0
    %342 = vmatpush.xpose.msra.mxu0 0.0
    %343 = vmatpush.xpose.msra.mxu0 0.0
    %344 = vmatpush.xpose.msra.mxu0 0.0
    %345 = vmatpush.xpose.msra.mxu0 0.0
    %346 = vmatpush.xpose.msra.mxu0 0.0
    %347 = vmatpush.xpose.msra.mxu0 0.0
    %348 = vmatpush.xpose.msra.mxu0 0.0
    %349 = vmatpush.xpose.msra.mxu0 0.0
    %350 = vmatpush.xpose.msra.mxu0 0.0
    %351 = vmatpush.xpose.msra.mxu0 0.0
    %352 = vmatpush.xpose.msra.mxu0 %v335
    %353 = vmatmul.f32.gmra.mxu0 %v333
    %v354 = vpop.f32.mrf.mxu0
    %v355 = vadd.f32 0.0, %v354
    %356 = vdwg.mxu0
    %v357 = vmul.f32 %v173, 0.35355338
    %v358 = vmul.f32 %v199, 0.35355338
    %v359 = vmul.f32 %v225, 0.35355338
    %v360 = vmul.f32 %v251, 0.35355338
    %v361 = vmul.f32 %v277, 0.35355338
    %v362 = vmul.f32 %v303, 0.35355338
    %v363 = vmul.f32 %v329, 0.35355338
    %v364 = vmul.f32 %v355, 0.35355338
    %v365 = vsel %vm150, %v357, -inf
    %366 = vmax.xlane.f32.xlu0 %v365
    %v367 = vpop.xlane.xlu0 %366
    %v368 = vsel %vm150, %v358, -inf
    %369 = vmax.xlane.f32.xlu0 %v368
    %v370 = vpop.xlane.xlu0 %369
    %v371 = vsel %vm150, %v359, -inf
    %372 = vmax.xlane.f32.xlu0 %v371
    %v373 = vpop.xlane.xlu0 %372
    %v374 = vsel %vm150, %v360, -inf
    %375 = vmax.xlane.f32.xlu0 %v374
    %v376 = vpop.xlane.xlu0 %375
    %v377 = vsel %vm150, %v361, -inf
    %378 = vmax.xlane.f32.xlu0 %v377
    %v379 = vpop.xlane.xlu0 %378
    %v380 = vsel %vm150, %v362, -inf
    %381 = vmax.xlane.f32.xlu0 %v380
    %v382 = vpop.xlane.xlu0 %381
    %v383 = vsel %vm150, %v363, -inf
    %384 = vmax.xlane.f32.xlu0 %v383
    %v385 = vpop.xlane.xlu0 %384
    %v386 = vsel %vm150, %v364, -inf
    %387 = vmax.xlane.f32.xlu0 %v386
    %v388 = vpop.xlane.xlu0 %387
    %v389 = vsub.f32 %v357, %v367
    %v390 = vsub.f32 %v358, %v370
    %v391 = vsub.f32 %v359, %v373
    %v392 = vsub.f32 %v360, %v376
    %v393 = vsub.f32 %v361, %v379
    %v394 = vsub.f32 %v362, %v382
    %v395 = vsub.f32 %v363, %v385
    %v396 = vsub.f32 %v364, %v388
    %v397 = vmul.f32 %v389, 1.442695
    %v398 = vpow.pop %v397
    %v399 = vmul.f32 %v390, 1.442695
    %v400 = vpow.pop %v399
    %v401 = vmul.f32 %v391, 1.442695
    %v402 = vpow.pop %v401
    %v403 = vmul.f32 %v392, 1.442695
    %v404 = vpow.pop %v403
    %v405 = vmul.f32 %v393, 1.442695
    %v406 = vpow.pop %v405
    %v407 = vmul.f32 %v394, 1.442695
    %v408 = vpow.pop %v407
    %v409 = vmul.f32 %v395, 1.442695
    %v410 = vpow.pop %v409
    %v411 = vmul.f32 %v396, 1.442695
    %v412 = vpow.pop %v411
    %v413 = vsel %vm150, %v398, 0.0
    %414 = vadd.xlane.f32.xlu0 %v413
    %v415 = vpop.xlane.xlu0 %414
    %v416 = vsel %vm150, %v400, 0.0
    %417 = vadd.xlane.f32.xlu0 %v416
    %v418 = vpop.xlane.xlu0 %417
    %v419 = vsel %vm150, %v402, 0.0
    %420 = vadd.xlane.f32.xlu0 %v419
    %v421 = vpop.xlane.xlu0 %420
    %v422 = vsel %vm150, %v404, 0.0
    %423 = vadd.xlane.f32.xlu0 %v422
    %v424 = vpop.xlane.xlu0 %423
    %v425 = vsel %vm150, %v406, 0.0
    %426 = vadd.xlane.f32.xlu0 %v425
    %v427 = vpop.xlane.xlu0 %426
    %v428 = vsel %vm150, %v408, 0.0
    %429 = vadd.xlane.f32.xlu0 %v428
    %v430 = vpop.xlane.xlu0 %429
    %v431 = vsel %vm150, %v410, 0.0
    %432 = vadd.xlane.f32.xlu0 %v431
    %v433 = vpop.xlane.xlu0 %432
    %v434 = vsel %vm150, %v412, 0.0
    %435 = vadd.xlane.f32.xlu0 %v434
    %v436 = vpop.xlane.xlu0 %435
    %v437 = vrcp.pop %v415
    %v438 = vmul.f32 %v415, %v437
    %v439 = vsub.f32 1.0, %v438
    %v440 = vmul.f32 %v437, %v439
    %v441 = vadd.f32 %v437, %v440
    %vm442 = vweird.f32 %v415
    %vm443 = vweird.f32 %v437
    %vm444 = vmor %vm442, %vm443
    %v445 = vsel %vm444, %v437, %v441
    %v446 = vand.u32 2147483647, %v415
    %vm447 = vcmp.eq.f32.partialorder %v446, 8.507059e+37
    %v448 = vand.u32 %v415, 2147483648
    %v449 = vor.u32 1.1754944e-38, %v448
    %v450 = vsel %vm447, %v449, %v445
    %v451 = vmul.f32 %v398, %v450
    %v452 = vrcp.pop %v418
    %v453 = vmul.f32 %v418, %v452
    %v454 = vsub.f32 1.0, %v453
    %v455 = vmul.f32 %v452, %v454
    %v456 = vadd.f32 %v452, %v455
    %vm457 = vweird.f32 %v418
    %vm458 = vweird.f32 %v452
    %vm459 = vmor %vm457, %vm458
    %v460 = vsel %vm459, %v452, %v456
    %v461 = vand.u32 2147483647, %v418
    %vm462 = vcmp.eq.f32.partialorder %v461, 8.507059e+37
    %v463 = vand.u32 %v418, 2147483648
    %v464 = vor.u32 1.1754944e-38, %v463
    %v465 = vsel %vm462, %v464, %v460
    %v466 = vmul.f32 %v400, %v465
    %v467 = vrcp.pop %v421
    %v468 = vmul.f32 %v421, %v467
    %v469 = vsub.f32 1.0, %v468
    %v470 = vmul.f32 %v467, %v469
    %v471 = vadd.f32 %v467, %v470
    %vm472 = vweird.f32 %v421
    %vm473 = vweird.f32 %v467
    %vm474 = vmor %vm472, %vm473
    %v475 = vsel %vm474, %v467, %v471
    %v476 = vand.u32 2147483647, %v421
    %vm477 = vcmp.eq.f32.partialorder %v476, 8.507059e+37
    %v478 = vand.u32 %v421, 2147483648
    %v479 = vor.u32 1.1754944e-38, %v478
    %v480 = vsel %vm477, %v479, %v475
    %v481 = vmul.f32 %v402, %v480
    %v482 = vrcp.pop %v424
    %v483 = vmul.f32 %v424, %v482
    %v484 = vsub.f32 1.0, %v483
    %v485 = vmul.f32 %v482, %v484
    %v486 = vadd.f32 %v482, %v485
    %vm487 = vweird.f32 %v424
    %vm488 = vweird.f32 %v482
    %vm489 = vmor %vm487, %vm488
    %v490 = vsel %vm489, %v482, %v486
    %v491 = vand.u32 2147483647, %v424
    %vm492 = vcmp.eq.f32.partialorder %v491, 8.507059e+37
    %v493 = vand.u32 %v424, 2147483648
    %v494 = vor.u32 1.1754944e-38, %v493
    %v495 = vsel %vm492, %v494, %v490
    %v496 = vmul.f32 %v404, %v495
    %v497 = vrcp.pop %v427
    %v498 = vmul.f32 %v427, %v497
    %v499 = vsub.f32 1.0, %v498
    %v500 = vmul.f32 %v497, %v499
    %v501 = vadd.f32 %v497, %v500
    %vm502 = vweird.f32 %v427
    %vm503 = vweird.f32 %v497
    %vm504 = vmor %vm502, %vm503
    %v505 = vsel %vm504, %v497, %v501
    %v506 = vand.u32 2147483647, %v427
    %vm507 = vcmp.eq.f32.partialorder %v506, 8.507059e+37
    %v508 = vand.u32 %v427, 2147483648
    %v509 = vor.u32 1.1754944e-38, %v508
    %v510 = vsel %vm507, %v509, %v505
    %v511 = vmul.f32 %v406, %v510
    %v512 = vrcp.pop %v430
    %v513 = vmul.f32 %v430, %v512
    %v514 = vsub.f32 1.0, %v513
    %v515 = vmul.f32 %v512, %v514
    %v516 = vadd.f32 %v512, %v515
    %vm517 = vweird.f32 %v430
    %vm518 = vweird.f32 %v512
    %vm519 = vmor %vm517, %vm518
    %v520 = vsel %vm519, %v512, %v516
    %v521 = vand.u32 2147483647, %v430
    %vm522 = vcmp.eq.f32.partialorder %v521, 8.507059e+37
    %v523 = vand.u32 %v430, 2147483648
    %v524 = vor.u32 1.1754944e-38, %v523
    %v525 = vsel %vm522, %v524, %v520
    %v526 = vmul.f32 %v408, %v525
    %v527 = vrcp.pop %v433
    %v528 = vmul.f32 %v433, %v527
    %v529 = vsub.f32 1.0, %v528
    %v530 = vmul.f32 %v527, %v529
    %v531 = vadd.f32 %v527, %v530
    %vm532 = vweird.f32 %v433
    %vm533 = vweird.f32 %v527
    %vm534 = vmor %vm532, %vm533
    %v535 = vsel %vm534, %v527, %v531
    %v536 = vand.u32 2147483647, %v433
    %vm537 = vcmp.eq.f32.partialorder %v536, 8.507059e+37
    %v538 = vand.u32 %v433, 2147483648
    %v539 = vor.u32 1.1754944e-38, %v538
    %v540 = vsel %vm537, %v539, %v535
    %v541 = vmul.f32 %v410, %v540
    %v542 = vrcp.pop %v436
    %v543 = vmul.f32 %v436, %v542
    %v544 = vsub.f32 1.0, %v543
    %v545 = vmul.f32 %v542, %v544
    %v546 = vadd.f32 %v542, %v545
    %vm547 = vweird.f32 %v436
    %vm548 = vweird.f32 %v542
    %vm549 = vmor %vm547, %vm548
    %v550 = vsel %vm549, %v542, %v546
    %v551 = vand.u32 2147483647, %v436
    %vm552 = vcmp.eq.f32.partialorder %v551, 8.507059e+37
    %v553 = vand.u32 %v436, 2147483648
    %v554 = vor.u32 1.1754944e-38, %v553
    %v555 = vsel %vm552, %v554, %v550
    %v556 = vmul.f32 %v412, %v555
    %557 = vrot.lane.b32.xlu0 %v123, 64
    %v558 = vpop.permute.xlu0 %557
    %v561 = vsel %vm150, %v451, 0
    %563 = vmatpush.msra.mxu0 0.0
    %564 = vmatpush.msra.mxu0 0.0
    %565 = vmatpush.msra.mxu0 0.0
    %566 = vmatpush.msra.mxu0 0.0
    %567 = vmatpush.msra.mxu0 0.0
    %568 = vmatpush.msra.mxu0 0.0
    %569 = vmatpush.msra.mxu0 0.0
    %570 = vmatpush.msra.mxu0 0.0
    %571 = vmatpush.msra.mxu0 0.0
    %572 = vmatpush.msra.mxu0 0.0
    %573 = vmatpush.msra.mxu0 0.0
    %574 = vmatpush.msra.mxu0 0.0
    %575 = vmatpush.msra.mxu0 0.0
    %576 = vmatpush.msra.mxu0 0.0
    %577 = vmatpush.msra.mxu0 0.0
    %578 = vmatpush.msra.mxu0 %v558
    %579 = vmatmul.f32.gmra.mxu0 %v561
    %v580 = vpop.f32.mrf.mxu0
    %v581 = vadd.f32 0.0, %v580
    %582 = vdwg.mxu0
    %583 = vrot.lane.b32.xlu0 %v136, 64
    %v584 = vpop.permute.xlu0 %583
    %v587 = vsel %vm150, %v466, 0
    %589 = vmatpush.msra.mxu0 0.0
    %590 = vmatpush.msra.mxu0 0.0
    %591 = vmatpush.msra.mxu0 0.0
    %592 = vmatpush.msra.mxu0 0.0
    %593 = vmatpush.msra.mxu0 0.0
    %594 = vmatpush.msra.mxu0 0.0
    %595 = vmatpush.msra.mxu0 0.0
    %596 = vmatpush.msra.mxu0 0.0
    %597 = vmatpush.msra.mxu0 0.0
    %598 = vmatpush.msra.mxu0 0.0
    %599 = vmatpush.msra.mxu0 0.0
    %600 = vmatpush.msra.mxu0 0.0
    %601 = vmatpush.msra.mxu0 0.0
    %602 = vmatpush.msra.mxu0 0.0
    %603 = vmatpush.msra.mxu0 0.0
    %604 = vmatpush.msra.mxu0 %v584
    %605 = vmatmul.f32.gmra.mxu0 %v587
    %v606 = vpop.f32.mrf.mxu0
    %v607 = vadd.f32 0.0, %v606
    %608 = vdwg.mxu0
    %609 = vrot.lane.b32.xlu0 %v138, 64
    %v610 = vpop.permute.xlu0 %609
    %v613 = vsel %vm150, %v481, 0
    %615 = vmatpush.msra.mxu0 0.0
    %616 = vmatpush.msra.mxu0 0.0
    %617 = vmatpush.msra.mxu0 0.0
    %618 = vmatpush.msra.mxu0 0.0
    %619 = vmatpush.msra.mxu0 0.0
    %620 = vmatpush.msra.mxu0 0.0
    %621 = vmatpush.msra.mxu0 0.0
    %622 = vmatpush.msra.mxu0 0.0
    %623 = vmatpush.msra.mxu0 0.0
    %624 = vmatpush.msra.mxu0 0.0
    %625 = vmatpush.msra.mxu0 0.0
    %626 = vmatpush.msra.mxu0 0.0
    %627 = vmatpush.msra.mxu0 0.0
    %628 = vmatpush.msra.mxu0 0.0
    %629 = vmatpush.msra.mxu0 0.0
    %630 = vmatpush.msra.mxu0 %v610
    %631 = vmatmul.f32.gmra.mxu0 %v613
    %v632 = vpop.f32.mrf.mxu0
    %v633 = vadd.f32 0.0, %v632
    %634 = vdwg.mxu0
    %635 = vrot.lane.b32.xlu0 %v140, 64
    %v636 = vpop.permute.xlu0 %635
    %v639 = vsel %vm150, %v496, 0
    %641 = vmatpush.msra.mxu0 0.0
    %642 = vmatpush.msra.mxu0 0.0
    %643 = vmatpush.msra.mxu0 0.0
    %644 = vmatpush.msra.mxu0 0.0
    %645 = vmatpush.msra.mxu0 0.0
    %646 = vmatpush.msra.mxu0 0.0
    %647 = vmatpush.msra.mxu0 0.0
    %648 = vmatpush.msra.mxu0 0.0
    %649 = vmatpush.msra.mxu0 0.0
    %650 = vmatpush.msra.mxu0 0.0
    %651 = vmatpush.msra.mxu0 0.0
    %652 = vmatpush.msra.mxu0 0.0
    %653 = vmatpush.msra.mxu0 0.0
    %654 = vmatpush.msra.mxu0 0.0
    %655 = vmatpush.msra.mxu0 0.0
    %656 = vmatpush.msra.mxu0 %v636
    %657 = vmatmul.f32.gmra.mxu0 %v639
    %v658 = vpop.f32.mrf.mxu0
    %v659 = vadd.f32 0.0, %v658
    %660 = vdwg.mxu0
    %661 = vrot.lane.b32.xlu0 %v126, 64
    %v662 = vpop.permute.xlu0 %661
    %v665 = vsel %vm150, %v511, 0
    %667 = vmatpush.msra.mxu0 0.0
    %668 = vmatpush.msra.mxu0 0.0
    %669 = vmatpush.msra.mxu0 0.0
    %670 = vmatpush.msra.mxu0 0.0
    %671 = vmatpush.msra.mxu0 0.0
    %672 = vmatpush.msra.mxu0 0.0
    %673 = vmatpush.msra.mxu0 0.0
    %674 = vmatpush.msra.mxu0 0.0
    %675 = vmatpush.msra.mxu0 0.0
    %676 = vmatpush.msra.mxu0 0.0
    %677 = vmatpush.msra.mxu0 0.0
    %678 = vmatpush.msra.mxu0 0.0
    %679 = vmatpush.msra.mxu0 0.0
    %680 = vmatpush.msra.mxu0 0.0
    %681 = vmatpush.msra.mxu0 0.0
    %682 = vmatpush.msra.mxu0 %v662
    %683 = vmatmul.f32.gmra.mxu0 %v665
    %v684 = vpop.f32.mrf.mxu0
    %v685 = vadd.f32 0.0, %v684
    %686 = vdwg.mxu0
    %687 = vrot.lane.b32.xlu0 %v143, 64
    %v688 = vpop.permute.xlu0 %687
    %v691 = vsel %vm150, %v526, 0
    %693 = vmatpush.msra.mxu0 0.0
    %694 = vmatpush.msra.mxu0 0.0
    %695 = vmatpush.msra.mxu0 0.0
    %696 = vmatpush.msra.mxu0 0.0
    %697 = vmatpush.msra.mxu0 0.0
    %698 = vmatpush.msra.mxu0 0.0
    %699 = vmatpush.msra.mxu0 0.0
    %700 = vmatpush.msra.mxu0 0.0
    %701 = vmatpush.msra.mxu0 0.0
    %702 = vmatpush.msra.mxu0 0.0
    %703 = vmatpush.msra.mxu0 0.0
    %704 = vmatpush.msra.mxu0 0.0
    %705 = vmatpush.msra.mxu0 0.0
    %706 = vmatpush.msra.mxu0 0.0
    %707 = vmatpush.msra.mxu0 0.0
    %708 = vmatpush.msra.mxu0 %v688
    %709 = vmatmul.f32.gmra.mxu0 %v691
    %v710 = vpop.f32.mrf.mxu0
    %v711 = vadd.f32 0.0, %v710
    %712 = vdwg.mxu0
    %713 = vrot.lane.b32.xlu0 %v145, 64
    %v714 = vpop.permute.xlu0 %713
    %v717 = vsel %vm150, %v541, 0
    %719 = vmatpush.msra.mxu0 0.0
    %720 = vmatpush.msra.mxu0 0.0
    %721 = vmatpush.msra.mxu0 0.0
    %722 = vmatpush.msra.mxu0 0.0
    %723 = vmatpush.msra.mxu0 0.0
    %724 = vmatpush.msra.mxu0 0.0
    %725 = vmatpush.msra.mxu0 0.0
    %726 = vmatpush.msra.mxu0 0.0
    %727 = vmatpush.msra.mxu0 0.0
    %728 = vmatpush.msra.mxu0 0.0
    %729 = vmatpush.msra.mxu0 0.0
    %730 = vmatpush.msra.mxu0 0.0
    %731 = vmatpush.msra.mxu0 0.0
    %732 = vmatpush.msra.mxu0 0.0
    %733 = vmatpush.msra.mxu0 0.0
    %734 = vmatpush.msra.mxu0 %v714
    %735 = vmatmul.f32.gmra.mxu0 %v717
    %v736 = vpop.f32.mrf.mxu0
    %v737 = vadd.f32 0.0, %v736
    %738 = vdwg.mxu0
    %739 = vrot.lane.b32.xlu0 %v147, 64
    %v740 = vpop.permute.xlu0 %739
    %v743 = vsel %vm150, %v556, 0
    %745 = vmatpush.msra.mxu0 0.0
    %746 = vmatpush.msra.mxu0 0.0
    %747 = vmatpush.msra.mxu0 0.0
    %748 = vmatpush.msra.mxu0 0.0
    %749 = vmatpush.msra.mxu0 0.0
    %750 = vmatpush.msra.mxu0 0.0
    %751 = vmatpush.msra.mxu0 0.0
    %752 = vmatpush.msra.mxu0 0.0
    %753 = vmatpush.msra.mxu0 0.0
    %754 = vmatpush.msra.mxu0 0.0
    %755 = vmatpush.msra.mxu0 0.0
    %756 = vmatpush.msra.mxu0 0.0
    %757 = vmatpush.msra.mxu0 0.0
    %758 = vmatpush.msra.mxu0 0.0
    %759 = vmatpush.msra.mxu0 0.0
    %760 = vmatpush.msra.mxu0 %v740
    %761 = vmatmul.f32.gmra.mxu0 %v743
    %v762 = vpop.f32.mrf.mxu0
    %v763 = vadd.f32 0.0, %v762
    %764 = vdwg.mxu0
    %765 = vrot.lane.b32.xlu0 %v466, 8
    %v766 = vpop.permute.xlu0 %765
    %768 = vrot.lane.b32.xlu0 %v481, 16
    %v769 = vpop.permute.xlu0 %768
    %771 = vrot.lane.b32.xlu0 %v496, 24
    %v772 = vpop.permute.xlu0 %771
    %774 = vrot.lane.b32.xlu0 %v511, 32
    %v775 = vpop.permute.xlu0 %774
    %777 = vrot.lane.b32.xlu0 %v526, 40
    %v778 = vpop.permute.xlu0 %777
    %780 = vrot.lane.b32.xlu0 %v541, 48
    %v781 = vpop.permute.xlu0 %780
    %783 = vrot.lane.b32.xlu0 %v556, 56
    %v784 = vpop.permute.xlu0 %783
    %v786 = vsel %vm150, %v451, %v766
    %vm787 = vcmask 130048
    %v788 = vsel %vm787, %v786, %v769
    %vm789 = vcmask 195584
    %v790 = vsel %vm789, %v788, %v772
    %v791 = vsel %vm92, %v790, %v775
    %vm792 = vcmask 326656
    %v793 = vsel %vm792, %v791, %v778
    %vm794 = vcmask 392192
    %v795 = vsel %vm794, %v793, %v781
    %vm796 = vcmask 457728
    %v797 = vsel %vm796, %v795, %v784
    %799 = vrot.lane.b32.xlu0 %v607, 8
    %v800 = vpop.permute.xlu0 %799
    %803 = vrot.lane.b32.xlu0 %v633, 16
    %v804 = vpop.permute.xlu0 %803
    %807 = vrot.lane.b32.xlu0 %v659, 24
    %v808 = vpop.permute.xlu0 %807
    %v810 = vsel %vm150, %v581, %v800
    %v811 = vsel %vm787, %v810, %v804
    %v812 = vsel %vm789, %v811, %v808
    %814 = vrot.lane.b32.xlu0 %v711, 8
    %v815 = vpop.permute.xlu0 %814
    %818 = vrot.lane.b32.xlu0 %v737, 16
    %v819 = vpop.permute.xlu0 %818
    %822 = vrot.lane.b32.xlu0 %v763, 24
    %v823 = vpop.permute.xlu0 %822
    %v825 = vsel %vm150, %v685, %v815
    %v826 = vsel %vm787, %v825, %v819
    %v827 = vsel %vm789, %v826, %v823
    %v828 = vperm.slane %v90, 0
    %v830 = vsel %vm92, %v812, 0
    %v833 = vsel %vm92, %v827, 0
    %835 = vmatpush.msra.mxu0 0.0
    %836 = vmatpush.msra.mxu0 0.0
    %837 = vmatpush.msra.mxu0 0.0
    %838 = vmatpush.msra.mxu0 0.0
    %839 = vmatpush.msra.mxu0 0.0
    %840 = vmatpush.msra.mxu0 0.0
    %841 = vmatpush.msra.mxu0 0.0
    %842 = vmatpush.msra.mxu0 0.0
    %843 = vmatpush.msra.mxu0 0.0
    %844 = vmatpush.msra.mxu0 0.0
    %845 = vmatpush.msra.mxu0 0.0
    %846 = vmatpush.msra.mxu0 0.0
    %847 = vmatpush.msra.mxu0 %v88
    %848 = vmatpush.msra.mxu0 %v87
    %849 = vmatpush.msra.mxu0 %v86
    %850 = vmatpush.msra.mxu0 %v85
    %851 = vmatmul.f32.gmra.mxu0 %v830
    %v852 = vpop.f32.mrf.mxu0
    %v853 = vadd.f32 %v828, %v852
    %854 = vmatmul.f32.gmra.mxu0 %v833
    %v855 = vpop.f32.mrf.mxu0
    %v856 = vadd.f32 %v828, %v855
    %857 = vdwg.mxu0
    %v858 = vadd.f32 %v77, %v853
    %v859 = vadd.f32 %v78, %v856
    %v860 = vld [vmem:[#allocation7 + $0x2] sm:$0x1]
    %v861 = vld [vmem:[#allocation7 + $0x3] sm:$0x1]
    %v862 = vsel %vm92, %v858, 0.0
    %863 = vadd.xlane.f32.xlu0 %v862
    %v864 = vpop.xlane.xlu0 %863
    %v865 = vsel %vm92, %v859, 0.0
    %866 = vadd.xlane.f32.xlu0 %v865
    %v867 = vpop.xlane.xlu0 %866
    %v868 = vrcp.pop 32.0
    %v869 = vmul.f32 32.0, %v868
    %v870 = vsub.f32 1.0, %v869
    %v871 = vmul.f32 %v868, %v870
    %v872 = vadd.f32 %v868, %v871
    %vm873 = vweird.f32 %v868
    %v874 = vsel %vm873, %v868, %v872
    %v875 = vmul.f32 %v864, %v874
    %v876 = vmul.f32 %v867, %v874
    %v877 = vsub.f32 %v858, %v875
    %v878 = vsub.f32 %v859, %v876
    %v879 = vmul.f32 %v877, %v877
    %v880 = vmul.f32 %v878, %v878
    %v881 = vsel %vm92, %v879, 0.0
    %882 = vadd.xlane.f32.xlu0 %v881
    %v883 = vpop.xlane.xlu0 %882
    %v884 = vsel %vm92, %v880, 0.0
    %885 = vadd.xlane.f32.xlu0 %v884
    %v886 = vpop.xlane.xlu0 %885
    %v887 = vmul.f32 %v883, %v874
    %v888 = vmul.f32 %v886, %v874
    %v889 = vadd.f32 %v887, 1e-05
    %v890 = vadd.f32 %v888, 1e-05
    %v891 = vrsqrt.pop %v889
    %v892 = vmul.f32 %v891, %v889
    %v893 = vmul.f32 %v892, %v891
    %v894 = vmul.f32 0.5, %v893
    %v895 = vsub.f32 1.5, %v894
    %v896 = vmul.f32 %v891, %v895
    %vm897 = vweird.f32 %v889
    %vm898 = vweird.f32 %v891
    %vm899 = vmor %vm897, %vm898
    %v900 = vsel %vm899, %v891, %v896
    %v901 = vrsqrt.pop %v890
    %v902 = vmul.f32 %v901, %v890
    %v903 = vmul.f32 %v902, %v901
    %v904 = vmul.f32 0.5, %v903
    %v905 = vsub.f32 1.5, %v904
    %v906 = vmul.f32 %v901, %v905
    %vm907 = vweird.f32 %v890
    %vm908 = vweird.f32 %v901
    %vm909 = vmor %vm907, %vm908
    %v910 = vsel %vm909, %v901, %v906
    %v911 = vmul.f32 %v877, %v900
    %v912 = vmul.f32 %v878, %v910
    %v913 = vperm.slane %v860, 0
    %v914 = vmul.f32 %v911, %v913
    %v915 = vmul.f32 %v912, %v913
    %v916 = vperm.slane %v861, 0
    %v917 = vadd.f32 %v914, %v916
    %v918 = vadd.f32 %v915, %v916
    %v919 = vld [vmem:[#allocation7] sm:$0x1]
    %v920 = vperm.slane %v919, 0
    %v922 = vsel %vm92, %v917, 0
    %v925 = vsel %vm92, %v918, 0
    %927 = vmatpush.msra.mxu0 0.0
    %928 = vmatpush.msra.mxu0 0.0
    %929 = vmatpush.msra.mxu0 0.0
    %930 = vmatpush.msra.mxu0 0.0
    %931 = vmatpush.msra.mxu0 0.0
    %932 = vmatpush.msra.mxu0 0.0
    %933 = vmatpush.msra.mxu0 0.0
    %934 = vmatpush.msra.mxu0 0.0
    %935 = vmatpush.msra.mxu0 0.0
    %936 = vmatpush.msra.mxu0 0.0
    %937 = vmatpush.msra.mxu0 0.0
    %938 = vmatpush.msra.mxu0 0.0
    %939 = vmatpush.msra.mxu0 %v84
    %940 = vmatpush.msra.mxu0 %v83
    %941 = vmatpush.msra.mxu0 %v82
    %942 = vmatpush.msra.mxu0 %v81
    %943 = vmatmul.f32.gmra.mxu0 %v922
    %v944 = vpop.f32.mrf.mxu0
    %v945 = vadd.f32 %v920, %v944
    %946 = vmatmul.f32.gmra.mxu0 %v925
    %v947 = vpop.f32.mrf.mxu0
    %v948 = vadd.f32 %v920, %v947
    %949 = vdwg.mxu0
    %951 = vrot.lane.b32.xlu0 %v945, 120
    %v952 = vpop.permute.xlu0 %951
    %953 = vrot.lane.b32.xlu0 %v945, 112
    %v954 = vpop.permute.xlu0 %953
    %955 = vrot.lane.b32.xlu0 %v945, 104
    %v956 = vpop.permute.xlu0 %955
    %958 = vrot.lane.b32.xlu0 %v948, 120
    %v959 = vpop.permute.xlu0 %958
    %960 = vrot.lane.b32.xlu0 %v948, 112
    %v961 = vpop.permute.xlu0 %960
    %962 = vrot.lane.b32.xlu0 %v948, 104
    %v963 = vpop.permute.xlu0 %962
    %965 = vrot.lane.b32.xlu0 %v129, 120
    %v966 = vpop.permute.xlu0 %965
    %967 = vrot.lane.b32.xlu0 %v129, 112
    %v968 = vpop.permute.xlu0 %967
    %969 = vrot.lane.b32.xlu0 %v129, 104
    %v970 = vpop.permute.xlu0 %969
    %972 = vrot.lane.b32.xlu0 %v132, 120
    %v973 = vpop.permute.xlu0 %972
    %974 = vrot.lane.b32.xlu0 %v132, 112
    %v975 = vpop.permute.xlu0 %974
    %976 = vrot.lane.b32.xlu0 %v132, 104
    %v977 = vpop.permute.xlu0 %976
    %978 = vrot.lane.b32.xlu0 %v129, 96
    %v979 = vpop.permute.xlu0 %978
    %v980 = vsel %vm150, %v945, 0
    %v982 = vsel %vm150, %v979, 0
    %984 = vmatpush.xpose.msra.mxu0 0.0
    %985 = vmatpush.xpose.msra.mxu0 0.0
    %986 = vmatpush.xpose.msra.mxu0 0.0
    %987 = vmatpush.xpose.msra.mxu0 0.0
    %988 = vmatpush.xpose.msra.mxu0 0.0
    %989 = vmatpush.xpose.msra.mxu0 0.0
    %990 = vmatpush.xpose.msra.mxu0 0.0
    %991 = vmatpush.xpose.msra.mxu0 0.0
    %992 = vmatpush.xpose.msra.mxu0 0.0
    %993 = vmatpush.xpose.msra.mxu0 0.0
    %994 = vmatpush.xpose.msra.mxu0 0.0
    %995 = vmatpush.xpose.msra.mxu0 0.0
    %996 = vmatpush.xpose.msra.mxu0 0.0
    %997 = vmatpush.xpose.msra.mxu0 0.0
    %998 = vmatpush.xpose.msra.mxu0 0.0
    %999 = vmatpush.xpose.msra.mxu0 %v982
    %1000 = vmatmul.f32.gmra.mxu0 %v980
    %v1001 = vpop.f32.mrf.mxu0
    %v1002 = vadd.f32 0.0, %v1001
    %1003 = vdwg.mxu0
    %1004 = vrot.lane.b32.xlu0 %v966, 96
    %v1005 = vpop.permute.xlu0 %1004
    %v1006 = vsel %vm150, %v952, 0
    %v1008 = vsel %vm150, %v1005, 0
    %1010 = vmatpush.xpose.msra.mxu0 0.0
    %1011 = vmatpush.xpose.msra.mxu0 0.0
    %1012 = vmatpush.xpose.msra.mxu0 0.0
    %1013 = vmatpush.xpose.msra.mxu0 0.0
    %1014 = vmatpush.xpose.msra.mxu0 0.0
    %1015 = vmatpush.xpose.msra.mxu0 0.0
    %1016 = vmatpush.xpose.msra.mxu0 0.0
    %1017 = vmatpush.xpose.msra.mxu0 0.0
    %1018 = vmatpush.xpose.msra.mxu0 0.0
    %1019 = vmatpush.xpose.msra.mxu0 0.0
    %1020 = vmatpush.xpose.msra.mxu0 0.0
    %1021 = vmatpush.xpose.msra.mxu0 0.0
    %1022 = vmatpush.xpose.msra.mxu0 0.0
    %1023 = vmatpush.xpose.msra.mxu0 0.0
    %1024 = vmatpush.xpose.msra.mxu0 0.0
    %1025 = vmatpush.xpose.msra.mxu0 %v1008
    %1026 = vmatmul.f32.gmra.mxu0 %v1006
    %v1027 = vpop.f32.mrf.mxu0
    %v1028 = vadd.f32 0.0, %v1027
    %1029 = vdwg.mxu0
    %1030 = vrot.lane.b32.xlu0 %v968, 96
    %v1031 = vpop.permute.xlu0 %1030
    %v1032 = vsel %vm150, %v954, 0
    %v1034 = vsel %vm150, %v1031, 0
    %1036 = vmatpush.xpose.msra.mxu0 0.0
    %1037 = vmatpush.xpose.msra.mxu0 0.0
    %1038 = vmatpush.xpose.msra.mxu0 0.0
    %1039 = vmatpush.xpose.msra.mxu0 0.0
    %1040 = vmatpush.xpose.msra.mxu0 0.0
    %1041 = vmatpush.xpose.msra.mxu0 0.0
    %1042 = vmatpush.xpose.msra.mxu0 0.0
    %1043 = vmatpush.xpose.msra.mxu0 0.0
    %1044 = vmatpush.xpose.msra.mxu0 0.0
    %1045 = vmatpush.xpose.msra.mxu0 0.0
    %1046 = vmatpush.xpose.msra.mxu0 0.0
    %1047 = vmatpush.xpose.msra.mxu0 0.0
    %1048 = vmatpush.xpose.msra.mxu0 0.0
    %1049 = vmatpush.xpose.msra.mxu0 0.0
    %1050 = vmatpush.xpose.msra.mxu0 0.0
    %1051 = vmatpush.xpose.msra.mxu0 %v1034
    %1052 = vmatmul.f32.gmra.mxu0 %v1032
    %v1053 = vpop.f32.mrf.mxu0
    %v1054 = vadd.f32 0.0, %v1053
    %1055 = vdwg.mxu0
    %1056 = vrot.lane.b32.xlu0 %v970, 96
    %v1057 = vpop.permute.xlu0 %1056
    %v1058 = vsel %vm150, %v956, 0
    %v1060 = vsel %vm150, %v1057, 0
    %1062 = vmatpush.xpose.msra.mxu0 0.0
    %1063 = vmatpush.xpose.msra.mxu0 0.0
    %1064 = vmatpush.xpose.msra.mxu0 0.0
    %1065 = vmatpush.xpose.msra.mxu0 0.0
    %1066 = vmatpush.xpose.msra.mxu0 0.0
    %1067 = vmatpush.xpose.msra.mxu0 0.0
    %1068 = vmatpush.xpose.msra.mxu0 0.0
    %1069 = vmatpush.xpose.msra.mxu0 0.0
    %1070 = vmatpush.xpose.msra.mxu0 0.0
    %1071 = vmatpush.xpose.msra.mxu0 0.0
    %1072 = vmatpush.xpose.msra.mxu0 0.0
    %1073 = vmatpush.xpose.msra.mxu0 0.0
    %1074 = vmatpush.xpose.msra.mxu0 0.0
    %1075 = vmatpush.xpose.msra.mxu0 0.0
    %1076 = vmatpush.xpose.msra.mxu0 0.0
    %1077 = vmatpush.xpose.msra.mxu0 %v1060
    %1078 = vmatmul.f32.gmra.mxu0 %v1058
    %v1079 = vpop.f32.mrf.mxu0
    %v1080 = vadd.f32 0.0, %v1079
    %1081 = vdwg.mxu0
    %1082 = vrot.lane.b32.xlu0 %v132, 96
    %v1083 = vpop.permute.xlu0 %1082
    %v1084 = vsel %vm150, %v948, 0
    %v1086 = vsel %vm150, %v1083, 0
    %1088 = vmatpush.xpose.msra.mxu0 0.0
    %1089 = vmatpush.xpose.msra.mxu0 0.0
    %1090 = vmatpush.xpose.msra.mxu0 0.0
    %1091 = vmatpush.xpose.msra.mxu0 0.0
    %1092 = vmatpush.xpose.msra.mxu0 0.0
    %1093 = vmatpush.xpose.msra.mxu0 0.0
    %1094 = vmatpush.xpose.msra.mxu0 0.0
    %1095 = vmatpush.xpose.msra.mxu0 0.0
    %1096 = vmatpush.xpose.msra.mxu0 0.0
    %1097 = vmatpush.xpose.msra.mxu0 0.0
    %1098 = vmatpush.xpose.msra.mxu0 0.0
    %1099 = vmatpush.xpose.msra.mxu0 0.0
    %1100 = vmatpush.xpose.msra.mxu0 0.0
    %1101 = vmatpush.xpose.msra.mxu0 0.0
    %1102 = vmatpush.xpose.msra.mxu0 0.0
    %1103 = vmatpush.xpose.msra.mxu0 %v1086
    %1104 = vmatmul.f32.gmra.mxu0 %v1084
    %v1105 = vpop.f32.mrf.mxu0
    %v1106 = vadd.f32 0.0, %v1105
    %1107 = vdwg.mxu0
    %1108 = vrot.lane.b32.xlu0 %v973, 96
    %v1109 = vpop.permute.xlu0 %1108
    %v1110 = vsel %vm150, %v959, 0
    %v1112 = vsel %vm150, %v1109, 0
    %1114 = vmatpush.xpose.msra.mxu0 0.0
    %1115 = vmatpush.xpose.msra.mxu0 0.0
    %1116 = vmatpush.xpose.msra.mxu0 0.0
    %1117 = vmatpush.xpose.msra.mxu0 0.0
    %1118 = vmatpush.xpose.msra.mxu0 0.0
    %1119 = vmatpush.xpose.msra.mxu0 0.0
    %1120 = vmatpush.xpose.msra.mxu0 0.0
    %1121 = vmatpush.xpose.msra.mxu0 0.0
    %1122 = vmatpush.xpose.msra.mxu0 0.0
    %1123 = vmatpush.xpose.msra.mxu0 0.0
    %1124 = vmatpush.xpose.msra.mxu0 0.0
    %1125 = vmatpush.xpose.msra.mxu0 0.0
    %1126 = vmatpush.xpose.msra.mxu0 0.0
    %1127 = vmatpush.xpose.msra.mxu0 0.0
    %1128 = vmatpush.xpose.msra.mxu0 0.0
    %1129 = vmatpush.xpose.msra.mxu0 %v1112
    %1130 = vmatmul.f32.gmra.mxu0 %v1110
    %v1131 = vpop.f32.mrf.mxu0
    %v1132 = vadd.f32 0.0, %v1131
    %1133 = vdwg.mxu0
    %1134 = vrot.lane.b32.xlu0 %v975, 96
    %v1135 = vpop.permute.xlu0 %1134
    %v1136 = vsel %vm150, %v961, 0
    %v1138 = vsel %vm150, %v1135, 0
    %1140 = vmatpush.xpose.msra.mxu0 0.0
    %1141 = vmatpush.xpose.msra.mxu0 0.0
    %1142 = vmatpush.xpose.msra.mxu0 0.0
    %1143 = vmatpush.xpose.msra.mxu0 0.0
    %1144 = vmatpush.xpose.msra.mxu0 0.0
    %1145 = vmatpush.xpose.msra.mxu0 0.0
    %1146 = vmatpush.xpose.msra.mxu0 0.0
    %1147 = vmatpush.xpose.msra.mxu0 0.0
    %1148 = vmatpush.xpose.msra.mxu0 0.0
    %1149 = vmatpush.xpose.msra.mxu0 0.0
    %1150 = vmatpush.xpose.msra.mxu0 0.0
    %1151 = vmatpush.xpose.msra.mxu0 0.0
    %1152 = vmatpush.xpose.msra.mxu0 0.0
    %1153 = vmatpush.xpose.msra.mxu0 0.0
    %1154 = vmatpush.xpose.msra.mxu0 0.0
    %1155 = vmatpush.xpose.msra.mxu0 %v1138
    %1156 = vmatmul.f32.gmra.mxu0 %v1136
    %v1157 = vpop.f32.mrf.mxu0
    %v1158 = vadd.f32 0.0, %v1157
    %1159 = vdwg.mxu0
    %1160 = vrot.lane.b32.xlu0 %v977, 96
    %v1161 = vpop.permute.xlu0 %1160
    %v1162 = vsel %vm150, %v963, 0
    %v1164 = vsel %vm150, %v1161, 0
    %1166 = vmatpush.xpose.msra.mxu0 0.0
    %1167 = vmatpush.xpose.msra.mxu0 0.0
    %1168 = vmatpush.xpose.msra.mxu0 0.0
    %1169 = vmatpush.xpose.msra.mxu0 0.0
    %1170 = vmatpush.xpose.msra.mxu0 0.0
    %1171 = vmatpush.xpose.msra.mxu0 0.0
    %1172 = vmatpush.xpose.msra.mxu0 0.0
    %1173 = vmatpush.xpose.msra.mxu0 0.0
    %1174 = vmatpush.xpose.msra.mxu0 0.0
    %1175 = vmatpush.xpose.msra.mxu0 0.0
    %1176 = vmatpush.xpose.msra.mxu0 0.0
    %1177 = vmatpush.xpose.msra.mxu0 0.0
    %1178 = vmatpush.xpose.msra.mxu0 0.0
    %1179 = vmatpush.xpose.msra.mxu0 0.0
    %1180 = vmatpush.xpose.msra.mxu0 0.0
    %1181 = vmatpush.xpose.msra.mxu0 %v1164
    %1182 = vmatmul.f32.gmra.mxu0 %v1162
    %v1183 = vpop.f32.mrf.mxu0
    %v1184 = vadd.f32 0.0, %v1183
    %1185 = vdwg.mxu0
    %v1186 = vmul.f32 %v1002, 0.35355338
    %v1187 = vmul.f32 %v1028, 0.35355338
    %v1188 = vmul.f32 %v1054, 0.35355338
    %v1189 = vmul.f32 %v1080, 0.35355338
    %v1190 = vmul.f32 %v1106, 0.35355338
    %v1191 = vmul.f32 %v1132, 0.35355338
    %v1192 = vmul.f32 %v1158, 0.35355338
    %v1193 = vmul.f32 %v1184, 0.35355338
    %v1194 = vsel %vm150, %v1186, -inf
    %1195 = vmax.xlane.f32.xlu0 %v1194
    %v1196 = vpop.xlane.xlu0 %1195
    %v1197 = vsel %vm150, %v1187, -inf
    %1198 = vmax.xlane.f32.xlu0 %v1197
    %v1199 = vpop.xlane.xlu0 %1198
    %v1200 = vsel %vm150, %v1188, -inf
    %1201 = vmax.xlane.f32.xlu0 %v1200
    %v1202 = vpop.xlane.xlu0 %1201
    %v1203 = vsel %vm150, %v1189, -inf
    %1204 = vmax.xlane.f32.xlu0 %v1203
    %v1205 = vpop.xlane.xlu0 %1204
    %v1206 = vsel %vm150, %v1190, -inf
    %1207 = vmax.xlane.f32.xlu0 %v1206
    %v1208 = vpop.xlane.xlu0 %1207
    %v1209 = vsel %vm150, %v1191, -inf
    %1210 = vmax.xlane.f32.xlu0 %v1209
    %v1211 = vpop.xlane.xlu0 %1210
    %v1212 = vsel %vm150, %v1192, -inf
    %1213 = vmax.xlane.f32.xlu0 %v1212
    %v1214 = vpop.xlane.xlu0 %1213
    %v1215 = vsel %vm150, %v1193, -inf
    %1216 = vmax.xlane.f32.xlu0 %v1215
    %v1217 = vpop.xlane.xlu0 %1216
    %v1218 = vsub.f32 %v1186, %v1196
    %v1219 = vsub.f32 %v1187, %v1199
    %v1220 = vsub.f32 %v1188, %v1202
    %v1221 = vsub.f32 %v1189, %v1205
    %v1222 = vsub.f32 %v1190, %v1208
    %v1223 = vsub.f32 %v1191, %v1211
    %v1224 = vsub.f32 %v1192, %v1214
    %v1225 = vsub.f32 %v1193, %v1217
    %v1226 = vmul.f32 %v1218, 1.442695
    %v1227 = vpow.pop %v1226
    %v1228 = vmul.f32 %v1219, 1.442695
    %v1229 = vpow.pop %v1228
    %v1230 = vmul.f32 %v1220, 1.442695
    %v1231 = vpow.pop %v1230
    %v1232 = vmul.f32 %v1221, 1.442695
    %v1233 = vpow.pop %v1232
    %v1234 = vmul.f32 %v1222, 1.442695
    %v1235 = vpow.pop %v1234
    %v1236 = vmul.f32 %v1223, 1.442695
    %v1237 = vpow.pop %v1236
    %v1238 = vmul.f32 %v1224, 1.442695
    %v1239 = vpow.pop %v1238
    %v1240 = vmul.f32 %v1225, 1.442695
    %v1241 = vpow.pop %v1240
    %v1242 = vsel %vm150, %v1227, 0.0
    %1243 = vadd.xlane.f32.xlu0 %v1242
    %v1244 = vpop.xlane.xlu0 %1243
    %v1245 = vsel %vm150, %v1229, 0.0
    %1246 = vadd.xlane.f32.xlu0 %v1245
    %v1247 = vpop.xlane.xlu0 %1246
    %v1248 = vsel %vm150, %v1231, 0.0
    %1249 = vadd.xlane.f32.xlu0 %v1248
    %v1250 = vpop.xlane.xlu0 %1249
    %v1251 = vsel %vm150, %v1233, 0.0
    %1252 = vadd.xlane.f32.xlu0 %v1251
    %v1253 = vpop.xlane.xlu0 %1252
    %v1254 = vsel %vm150, %v1235, 0.0
    %1255 = vadd.xlane.f32.xlu0 %v1254
    %v1256 = vpop.xlane.xlu0 %1255
    %v1257 = vsel %vm150, %v1237, 0.0
    %1258 = vadd.xlane.f32.xlu0 %v1257
    %v1259 = vpop.xlane.xlu0 %1258
    %v1260 = vsel %vm150, %v1239, 0.0
    %1261 = vadd.xlane.f32.xlu0 %v1260
    %v1262 = vpop.xlane.xlu0 %1261
    %v1263 = vsel %vm150, %v1241, 0.0
    %1264 = vadd.xlane.f32.xlu0 %v1263
    %v1265 = vpop.xlane.xlu0 %1264
    %v1266 = vrcp.pop %v1244
    %v1267 = vmul.f32 %v1244, %v1266
    %v1268 = vsub.f32 1.0, %v1267
    %v1269 = vmul.f32 %v1266, %v1268
    %v1270 = vadd.f32 %v1266, %v1269
    %vm1271 = vweird.f32 %v1244
    %vm1272 = vweird.f32 %v1266
    %vm1273 = vmor %vm1271, %vm1272
    %v1274 = vsel %vm1273, %v1266, %v1270
    %v1275 = vand.u32 2147483647, %v1244
    %vm1276 = vcmp.eq.f32.partialorder %v1275, 8.507059e+37
    %v1277 = vand.u32 %v1244, 2147483648
    %v1278 = vor.u32 1.1754944e-38, %v1277
    %v1279 = vsel %vm1276, %v1278, %v1274
    %v1280 = vmul.f32 %v1227, %v1279
    %v1281 = vrcp.pop %v1247
    %v1282 = vmul.f32 %v1247, %v1281
    %v1283 = vsub.f32 1.0, %v1282
    %v1284 = vmul.f32 %v1281, %v1283
    %v1285 = vadd.f32 %v1281, %v1284
    %vm1286 = vweird.f32 %v1247
    %vm1287 = vweird.f32 %v1281
    %vm1288 = vmor %vm1286, %vm1287
    %v1289 = vsel %vm1288, %v1281, %v1285
    %v1290 = vand.u32 2147483647, %v1247
    %vm1291 = vcmp.eq.f32.partialorder %v1290, 8.507059e+37
    %v1292 = vand.u32 %v1247, 2147483648
    %v1293 = vor.u32 1.1754944e-38, %v1292
    %v1294 = vsel %vm1291, %v1293, %v1289
    %v1295 = vmul.f32 %v1229, %v1294
    %v1296 = vrcp.pop %v1250
    %v1297 = vmul.f32 %v1250, %v1296
    %v1298 = vsub.f32 1.0, %v1297
    %v1299 = vmul.f32 %v1296, %v1298
    %v1300 = vadd.f32 %v1296, %v1299
    %vm1301 = vweird.f32 %v1250
    %vm1302 = vweird.f32 %v1296
    %vm1303 = vmor %vm1301, %vm1302
    %v1304 = vsel %vm1303, %v1296, %v1300
    %v1305 = vand.u32 2147483647, %v1250
    %vm1306 = vcmp.eq.f32.partialorder %v1305, 8.507059e+37
    %v1307 = vand.u32 %v1250, 2147483648
    %v1308 = vor.u32 1.1754944e-38, %v1307
    %v1309 = vsel %vm1306, %v1308, %v1304
    %v1310 = vmul.f32 %v1231, %v1309
    %v1311 = vrcp.pop %v1253
    %v1312 = vmul.f32 %v1253, %v1311
    %v1313 = vsub.f32 1.0, %v1312
    %v1314 = vmul.f32 %v1311, %v1313
    %v1315 = vadd.f32 %v1311, %v1314
    %vm1316 = vweird.f32 %v1253
    %vm1317 = vweird.f32 %v1311
    %vm1318 = vmor %vm1316, %vm1317
    %v1319 = vsel %vm1318, %v1311, %v1315
    %v1320 = vand.u32 2147483647, %v1253
    %vm1321 = vcmp.eq.f32.partialorder %v1320, 8.507059e+37
    %v1322 = vand.u32 %v1253, 2147483648
    %v1323 = vor.u32 1.1754944e-38, %v1322
    %v1324 = vsel %vm1321, %v1323, %v1319
    %v1325 = vmul.f32 %v1233, %v1324
    %v1326 = vrcp.pop %v1256
    %v1327 = vmul.f32 %v1256, %v1326
    %v1328 = vsub.f32 1.0, %v1327
    %v1329 = vmul.f32 %v1326, %v1328
    %v1330 = vadd.f32 %v1326, %v1329
    %vm1331 = vweird.f32 %v1256
    %vm1332 = vweird.f32 %v1326
    %vm1333 = vmor %vm1331, %vm1332
    %v1334 = vsel %vm1333, %v1326, %v1330
    %v1335 = vand.u32 2147483647, %v1256
    %vm1336 = vcmp.eq.f32.partialorder %v1335, 8.507059e+37
    %v1337 = vand.u32 %v1256, 2147483648
    %v1338 = vor.u32 1.1754944e-38, %v1337
    %v1339 = vsel %vm1336, %v1338, %v1334
    %v1340 = vmul.f32 %v1235, %v1339
    %v1341 = vrcp.pop %v1259
    %v1342 = vmul.f32 %v1259, %v1341
    %v1343 = vsub.f32 1.0, %v1342
    %v1344 = vmul.f32 %v1341, %v1343
    %v1345 = vadd.f32 %v1341, %v1344
    %vm1346 = vweird.f32 %v1259
    %vm1347 = vweird.f32 %v1341
    %vm1348 = vmor %vm1346, %vm1347
    %v1349 = vsel %vm1348, %v1341, %v1345
    %v1350 = vand.u32 2147483647, %v1259
    %vm1351 = vcmp.eq.f32.partialorder %v1350, 8.507059e+37
    %v1352 = vand.u32 %v1259, 2147483648
    %v1353 = vor.u32 1.1754944e-38, %v1352
    %v1354 = vsel %vm1351, %v1353, %v1349
    %v1355 = vmul.f32 %v1237, %v1354
    %v1356 = vrcp.pop %v1262
    %v1357 = vmul.f32 %v1262, %v1356
    %v1358 = vsub.f32 1.0, %v1357
    %v1359 = vmul.f32 %v1356, %v1358
    %v1360 = vadd.f32 %v1356, %v1359
    %vm1361 = vweird.f32 %v1262
    %vm1362 = vweird.f32 %v1356
    %vm1363 = vmor %vm1361, %vm1362
    %v1364 = vsel %vm1363, %v1356, %v1360
    %v1365 = vand.u32 2147483647, %v1262
    %vm1366 = vcmp.eq.f32.partialorder %v1365, 8.507059e+37
    %v1367 = vand.u32 %v1262, 2147483648
    %v1368 = vor.u32 1.1754944e-38, %v1367
    %v1369 = vsel %vm1366, %v1368, %v1364
    %v1370 = vmul.f32 %v1239, %v1369
    %v1371 = vrcp.pop %v1265
    %v1372 = vmul.f32 %v1265, %v1371
    %v1373 = vsub.f32 1.0, %v1372
    %v1374 = vmul.f32 %v1371, %v1373
    %v1375 = vadd.f32 %v1371, %v1374
    %vm1376 = vweird.f32 %v1265
    %vm1377 = vweird.f32 %v1371
    %vm1378 = vmor %vm1376, %vm1377
    %v1379 = vsel %vm1378, %v1371, %v1375
    %v1380 = vand.u32 2147483647, %v1265
    %vm1381 = vcmp.eq.f32.partialorder %v1380, 8.507059e+37
    %v1382 = vand.u32 %v1265, 2147483648
    %v1383 = vor.u32 1.1754944e-38, %v1382
    %v1384 = vsel %vm1381, %v1383, %v1379
    %v1385 = vmul.f32 %v1241, %v1384
    %1386 = vrot.lane.b32.xlu0 %v129, 64
    %v1387 = vpop.permute.xlu0 %1386
    %v1390 = vsel %vm150, %v1280, 0
    %1392 = vmatpush.msra.mxu0 0.0
    %1393 = vmatpush.msra.mxu0 0.0
    %1394 = vmatpush.msra.mxu0 0.0
    %1395 = vmatpush.msra.mxu0 0.0
    %1396 = vmatpush.msra.mxu0 0.0
    %1397 = vmatpush.msra.mxu0 0.0
    %1398 = vmatpush.msra.mxu0 0.0
    %1399 = vmatpush.msra.mxu0 0.0
    %1400 = vmatpush.msra.mxu0 0.0
    %1401 = vmatpush.msra.mxu0 0.0
    %1402 = vmatpush.msra.mxu0 0.0
    %1403 = vmatpush.msra.mxu0 0.0
    %1404 = vmatpush.msra.mxu0 0.0
    %1405 = vmatpush.msra.mxu0 0.0
    %1406 = vmatpush.msra.mxu0 0.0
    %1407 = vmatpush.msra.mxu0 %v1387
    %1408 = vmatmul.f32.gmra.mxu0 %v1390
    %v1409 = vpop.f32.mrf.mxu0
    %v1410 = vadd.f32 0.0, %v1409
    %1411 = vdwg.mxu0
    %1412 = vrot.lane.b32.xlu0 %v966, 64
    %v1413 = vpop.permute.xlu0 %1412
    %v1416 = vsel %vm150, %v1295, 0
    %1418 = vmatpush.msra.mxu0 0.0
    %1419 = vmatpush.msra.mxu0 0.0
    %1420 = vmatpush.msra.mxu0 0.0
    %1421 = vmatpush.msra.mxu0 0.0
    %1422 = vmatpush.msra.mxu0 0.0
    %1423 = vmatpush.msra.mxu0 0.0
    %1424 = vmatpush.msra.mxu0 0.0
    %1425 = vmatpush.msra.mxu0 0.0
    %1426 = vmatpush.msra.mxu0 0.0
    %1427 = vmatpush.msra.mxu0 0.0
    %1428 = vmatpush.msra.mxu0 0.0
    %1429 = vmatpush.msra.mxu0 0.0
    %1430 = vmatpush.msra.mxu0 0.0
    %1431 = vmatpush.msra.mxu0 0.0
    %1432 = vmatpush.msra.mxu0 0.0
    %1433 = vmatpush.msra.mxu0 %v1413
    %1434 = vmatmul.f32.gmra.mxu0 %v1416
    %v1435 = vpop.f32.mrf.mxu0
    %v1436 = vadd.f32 0.0, %v1435
    %1437 = vdwg.mxu0
    %1438 = vrot.lane.b32.xlu0 %v968, 64
    %v1439 = vpop.permute.xlu0 %1438
    %v1442 = vsel %vm150, %v1310, 0
    %1444 = vmatpush.msra.mxu0 0.0
    %1445 = vmatpush.msra.mxu0 0.0
    %1446 = vmatpush.msra.mxu0 0.0
    %1447 = vmatpush.msra.mxu0 0.0
    %1448 = vmatpush.msra.mxu0 0.0
    %1449 = vmatpush.msra.mxu0 0.0
    %1450 = vmatpush.msra.mxu0 0.0
    %1451 = vmatpush.msra.mxu0 0.0
    %1452 = vmatpush.msra.mxu0 0.0
    %1453 = vmatpush.msra.mxu0 0.0
    %1454 = vmatpush.msra.mxu0 0.0
    %1455 = vmatpush.msra.mxu0 0.0
    %1456 = vmatpush.msra.mxu0 0.0
    %1457 = vmatpush.msra.mxu0 0.0
    %1458 = vmatpush.msra.mxu0 0.0
    %1459 = vmatpush.msra.mxu0 %v1439
    %1460 = vmatmul.f32.gmra.mxu0 %v1442
    %v1461 = vpop.f32.mrf.mxu0
    %v1462 = vadd.f32 0.0, %v1461
    %1463 = vdwg.mxu0
    %1464 = vrot.lane.b32.xlu0 %v970, 64
    %v1465 = vpop.permute.xlu0 %1464
    %v1468 = vsel %vm150, %v1325, 0
    %1470 = vmatpush.msra.mxu0 0.0
    %1471 = vmatpush.msra.mxu0 0.0
    %1472 = vmatpush.msra.mxu0 0.0
    %1473 = vmatpush.msra.mxu0 0.0
    %1474 = vmatpush.msra.mxu0 0.0
    %1475 = vmatpush.msra.mxu0 0.0
    %1476 = vmatpush.msra.mxu0 0.0
    %1477 = vmatpush.msra.mxu0 0.0
    %1478 = vmatpush.msra.mxu0 0.0
    %1479 = vmatpush.msra.mxu0 0.0
    %1480 = vmatpush.msra.mxu0 0.0
    %1481 = vmatpush.msra.mxu0 0.0
    %1482 = vmatpush.msra.mxu0 0.0
    %1483 = vmatpush.msra.mxu0 0.0
    %1484 = vmatpush.msra.mxu0 0.0
    %1485 = vmatpush.msra.mxu0 %v1465
    %1486 = vmatmul.f32.gmra.mxu0 %v1468
    %v1487 = vpop.f32.mrf.mxu0
    %v1488 = vadd.f32 0.0, %v1487
    %1489 = vdwg.mxu0
    %1490 = vrot.lane.b32.xlu0 %v132, 64
    %v1491 = vpop.permute.xlu0 %1490
    %v1494 = vsel %vm150, %v1340, 0
    %1496 = vmatpush.msra.mxu0 0.0
    %1497 = vmatpush.msra.mxu0 0.0
    %1498 = vmatpush.msra.mxu0 0.0
    %1499 = vmatpush.msra.mxu0 0.0
    %1500 = vmatpush.msra.mxu0 0.0
    %1501 = vmatpush.msra.mxu0 0.0
    %1502 = vmatpush.msra.mxu0 0.0
    %1503 = vmatpush.msra.mxu0 0.0
    %1504 = vmatpush.msra.mxu0 0.0
    %1505 = vmatpush.msra.mxu0 0.0
    %1506 = vmatpush.msra.mxu0 0.0
    %1507 = vmatpush.msra.mxu0 0.0
    %1508 = vmatpush.msra.mxu0 0.0
    %1509 = vmatpush.msra.mxu0 0.0
    %1510 = vmatpush.msra.mxu0 0.0
    %1511 = vmatpush.msra.mxu0 %v1491
    %1512 = vmatmul.f32.gmra.mxu0 %v1494
    %v1513 = vpop.f32.mrf.mxu0
    %v1514 = vadd.f32 0.0, %v1513
    %1515 = vdwg.mxu0
    %1516 = vrot.lane.b32.xlu0 %v973, 64
    %v1517 = vpop.permute.xlu0 %1516
    %v1520 = vsel %vm150, %v1355, 0
    %1522 = vmatpush.msra.mxu0 0.0
    %1523 = vmatpush.msra.mxu0 0.0
    %1524 = vmatpush.msra.mxu0 0.0
    %1525 = vmatpush.msra.mxu0 0.0
    %1526 = vmatpush.msra.mxu0 0.0
    %1527 = vmatpush.msra.mxu0 0.0
    %1528 = vmatpush.msra.mxu0 0.0
    %1529 = vmatpush.msra.mxu0 0.0
    %1530 = vmatpush.msra.mxu0 0.0
    %1531 = vmatpush.msra.mxu0 0.0
    %1532 = vmatpush.msra.mxu0 0.0
    %1533 = vmatpush.msra.mxu0 0.0
    %1534 = vmatpush.msra.mxu0 0.0
    %1535 = vmatpush.msra.mxu0 0.0
    %1536 = vmatpush.msra.mxu0 0.0
    %1537 = vmatpush.msra.mxu0 %v1517
    %1538 = vmatmul.f32.gmra.mxu0 %v1520
    %v1539 = vpop.f32.mrf.mxu0
    %v1540 = vadd.f32 0.0, %v1539
    %1541 = vdwg.mxu0
    %1542 = vrot.lane.b32.xlu0 %v975, 64
    %v1543 = vpop.permute.xlu0 %1542
    %v1546 = vsel %vm150, %v1370, 0
    %1548 = vmatpush.msra.mxu0 0.0
    %1549 = vmatpush.msra.mxu0 0.0
    %1550 = vmatpush.msra.mxu0 0.0
    %1551 = vmatpush.msra.mxu0 0.0
    %1552 = vmatpush.msra.mxu0 0.0
    %1553 = vmatpush.msra.mxu0 0.0
    %1554 = vmatpush.msra.mxu0 0.0
    %1555 = vmatpush.msra.mxu0 0.0
    %1556 = vmatpush.msra.mxu0 0.0
    %1557 = vmatpush.msra.mxu0 0.0
    %1558 = vmatpush.msra.mxu0 0.0
    %1559 = vmatpush.msra.mxu0 0.0
    %1560 = vmatpush.msra.mxu0 0.0
    %1561 = vmatpush.msra.mxu0 0.0
    %1562 = vmatpush.msra.mxu0 0.0
    %1563 = vmatpush.msra.mxu0 %v1543
    %1564 = vmatmul.f32.gmra.mxu0 %v1546
    %v1565 = vpop.f32.mrf.mxu0
    %v1566 = vadd.f32 0.0, %v1565
    %1567 = vdwg.mxu0
    %1568 = vrot.lane.b32.xlu0 %v977, 64
    %v1569 = vpop.permute.xlu0 %1568
    %v1572 = vsel %vm150, %v1385, 0
    %1574 = vmatpush.msra.mxu0 0.0
    %1575 = vmatpush.msra.mxu0 0.0
    %1576 = vmatpush.msra.mxu0 0.0
    %1577 = vmatpush.msra.mxu0 0.0
    %1578 = vmatpush.msra.mxu0 0.0
    %1579 = vmatpush.msra.mxu0 0.0
    %1580 = vmatpush.msra.mxu0 0.0
    %1581 = vmatpush.msra.mxu0 0.0
    %1582 = vmatpush.msra.mxu0 0.0
    %1583 = vmatpush.msra.mxu0 0.0
    %1584 = vmatpush.msra.mxu0 0.0
    %1585 = vmatpush.msra.mxu0 0.0
    %1586 = vmatpush.msra.mxu0 0.0
    %1587 = vmatpush.msra.mxu0 0.0
    %1588 = vmatpush.msra.mxu0 0.0
    %1589 = vmatpush.msra.mxu0 %v1569
    %1590 = vmatmul.f32.gmra.mxu0 %v1572
    %v1591 = vpop.f32.mrf.mxu0
    %v1592 = vadd.f32 0.0, %v1591
    %1593 = vdwg.mxu0
    %1594 = vrot.lane.b32.xlu0 %v1295, 8
    %v1595 = vpop.permute.xlu0 %1594
    %1597 = vrot.lane.b32.xlu0 %v1310, 16
    %v1598 = vpop.permute.xlu0 %1597
    %1600 = vrot.lane.b32.xlu0 %v1325, 24
    %v1601 = vpop.permute.xlu0 %1600
    %1603 = vrot.lane.b32.xlu0 %v1340, 32
    %v1604 = vpop.permute.xlu0 %1603
    %1606 = vrot.lane.b32.xlu0 %v1355, 40
    %v1607 = vpop.permute.xlu0 %1606
    %1609 = vrot.lane.b32.xlu0 %v1370, 48
    %v1610 = vpop.permute.xlu0 %1609
    %1612 = vrot.lane.b32.xlu0 %v1385, 56
    %v1613 = vpop.permute.xlu0 %1612
    %v1615 = vsel %vm150, %v1280, %v1595
    %v1616 = vsel %vm787, %v1615, %v1598
    %v1617 = vsel %vm789, %v1616, %v1601
    %v1618 = vsel %vm92, %v1617, %v1604
    %v1619 = vsel %vm792, %v1618, %v1607
    %v1620 = vsel %vm794, %v1619, %v1610
    %v1621 = vsel %vm796, %v1620, %v1613
    %1623 = vrot.lane.b32.xlu0 %v1436, 8
    %v1624 = vpop.permute.xlu0 %1623
    %1627 = vrot.lane.b32.xlu0 %v1462, 16
    %v1628 = vpop.permute.xlu0 %1627
    %1631 = vrot.lane.b32.xlu0 %v1488, 24
    %v1632 = vpop.permute.xlu0 %1631
    %v1634 = vsel %vm150, %v1410, %v1624
    %v1635 = vsel %vm787, %v1634, %v1628
    %v1636 = vsel %vm789, %v1635, %v1632
    %1638 = vrot.lane.b32.xlu0 %v1540, 8
    %v1639 = vpop.permute.xlu0 %1638
    %1642 = vrot.lane.b32.xlu0 %v1566, 16
    %v1643 = vpop.permute.xlu0 %1642
    %1646 = vrot.lane.b32.xlu0 %v1592, 24
    %v1647 = vpop.permute.xlu0 %1646
    %v1649 = vsel %vm150, %v1514, %v1639
    %v1650 = vsel %vm787, %v1649, %v1643
    %v1651 = vsel %vm789, %v1650, %v1647
    %v1653 = vsel %vm92, %v1636, 0
    %v1656 = vsel %vm92, %v1651, 0
    %1658 = vmatpush.msra.mxu0 0.0
    %1659 = vmatpush.msra.mxu0 0.0
    %1660 = vmatpush.msra.mxu0 0.0
    %1661 = vmatpush.msra.mxu0 0.0
    %1662 = vmatpush.msra.mxu0 0.0
    %1663 = vmatpush.msra.mxu0 0.0
    %1664 = vmatpush.msra.mxu0 0.0
    %1665 = vmatpush.msra.mxu0 0.0
    %1666 = vmatpush.msra.mxu0 0.0
    %1667 = vmatpush.msra.mxu0 0.0
    %1668 = vmatpush.msra.mxu0 0.0
    %1669 = vmatpush.msra.mxu0 0.0
    %1670 = vmatpush.msra.mxu0 %v88
    %1671 = vmatpush.msra.mxu0 %v87
    %1672 = vmatpush.msra.mxu0 %v86
    %1673 = vmatpush.msra.mxu0 %v85
    %1674 = vmatmul.f32.gmra.mxu0 %v1653
    %v1675 = vpop.f32.mrf.mxu0
    %v1676 = vadd.f32 %v828, %v1675
    %1677 = vmatmul.f32.gmra.mxu0 %v1656
    %v1678 = vpop.f32.mrf.mxu0
    %v1679 = vadd.f32 %v828, %v1678
    %1680 = vdwg.mxu0
    %v1681 = vadd.f32 %v917, %v1676
    %v1682 = vadd.f32 %v918, %v1679
    %v1683 = vld [vmem:[#allocation7 + $0x2] sm:$0x1]
    %v1684 = vld [vmem:[#allocation7 + $0x3] sm:$0x1]
    %v1685 = vsel %vm92, %v1681, 0.0
    %1686 = vadd.xlane.f32.xlu0 %v1685
    %v1687 = vpop.xlane.xlu0 %1686
    %v1688 = vsel %vm92, %v1682, 0.0
    %1689 = vadd.xlane.f32.xlu0 %v1688
    %v1690 = vpop.xlane.xlu0 %1689
    %v1691 = vmul.f32 %v1687, %v874
    %v1692 = vmul.f32 %v1690, %v874
    %v1693 = vsub.f32 %v1681, %v1691
    %v1694 = vsub.f32 %v1682, %v1692
    %v1695 = vmul.f32 %v1693, %v1693
    %v1696 = vmul.f32 %v1694, %v1694
    %v1697 = vsel %vm92, %v1695, 0.0
    %1698 = vadd.xlane.f32.xlu0 %v1697
    %v1699 = vpop.xlane.xlu0 %1698
    %v1700 = vsel %vm92, %v1696, 0.0
    %1701 = vadd.xlane.f32.xlu0 %v1700
    %v1702 = vpop.xlane.xlu0 %1701
    %v1703 = vmul.f32 %v1699, %v874
    %v1704 = vmul.f32 %v1702, %v874
    %v1705 = vadd.f32 %v1703, 1e-05
    %v1706 = vadd.f32 %v1704, 1e-05
    %v1707 = vrsqrt.pop %v1705
    %v1708 = vmul.f32 %v1707, %v1705
    %v1709 = vmul.f32 %v1708, %v1707
    %v1710 = vmul.f32 0.5, %v1709
    %v1711 = vsub.f32 1.5, %v1710
    %v1712 = vmul.f32 %v1707, %v1711
    %vm1713 = vweird.f32 %v1705
    %vm1714 = vweird.f32 %v1707
    %vm1715 = vmor %vm1713, %vm1714
    %v1716 = vsel %vm1715, %v1707, %v1712
    %v1717 = vrsqrt.pop %v1706
    %v1718 = vmul.f32 %v1717, %v1706
    %v1719 = vmul.f32 %v1718, %v1717
    %v1720 = vmul.f32 0.5, %v1719
    %v1721 = vsub.f32 1.5, %v1720
    %v1722 = vmul.f32 %v1717, %v1721
    %vm1723 = vweird.f32 %v1706
    %vm1724 = vweird.f32 %v1717
    %vm1725 = vmor %vm1723, %vm1724
    %v1726 = vsel %vm1725, %v1717, %v1722
    %v1727 = vmul.f32 %v1693, %v1716
    %v1728 = vmul.f32 %v1694, %v1726
    %v1729 = vperm.slane %v1683, 0
    %v1730 = vmul.f32 %v1727, %v1729
    %v1731 = vmul.f32 %v1728, %v1729
    %v1732 = vperm.slane %v1684, 0
    %v1733 = vadd.f32 %v1730, %v1732
    %v1734 = vadd.f32 %v1731, %v1732
    %v1735 = vld [vmem:[%s4] sm:$0xff]
    %v1736 = vld [vmem:[%s4 + $0x8] sm:$0xff]
    %v1737 = vld [vmem:[%s4 + $0x10] sm:$0xff]
    %v1738 = vld [vmem:[%s4 + $0x18] sm:$0xff]
    %v1739 = vld [vmem:[#allocation7 + $0x4] sm:$0x1]
    %v1740 = vperm.slane %v1739, 0
    %v1742 = vsel %vm92, %v1733, 0
    %v1745 = vsel %vm92, %v1734, 0
    %1747 = vmatpush.msra.mxu0 0.0
    %1748 = vmatpush.msra.mxu0 0.0
    %1749 = vmatpush.msra.mxu0 0.0
    %1750 = vmatpush.msra.mxu0 0.0
    %1751 = vmatpush.msra.mxu0 0.0
    %1752 = vmatpush.msra.mxu0 0.0
    %1753 = vmatpush.msra.mxu0 0.0
    %1754 = vmatpush.msra.mxu0 0.0
    %1755 = vmatpush.msra.mxu0 0.0
    %1756 = vmatpush.msra.mxu0 0.0
    %1757 = vmatpush.msra.mxu0 0.0
    %1758 = vmatpush.msra.mxu0 0.0
    %1759 = vmatpush.msra.mxu0 %v1738
    %1760 = vmatpush.msra.mxu0 %v1737
    %1761 = vmatpush.msra.mxu0 %v1736
    %1762 = vmatpush.msra.mxu0 %v1735
    %1763 = vmatmul.f32.gmra.mxu0 %v1742
    %v1764 = vpop.f32.mrf.mxu0
    %v1765 = vadd.f32 %v1740, %v1764
    %1766 = vmatmul.f32.gmra.mxu0 %v1745
    %v1767 = vpop.f32.mrf.mxu0
    %v1768 = vadd.f32 %v1740, %v1767
    %1769 = vdwg.mxu0
    %v1770 = vmax.f32 %v1765, 0.0
    %v1771 = vmax.f32 %v1768, 0.0
    %v1772 = vld [vmem:[%s5] sm:$0xff]
    %v1773 = vld [vmem:[%s5 + $0x8] sm:$0xff]
    %v1774 = vld [vmem:[%s5 + $0x10] sm:$0xff]
    %v1775 = vld [vmem:[%s5 + $0x18] sm:$0xff]
    %v1776 = vld [vmem:[%s5 + $0x20] sm:$0xff]
    %v1777 = vld [vmem:[%s5 + $0x28] sm:$0xff]
    %v1778 = vld [vmem:[%s5 + $0x30] sm:$0xff]
    %v1779 = vld [vmem:[%s5 + $0x38] sm:$0xff]
    %v1780 = vld [vmem:[#allocation7 + $0x5] sm:$0x1]
    %v1781 = vperm.slane %v1780, 0
    %vm1782 = vcmask 523264
    %v1784 = vsel %vm1782, %v1770, 0
    %v1787 = vsel %vm1782, %v1771, 0
    %1789 = vmatpush.msra.mxu0 0.0
    %1790 = vmatpush.msra.mxu0 0.0
    %1791 = vmatpush.msra.mxu0 0.0
    %1792 = vmatpush.msra.mxu0 0.0
    %1793 = vmatpush.msra.mxu0 0.0
    %1794 = vmatpush.msra.mxu0 0.0
    %1795 = vmatpush.msra.mxu0 0.0
    %1796 = vmatpush.msra.mxu0 0.0
    %1797 = vmatpush.msra.mxu0 %v1779
    %1798 = vmatpush.msra.mxu0 %v1778
    %1799 = vmatpush.msra.mxu0 %v1777
    %1800 = vmatpush.msra.mxu0 %v1776
    %1801 = vmatpush.msra.mxu0 %v1775
    %1802 = vmatpush.msra.mxu0 %v1774
    %1803 = vmatpush.msra.mxu0 %v1773
    %1804 = vmatpush.msra.mxu0 %v1772
    %1805 = vmatmul.f32.gmra.mxu0 %v1784
    %v1806 = vpop.f32.mrf.mxu0
    %v1807 = vadd.f32 %v1781, %v1806
    %1808 = vmatmul.f32.gmra.mxu0 %v1787
    %v1809 = vpop.f32.mrf.mxu0
    %v1810 = vadd.f32 %v1781, %v1809
    %1811 = vdwg.mxu0
    %v1812 = vadd.f32 %v1733, %v1807
    %v1813 = vadd.f32 %v1734, %v1810
    %v1814 = vld [vmem:[#allocation7 + $0x6] sm:$0x1]
    %v1815 = vld [vmem:[#allocation7 + $0x7] sm:$0x1]
    %v1816 = vsel %vm92, %v1812, 0.0
    %1817 = vadd.xlane.f32.xlu0 %v1816
    %v1818 = vpop.xlane.xlu0 %1817
    %v1819 = vsel %vm92, %v1813, 0.0
    %1820 = vadd.xlane.f32.xlu0 %v1819
    %v1821 = vpop.xlane.xlu0 %1820
    %v1822 = vmul.f32 %v1818, %v874
    %v1823 = vmul.f32 %v1821, %v874
    %v1824 = vsub.f32 %v1812, %v1822
    %v1825 = vsub.f32 %v1813, %v1823
    %v1826 = vmul.f32 %v1824, %v1824
    %v1827 = vmul.f32 %v1825, %v1825
    %v1828 = vsel %vm92, %v1826, 0.0
    %1829 = vadd.xlane.f32.xlu0 %v1828
    %v1830 = vpop.xlane.xlu0 %1829
    %v1831 = vsel %vm92, %v1827, 0.0
    %1832 = vadd.xlane.f32.xlu0 %v1831
    %v1833 = vpop.xlane.xlu0 %1832
    %v1834 = vmul.f32 %v1830, %v874
    %v1835 = vmul.f32 %v1833, %v874
    %v1836 = vadd.f32 %v1834, 1e-05
    %v1837 = vadd.f32 %v1835, 1e-05
    %v1838 = vrsqrt.pop %v1836
    %v1839 = vmul.f32 %v1838, %v1836
    %v1840 = vmul.f32 %v1839, %v1838
    %v1841 = vmul.f32 0.5, %v1840
    %v1842 = vsub.f32 1.5, %v1841
    %v1843 = vmul.f32 %v1838, %v1842
    %vm1844 = vweird.f32 %v1836
    %vm1845 = vweird.f32 %v1838
    %vm1846 = vmor %vm1844, %vm1845
    %v1847 = vsel %vm1846, %v1838, %v1843
    %v1848 = vrsqrt.pop %v1837
    %v1849 = vmul.f32 %v1848, %v1837
    %v1850 = vmul.f32 %v1849, %v1848
    %v1851 = vmul.f32 0.5, %v1850
    %v1852 = vsub.f32 1.5, %v1851
    %v1853 = vmul.f32 %v1848, %v1852
    %vm1854 = vweird.f32 %v1837
    %vm1855 = vweird.f32 %v1848
    %vm1856 = vmor %vm1854, %vm1855
    %v1857 = vsel %vm1856, %v1848, %v1853
    %v1858 = vmul.f32 %v1824, %v1847
    %v1859 = vmul.f32 %v1825, %v1857
    %v1860 = vperm.slane %v1814, 0
    %v1861 = vmul.f32 %v1858, %v1860
    %v1862 = vmul.f32 %v1859, %v1860
    %v1863 = vperm.slane %v1815, 0
    %v1864 = vadd.f32 %v1861, %v1863
    %v1865 = vadd.f32 %v1862, %v1863
    %s1866 = scalar_lea.vmem %s2, 32
    %v1867 = vld [vmem:[%s1866] sm:$0xff]
    %v1868 = vld [vmem:[%s1866 + $0x8] sm:$0xff]
    %v1869 = vld [vmem:[%s1866 + $0x10] sm:$0xff]
    %v1870 = vld [vmem:[%s1866 + $0x18] sm:$0xff]
    %s1871 = scalar_lea.vmem %s3, 32
    %v1872 = vld [vmem:[%s1871] sm:$0xff]
    %v1873 = vld [vmem:[%s1871 + $0x8] sm:$0xff]
    %v1874 = vld [vmem:[%s1871 + $0x10] sm:$0xff]
    %v1875 = vld [vmem:[%s1871 + $0x18] sm:$0xff]
    %s1876 = scalar_lea.vmem [#allocation7], 8
    %v1877 = vld [vmem:[%s1876] sm:$0x1]
    %v1878 = vld [vmem:[%s1876 + $0x1] sm:$0x1]
    %v1879 = vperm.slane %v1877, 0
    %v1881 = vsel %vm92, %v1864, 0
    %v1884 = vsel %vm92, %v1865, 0
    %1886 = vmatpush.msra.mxu0 0.0
    %1887 = vmatpush.msra.mxu0 0.0
    %1888 = vmatpush.msra.mxu0 0.0
    %1889 = vmatpush.msra.mxu0 0.0
    %1890 = vmatpush.msra.mxu0 0.0
    %1891 = vmatpush.msra.mxu0 0.0
    %1892 = vmatpush.msra.mxu0 0.0
    %1893 = vmatpush.msra.mxu0 0.0
    %1894 = vmatpush.msra.mxu0 0.0
    %1895 = vmatpush.msra.mxu0 0.0
    %1896 = vmatpush.msra.mxu0 0.0
    %1897 = vmatpush.msra.mxu0 0.0
    %1898 = vmatpush.msra.mxu0 %v1870
    %1899 = vmatpush.msra.mxu0 %v1869
    %1900 = vmatpush.msra.mxu0 %v1868
    %1901 = vmatpush.msra.mxu0 %v1867
    %1902 = vmatmul.f32.gmra.mxu0 %v1881
    %v1903 = vpop.f32.mrf.mxu0
    %v1904 = vadd.f32 %v1879, %v1903
    %1905 = vmatmul.f32.gmra.mxu0 %v1884
    %v1906 = vpop.f32.mrf.mxu0
    %v1907 = vadd.f32 %v1879, %v1906
    %1908 = vmatmul.f32.gmra.mxu0 %v100
    %v1909 = vpop.f32.mrf.mxu0
    %v1910 = vadd.f32 %v1879, %v1909
    %1911 = vmatmul.f32.gmra.mxu0 %v103
    %v1912 = vpop.f32.mrf.mxu0
    %v1913 = vadd.f32 %v1879, %v1912
    %1914 = vdwg.mxu0
    %1916 = vrot.lane.b32.xlu0 %v1904, 120
    %v1917 = vpop.permute.xlu0 %1916
    %1918 = vrot.lane.b32.xlu0 %v1904, 112
    %v1919 = vpop.permute.xlu0 %1918
    %1920 = vrot.lane.b32.xlu0 %v1904, 104
    %v1921 = vpop.permute.xlu0 %1920
    %1923 = vrot.lane.b32.xlu0 %v1907, 120
    %v1924 = vpop.permute.xlu0 %1923
    %1925 = vrot.lane.b32.xlu0 %v1907, 112
    %v1926 = vpop.permute.xlu0 %1925
    %1927 = vrot.lane.b32.xlu0 %v1907, 104
    %v1928 = vpop.permute.xlu0 %1927
    %1929 = vrot.lane.b32.xlu0 %v1904, 96
    %v1930 = vpop.permute.xlu0 %1929
    %v1931 = vsel %vm150, %v1904, 0
    %v1933 = vsel %vm150, %v1930, 0
    %1935 = vmatpush.xpose.msra.mxu0 0.0
    %1936 = vmatpush.xpose.msra.mxu0 0.0
    %1937 = vmatpush.xpose.msra.mxu0 0.0
    %1938 = vmatpush.xpose.msra.mxu0 0.0
    %1939 = vmatpush.xpose.msra.mxu0 0.0
    %1940 = vmatpush.xpose.msra.mxu0 0.0
    %1941 = vmatpush.xpose.msra.mxu0 0.0
    %1942 = vmatpush.xpose.msra.mxu0 0.0
    %1943 = vmatpush.xpose.msra.mxu0 0.0
    %1944 = vmatpush.xpose.msra.mxu0 0.0
    %1945 = vmatpush.xpose.msra.mxu0 0.0
    %1946 = vmatpush.xpose.msra.mxu0 0.0
    %1947 = vmatpush.xpose.msra.mxu0 0.0
    %1948 = vmatpush.xpose.msra.mxu0 0.0
    %1949 = vmatpush.xpose.msra.mxu0 0.0
    %1950 = vmatpush.xpose.msra.mxu0 %v1933
    %1951 = vmatmul.f32.gmra.mxu0 %v1931
    %v1952 = vpop.f32.mrf.mxu0
    %v1953 = vadd.f32 0.0, %v1952
    %1954 = vdwg.mxu0
    %1955 = vrot.lane.b32.xlu0 %v1917, 96
    %v1956 = vpop.permute.xlu0 %1955
    %v1957 = vsel %vm150, %v1917, 0
    %v1959 = vsel %vm150, %v1956, 0
    %1961 = vmatpush.xpose.msra.mxu0 0.0
    %1962 = vmatpush.xpose.msra.mxu0 0.0
    %1963 = vmatpush.xpose.msra.mxu0 0.0
    %1964 = vmatpush.xpose.msra.mxu0 0.0
    %1965 = vmatpush.xpose.msra.mxu0 0.0
    %1966 = vmatpush.xpose.msra.mxu0 0.0
    %1967 = vmatpush.xpose.msra.mxu0 0.0
    %1968 = vmatpush.xpose.msra.mxu0 0.0
    %1969 = vmatpush.xpose.msra.mxu0 0.0
    %1970 = vmatpush.xpose.msra.mxu0 0.0
    %1971 = vmatpush.xpose.msra.mxu0 0.0
    %1972 = vmatpush.xpose.msra.mxu0 0.0
    %1973 = vmatpush.xpose.msra.mxu0 0.0
    %1974 = vmatpush.xpose.msra.mxu0 0.0
    %1975 = vmatpush.xpose.msra.mxu0 0.0
    %1976 = vmatpush.xpose.msra.mxu0 %v1959
    %1977 = vmatmul.f32.gmra.mxu0 %v1957
    %v1978 = vpop.f32.mrf.mxu0
    %v1979 = vadd.f32 0.0, %v1978
    %1980 = vdwg.mxu0
    %1981 = vrot.lane.b32.xlu0 %v1919, 96
    %v1982 = vpop.permute.xlu0 %1981
    %v1983 = vsel %vm150, %v1919, 0
    %v1985 = vsel %vm150, %v1982, 0
    %1987 = vmatpush.xpose.msra.mxu0 0.0
    %1988 = vmatpush.xpose.msra.mxu0 0.0
    %1989 = vmatpush.xpose.msra.mxu0 0.0
    %1990 = vmatpush.xpose.msra.mxu0 0.0
    %1991 = vmatpush.xpose.msra.mxu0 0.0
    %1992 = vmatpush.xpose.msra.mxu0 0.0
    %1993 = vmatpush.xpose.msra.mxu0 0.0
    %1994 = vmatpush.xpose.msra.mxu0 0.0
    %1995 = vmatpush.xpose.msra.mxu0 0.0
    %1996 = vmatpush.xpose.msra.mxu0 0.0
    %1997 = vmatpush.xpose.msra.mxu0 0.0
    %1998 = vmatpush.xpose.msra.mxu0 0.0
    %1999 = vmatpush.xpose.msra.mxu0 0.0
    %2000 = vmatpush.xpose.msra.mxu0 0.0
    %2001 = vmatpush.xpose.msra.mxu0 0.0
    %2002 = vmatpush.xpose.msra.mxu0 %v1985
    %2003 = vmatmul.f32.gmra.mxu0 %v1983
    %v2004 = vpop.f32.mrf.mxu0
    %v2005 = vadd.f32 0.0, %v2004
    %2006 = vdwg.mxu0
    %2007 = vrot.lane.b32.xlu0 %v1921, 96
    %v2008 = vpop.permute.xlu0 %2007
    %v2009 = vsel %vm150, %v1921, 0
    %v2011 = vsel %vm150, %v2008, 0
    %2013 = vmatpush.xpose.msra.mxu0 0.0
    %2014 = vmatpush.xpose.msra.mxu0 0.0
    %2015 = vmatpush.xpose.msra.mxu0 0.0
    %2016 = vmatpush.xpose.msra.mxu0 0.0
    %2017 = vmatpush.xpose.msra.mxu0 0.0
    %2018 = vmatpush.xpose.msra.mxu0 0.0
    %2019 = vmatpush.xpose.msra.mxu0 0.0
    %2020 = vmatpush.xpose.msra.mxu0 0.0
    %2021 = vmatpush.xpose.msra.mxu0 0.0
    %2022 = vmatpush.xpose.msra.mxu0 0.0
    %2023 = vmatpush.xpose.msra.mxu0 0.0
    %2024 = vmatpush.xpose.msra.mxu0 0.0
    %2025 = vmatpush.xpose.msra.mxu0 0.0
    %2026 = vmatpush.xpose.msra.mxu0 0.0
    %2027 = vmatpush.xpose.msra.mxu0 0.0
    %2028 = vmatpush.xpose.msra.mxu0 %v2011
    %2029 = vmatmul.f32.gmra.mxu0 %v2009
    %v2030 = vpop.f32.mrf.mxu0
    %v2031 = vadd.f32 0.0, %v2030
    %2032 = vdwg.mxu0
    %2033 = vrot.lane.b32.xlu0 %v1907, 96
    %v2034 = vpop.permute.xlu0 %2033
    %v2035 = vsel %vm150, %v1907, 0
    %v2037 = vsel %vm150, %v2034, 0
    %2039 = vmatpush.xpose.msra.mxu0 0.0
    %2040 = vmatpush.xpose.msra.mxu0 0.0
    %2041 = vmatpush.xpose.msra.mxu0 0.0
    %2042 = vmatpush.xpose.msra.mxu0 0.0
    %2043 = vmatpush.xpose.msra.mxu0 0.0
    %2044 = vmatpush.xpose.msra.mxu0 0.0
    %2045 = vmatpush.xpose.msra.mxu0 0.0
    %2046 = vmatpush.xpose.msra.mxu0 0.0
    %2047 = vmatpush.xpose.msra.mxu0 0.0
    %2048 = vmatpush.xpose.msra.mxu0 0.0
    %2049 = vmatpush.xpose.msra.mxu0 0.0
    %2050 = vmatpush.xpose.msra.mxu0 0.0
    %2051 = vmatpush.xpose.msra.mxu0 0.0
    %2052 = vmatpush.xpose.msra.mxu0 0.0
    %2053 = vmatpush.xpose.msra.mxu0 0.0
    %2054 = vmatpush.xpose.msra.mxu0 %v2037
    %2055 = vmatmul.f32.gmra.mxu0 %v2035
    %v2056 = vpop.f32.mrf.mxu0
    %v2057 = vadd.f32 0.0, %v2056
    %2058 = vdwg.mxu0
    %2059 = vrot.lane.b32.xlu0 %v1924, 96
    %v2060 = vpop.permute.xlu0 %2059
    %v2061 = vsel %vm150, %v1924, 0
    %v2063 = vsel %vm150, %v2060, 0
    %2065 = vmatpush.xpose.msra.mxu0 0.0
    %2066 = vmatpush.xpose.msra.mxu0 0.0
    %2067 = vmatpush.xpose.msra.mxu0 0.0
    %2068 = vmatpush.xpose.msra.mxu0 0.0
    %2069 = vmatpush.xpose.msra.mxu0 0.0
    %2070 = vmatpush.xpose.msra.mxu0 0.0
    %2071 = vmatpush.xpose.msra.mxu0 0.0
    %2072 = vmatpush.xpose.msra.mxu0 0.0
    %2073 = vmatpush.xpose.msra.mxu0 0.0
    %2074 = vmatpush.xpose.msra.mxu0 0.0
    %2075 = vmatpush.xpose.msra.mxu0 0.0
    %2076 = vmatpush.xpose.msra.mxu0 0.0
    %2077 = vmatpush.xpose.msra.mxu0 0.0
    %2078 = vmatpush.xpose.msra.mxu0 0.0
    %2079 = vmatpush.xpose.msra.mxu0 0.0
    %2080 = vmatpush.xpose.msra.mxu0 %v2063
    %2081 = vmatmul.f32.gmra.mxu0 %v2061
    %v2082 = vpop.f32.mrf.mxu0
    %v2083 = vadd.f32 0.0, %v2082
    %2084 = vdwg.mxu0
    %2085 = vrot.lane.b32.xlu0 %v1926, 96
    %v2086 = vpop.permute.xlu0 %2085
    %v2087 = vsel %vm150, %v1926, 0
    %v2089 = vsel %vm150, %v2086, 0
    %2091 = vmatpush.xpose.msra.mxu0 0.0
    %2092 = vmatpush.xpose.msra.mxu0 0.0
    %2093 = vmatpush.xpose.msra.mxu0 0.0
    %2094 = vmatpush.xpose.msra.mxu0 0.0
    %2095 = vmatpush.xpose.msra.mxu0 0.0
    %2096 = vmatpush.xpose.msra.mxu0 0.0
    %2097 = vmatpush.xpose.msra.mxu0 0.0
    %2098 = vmatpush.xpose.msra.mxu0 0.0
    %2099 = vmatpush.xpose.msra.mxu0 0.0
    %2100 = vmatpush.xpose.msra.mxu0 0.0
    %2101 = vmatpush.xpose.msra.mxu0 0.0
    %2102 = vmatpush.xpose.msra.mxu0 0.0
    %2103 = vmatpush.xpose.msra.mxu0 0.0
    %2104 = vmatpush.xpose.msra.mxu0 0.0
    %2105 = vmatpush.xpose.msra.mxu0 0.0
    %2106 = vmatpush.xpose.msra.mxu0 %v2089
    %2107 = vmatmul.f32.gmra.mxu0 %v2087
    %v2108 = vpop.f32.mrf.mxu0
    %v2109 = vadd.f32 0.0, %v2108
    %2110 = vdwg.mxu0
    %2111 = vrot.lane.b32.xlu0 %v1928, 96
    %v2112 = vpop.permute.xlu0 %2111
    %v2113 = vsel %vm150, %v1928, 0
    %v2115 = vsel %vm150, %v2112, 0
    %2117 = vmatpush.xpose.msra.mxu0 0.0
    %2118 = vmatpush.xpose.msra.mxu0 0.0
    %2119 = vmatpush.xpose.msra.mxu0 0.0
    %2120 = vmatpush.xpose.msra.mxu0 0.0
    %2121 = vmatpush.xpose.msra.mxu0 0.0
    %2122 = vmatpush.xpose.msra.mxu0 0.0
    %2123 = vmatpush.xpose.msra.mxu0 0.0
    %2124 = vmatpush.xpose.msra.mxu0 0.0
    %2125 = vmatpush.xpose.msra.mxu0 0.0
    %2126 = vmatpush.xpose.msra.mxu0 0.0
    %2127 = vmatpush.xpose.msra.mxu0 0.0
    %2128 = vmatpush.xpose.msra.mxu0 0.0
    %2129 = vmatpush.xpose.msra.mxu0 0.0
    %2130 = vmatpush.xpose.msra.mxu0 0.0
    %2131 = vmatpush.xpose.msra.mxu0 0.0
    %2132 = vmatpush.xpose.msra.mxu0 %v2115
    %2133 = vmatmul.f32.gmra.mxu0 %v2113
    %v2134 = vpop.f32.mrf.mxu0
    %v2135 = vadd.f32 0.0, %v2134
    %2136 = vdwg.mxu0
    %v2137 = vmul.f32 %v1953, 0.35355338
    %v2138 = vmul.f32 %v1979, 0.35355338
    %v2139 = vmul.f32 %v2005, 0.35355338
    %v2140 = vmul.f32 %v2031, 0.35355338
    %v2141 = vmul.f32 %v2057, 0.35355338
    %v2142 = vmul.f32 %v2083, 0.35355338
    %v2143 = vmul.f32 %v2109, 0.35355338
    %v2144 = vmul.f32 %v2135, 0.35355338
    %v2145 = vsel %vm150, %v2137, -inf
    %2146 = vmax.xlane.f32.xlu0 %v2145
    %v2147 = vpop.xlane.xlu0 %2146
    %v2148 = vsel %vm150, %v2138, -inf
    %2149 = vmax.xlane.f32.xlu0 %v2148
    %v2150 = vpop.xlane.xlu0 %2149
    %v2151 = vsel %vm150, %v2139, -inf
    %2152 = vmax.xlane.f32.xlu0 %v2151
    %v2153 = vpop.xlane.xlu0 %2152
    %v2154 = vsel %vm150, %v2140, -inf
    %2155 = vmax.xlane.f32.xlu0 %v2154
    %v2156 = vpop.xlane.xlu0 %2155
    %v2157 = vsel %vm150, %v2141, -inf
    %2158 = vmax.xlane.f32.xlu0 %v2157
    %v2159 = vpop.xlane.xlu0 %2158
    %v2160 = vsel %vm150, %v2142, -inf
    %2161 = vmax.xlane.f32.xlu0 %v2160
    %v2162 = vpop.xlane.xlu0 %2161
    %v2163 = vsel %vm150, %v2143, -inf
    %2164 = vmax.xlane.f32.xlu0 %v2163
    %v2165 = vpop.xlane.xlu0 %2164
    %v2166 = vsel %vm150, %v2144, -inf
    %2167 = vmax.xlane.f32.xlu0 %v2166
    %v2168 = vpop.xlane.xlu0 %2167
    %v2169 = vsub.f32 %v2137, %v2147
    %v2170 = vsub.f32 %v2138, %v2150
    %v2171 = vsub.f32 %v2139, %v2153
    %v2172 = vsub.f32 %v2140, %v2156
    %v2173 = vsub.f32 %v2141, %v2159
    %v2174 = vsub.f32 %v2142, %v2162
    %v2175 = vsub.f32 %v2143, %v2165
    %v2176 = vsub.f32 %v2144, %v2168
    %v2177 = vmul.f32 %v2169, 1.442695
    %v2178 = vpow.pop %v2177
    %v2179 = vmul.f32 %v2170, 1.442695
    %v2180 = vpow.pop %v2179
    %v2181 = vmul.f32 %v2171, 1.442695
    %v2182 = vpow.pop %v2181
    %v2183 = vmul.f32 %v2172, 1.442695
    %v2184 = vpow.pop %v2183
    %v2185 = vmul.f32 %v2173, 1.442695
    %v2186 = vpow.pop %v2185
    %v2187 = vmul.f32 %v2174, 1.442695
    %v2188 = vpow.pop %v2187
    %v2189 = vmul.f32 %v2175, 1.442695
    %v2190 = vpow.pop %v2189
    %v2191 = vmul.f32 %v2176, 1.442695
    %v2192 = vpow.pop %v2191
    %v2193 = vsel %vm150, %v2178, 0.0
    %2194 = vadd.xlane.f32.xlu0 %v2193
    %v2195 = vpop.xlane.xlu0 %2194
    %v2196 = vsel %vm150, %v2180, 0.0
    %2197 = vadd.xlane.f32.xlu0 %v2196
    %v2198 = vpop.xlane.xlu0 %2197
    %v2199 = vsel %vm150, %v2182, 0.0
    %2200 = vadd.xlane.f32.xlu0 %v2199
    %v2201 = vpop.xlane.xlu0 %2200
    %v2202 = vsel %vm150, %v2184, 0.0
    %2203 = vadd.xlane.f32.xlu0 %v2202
    %v2204 = vpop.xlane.xlu0 %2203
    %v2205 = vsel %vm150, %v2186, 0.0
    %2206 = vadd.xlane.f32.xlu0 %v2205
    %v2207 = vpop.xlane.xlu0 %2206
    %v2208 = vsel %vm150, %v2188, 0.0
    %2209 = vadd.xlane.f32.xlu0 %v2208
    %v2210 = vpop.xlane.xlu0 %2209
    %v2211 = vsel %vm150, %v2190, 0.0
    %2212 = vadd.xlane.f32.xlu0 %v2211
    %v2213 = vpop.xlane.xlu0 %2212
    %v2214 = vsel %vm150, %v2192, 0.0
    %2215 = vadd.xlane.f32.xlu0 %v2214
    %v2216 = vpop.xlane.xlu0 %2215
    %v2217 = vrcp.pop %v2195
    %v2218 = vmul.f32 %v2195, %v2217
    %v2219 = vsub.f32 1.0, %v2218
    %v2220 = vmul.f32 %v2217, %v2219
    %v2221 = vadd.f32 %v2217, %v2220
    %vm2222 = vweird.f32 %v2195
    %vm2223 = vweird.f32 %v2217
    %vm2224 = vmor %vm2222, %vm2223
    %v2225 = vsel %vm2224, %v2217, %v2221
    %v2226 = vand.u32 2147483647, %v2195
    %vm2227 = vcmp.eq.f32.partialorder %v2226, 8.507059e+37
    %v2228 = vand.u32 %v2195, 2147483648
    %v2229 = vor.u32 1.1754944e-38, %v2228
    %v2230 = vsel %vm2227, %v2229, %v2225
    %v2231 = vmul.f32 %v2178, %v2230
    %v2232 = vrcp.pop %v2198
    %v2233 = vmul.f32 %v2198, %v2232
    %v2234 = vsub.f32 1.0, %v2233
    %v2235 = vmul.f32 %v2232, %v2234
    %v2236 = vadd.f32 %v2232, %v2235
    %vm2237 = vweird.f32 %v2198
    %vm2238 = vweird.f32 %v2232
    %vm2239 = vmor %vm2237, %vm2238
    %v2240 = vsel %vm2239, %v2232, %v2236
    %v2241 = vand.u32 2147483647, %v2198
    %vm2242 = vcmp.eq.f32.partialorder %v2241, 8.507059e+37
    %v2243 = vand.u32 %v2198, 2147483648
    %v2244 = vor.u32 1.1754944e-38, %v2243
    %v2245 = vsel %vm2242, %v2244, %v2240
    %v2246 = vmul.f32 %v2180, %v2245
    %v2247 = vrcp.pop %v2201
    %v2248 = vmul.f32 %v2201, %v2247
    %v2249 = vsub.f32 1.0, %v2248
    %v2250 = vmul.f32 %v2247, %v2249
    %v2251 = vadd.f32 %v2247, %v2250
    %vm2252 = vweird.f32 %v2201
    %vm2253 = vweird.f32 %v2247
    %vm2254 = vmor %vm2252, %vm2253
    %v2255 = vsel %vm2254, %v2247, %v2251
    %v2256 = vand.u32 2147483647, %v2201
    %vm2257 = vcmp.eq.f32.partialorder %v2256, 8.507059e+37
    %v2258 = vand.u32 %v2201, 2147483648
    %v2259 = vor.u32 1.1754944e-38, %v2258
    %v2260 = vsel %vm2257, %v2259, %v2255
    %v2261 = vmul.f32 %v2182, %v2260
    %v2262 = vrcp.pop %v2204
    %v2263 = vmul.f32 %v2204, %v2262
    %v2264 = vsub.f32 1.0, %v2263
    %v2265 = vmul.f32 %v2262, %v2264
    %v2266 = vadd.f32 %v2262, %v2265
    %vm2267 = vweird.f32 %v2204
    %vm2268 = vweird.f32 %v2262
    %vm2269 = vmor %vm2267, %vm2268
    %v2270 = vsel %vm2269, %v2262, %v2266
    %v2271 = vand.u32 2147483647, %v2204
    %vm2272 = vcmp.eq.f32.partialorder %v2271, 8.507059e+37
    %v2273 = vand.u32 %v2204, 2147483648
    %v2274 = vor.u32 1.1754944e-38, %v2273
    %v2275 = vsel %vm2272, %v2274, %v2270
    %v2276 = vmul.f32 %v2184, %v2275
    %v2277 = vrcp.pop %v2207
    %v2278 = vmul.f32 %v2207, %v2277
    %v2279 = vsub.f32 1.0, %v2278
    %v2280 = vmul.f32 %v2277, %v2279
    %v2281 = vadd.f32 %v2277, %v2280
    %vm2282 = vweird.f32 %v2207
    %vm2283 = vweird.f32 %v2277
    %vm2284 = vmor %vm2282, %vm2283
    %v2285 = vsel %vm2284, %v2277, %v2281
    %v2286 = vand.u32 2147483647, %v2207
    %vm2287 = vcmp.eq.f32.partialorder %v2286, 8.507059e+37
    %v2288 = vand.u32 %v2207, 2147483648
    %v2289 = vor.u32 1.1754944e-38, %v2288
    %v2290 = vsel %vm2287, %v2289, %v2285
    %v2291 = vmul.f32 %v2186, %v2290
    %v2292 = vrcp.pop %v2210
    %v2293 = vmul.f32 %v2210, %v2292
    %v2294 = vsub.f32 1.0, %v2293
    %v2295 = vmul.f32 %v2292, %v2294
    %v2296 = vadd.f32 %v2292, %v2295
    %vm2297 = vweird.f32 %v2210
    %vm2298 = vweird.f32 %v2292
    %vm2299 = vmor %vm2297, %vm2298
    %v2300 = vsel %vm2299, %v2292, %v2296
    %v2301 = vand.u32 2147483647, %v2210
    %vm2302 = vcmp.eq.f32.partialorder %v2301, 8.507059e+37
    %v2303 = vand.u32 %v2210, 2147483648
    %v2304 = vor.u32 1.1754944e-38, %v2303
    %v2305 = vsel %vm2302, %v2304, %v2300
    %v2306 = vmul.f32 %v2188, %v2305
    %v2307 = vrcp.pop %v2213
    %v2308 = vmul.f32 %v2213, %v2307
    %v2309 = vsub.f32 1.0, %v2308
    %v2310 = vmul.f32 %v2307, %v2309
    %v2311 = vadd.f32 %v2307, %v2310
    %vm2312 = vweird.f32 %v2213
    %vm2313 = vweird.f32 %v2307
    %vm2314 = vmor %vm2312, %vm2313
    %v2315 = vsel %vm2314, %v2307, %v2311
    %v2316 = vand.u32 2147483647, %v2213
    %vm2317 = vcmp.eq.f32.partialorder %v2316, 8.507059e+37
    %v2318 = vand.u32 %v2213, 2147483648
    %v2319 = vor.u32 1.1754944e-38, %v2318
    %v2320 = vsel %vm2317, %v2319, %v2315
    %v2321 = vmul.f32 %v2190, %v2320
    %v2322 = vrcp.pop %v2216
    %v2323 = vmul.f32 %v2216, %v2322
    %v2324 = vsub.f32 1.0, %v2323
    %v2325 = vmul.f32 %v2322, %v2324
    %v2326 = vadd.f32 %v2322, %v2325
    %vm2327 = vweird.f32 %v2216
    %vm2328 = vweird.f32 %v2322
    %vm2329 = vmor %vm2327, %vm2328
    %v2330 = vsel %vm2329, %v2322, %v2326
    %v2331 = vand.u32 2147483647, %v2216
    %vm2332 = vcmp.eq.f32.partialorder %v2331, 8.507059e+37
    %v2333 = vand.u32 %v2216, 2147483648
    %v2334 = vor.u32 1.1754944e-38, %v2333
    %v2335 = vsel %vm2332, %v2334, %v2330
    %v2336 = vmul.f32 %v2192, %v2335
    %2337 = vrot.lane.b32.xlu0 %v1904, 64
    %v2338 = vpop.permute.xlu0 %2337
    %v2341 = vsel %vm150, %v2231, 0
    %2343 = vmatpush.msra.mxu0 0.0
    %2344 = vmatpush.msra.mxu0 0.0
    %2345 = vmatpush.msra.mxu0 0.0
    %2346 = vmatpush.msra.mxu0 0.0
    %2347 = vmatpush.msra.mxu0 0.0
    %2348 = vmatpush.msra.mxu0 0.0
    %2349 = vmatpush.msra.mxu0 0.0
    %2350 = vmatpush.msra.mxu0 0.0
    %2351 = vmatpush.msra.mxu0 0.0
    %2352 = vmatpush.msra.mxu0 0.0
    %2353 = vmatpush.msra.mxu0 0.0
    %2354 = vmatpush.msra.mxu0 0.0
    %2355 = vmatpush.msra.mxu0 0.0
    %2356 = vmatpush.msra.mxu0 0.0
    %2357 = vmatpush.msra.mxu0 0.0
    %2358 = vmatpush.msra.mxu0 %v2338
    %2359 = vmatmul.f32.gmra.mxu0 %v2341
    %v2360 = vpop.f32.mrf.mxu0
    %v2361 = vadd.f32 0.0, %v2360
    %2362 = vdwg.mxu0
    %2363 = vrot.lane.b32.xlu0 %v1917, 64
    %v2364 = vpop.permute.xlu0 %2363
    %v2367 = vsel %vm150, %v2246, 0
    %2369 = vmatpush.msra.mxu0 0.0
    %2370 = vmatpush.msra.mxu0 0.0
    %2371 = vmatpush.msra.mxu0 0.0
    %2372 = vmatpush.msra.mxu0 0.0
    %2373 = vmatpush.msra.mxu0 0.0
    %2374 = vmatpush.msra.mxu0 0.0
    %2375 = vmatpush.msra.mxu0 0.0
    %2376 = vmatpush.msra.mxu0 0.0
    %2377 = vmatpush.msra.mxu0 0.0
    %2378 = vmatpush.msra.mxu0 0.0
    %2379 = vmatpush.msra.mxu0 0.0
    %2380 = vmatpush.msra.mxu0 0.0
    %2381 = vmatpush.msra.mxu0 0.0
    %2382 = vmatpush.msra.mxu0 0.0
    %2383 = vmatpush.msra.mxu0 0.0
    %2384 = vmatpush.msra.mxu0 %v2364
    %2385 = vmatmul.f32.gmra.mxu0 %v2367
    %v2386 = vpop.f32.mrf.mxu0
    %v2387 = vadd.f32 0.0, %v2386
    %2388 = vdwg.mxu0
    %2389 = vrot.lane.b32.xlu0 %v1919, 64
    %v2390 = vpop.permute.xlu0 %2389
    %v2393 = vsel %vm150, %v2261, 0
    %2395 = vmatpush.msra.mxu0 0.0
    %2396 = vmatpush.msra.mxu0 0.0
    %2397 = vmatpush.msra.mxu0 0.0
    %2398 = vmatpush.msra.mxu0 0.0
    %2399 = vmatpush.msra.mxu0 0.0
    %2400 = vmatpush.msra.mxu0 0.0
    %2401 = vmatpush.msra.mxu0 0.0
    %2402 = vmatpush.msra.mxu0 0.0
    %2403 = vmatpush.msra.mxu0 0.0
    %2404 = vmatpush.msra.mxu0 0.0
    %2405 = vmatpush.msra.mxu0 0.0
    %2406 = vmatpush.msra.mxu0 0.0
    %2407 = vmatpush.msra.mxu0 0.0
    %2408 = vmatpush.msra.mxu0 0.0
    %2409 = vmatpush.msra.mxu0 0.0
    %2410 = vmatpush.msra.mxu0 %v2390
    %2411 = vmatmul.f32.gmra.mxu0 %v2393
    %v2412 = vpop.f32.mrf.mxu0
    %v2413 = vadd.f32 0.0, %v2412
    %2414 = vdwg.mxu0
    %2415 = vrot.lane.b32.xlu0 %v1921, 64
    %v2416 = vpop.permute.xlu0 %2415
    %v2419 = vsel %vm150, %v2276, 0
    %2421 = vmatpush.msra.mxu0 0.0
    %2422 = vmatpush.msra.mxu0 0.0
    %2423 = vmatpush.msra.mxu0 0.0
    %2424 = vmatpush.msra.mxu0 0.0
    %2425 = vmatpush.msra.mxu0 0.0
    %2426 = vmatpush.msra.mxu0 0.0
    %2427 = vmatpush.msra.mxu0 0.0
    %2428 = vmatpush.msra.mxu0 0.0
    %2429 = vmatpush.msra.mxu0 0.0
    %2430 = vmatpush.msra.mxu0 0.0
    %2431 = vmatpush.msra.mxu0 0.0
    %2432 = vmatpush.msra.mxu0 0.0
    %2433 = vmatpush.msra.mxu0 0.0
    %2434 = vmatpush.msra.mxu0 0.0
    %2435 = vmatpush.msra.mxu0 0.0
    %2436 = vmatpush.msra.mxu0 %v2416
    %2437 = vmatmul.f32.gmra.mxu0 %v2419
    %v2438 = vpop.f32.mrf.mxu0
    %v2439 = vadd.f32 0.0, %v2438
    %2440 = vdwg.mxu0
    %2441 = vrot.lane.b32.xlu0 %v1907, 64
    %v2442 = vpop.permute.xlu0 %2441
    %v2445 = vsel %vm150, %v2291, 0
    %2447 = vmatpush.msra.mxu0 0.0
    %2448 = vmatpush.msra.mxu0 0.0
    %2449 = vmatpush.msra.mxu0 0.0
    %2450 = vmatpush.msra.mxu0 0.0
    %2451 = vmatpush.msra.mxu0 0.0
    %2452 = vmatpush.msra.mxu0 0.0
    %2453 = vmatpush.msra.mxu0 0.0
    %2454 = vmatpush.msra.mxu0 0.0
    %2455 = vmatpush.msra.mxu0 0.0
    %2456 = vmatpush.msra.mxu0 0.0
    %2457 = vmatpush.msra.mxu0 0.0
    %2458 = vmatpush.msra.mxu0 0.0
    %2459 = vmatpush.msra.mxu0 0.0
    %2460 = vmatpush.msra.mxu0 0.0
    %2461 = vmatpush.msra.mxu0 0.0
    %2462 = vmatpush.msra.mxu0 %v2442
    %2463 = vmatmul.f32.gmra.mxu0 %v2445
    %v2464 = vpop.f32.mrf.mxu0
    %v2465 = vadd.f32 0.0, %v2464
    %2466 = vdwg.mxu0
    %2467 = vrot.lane.b32.xlu0 %v1924, 64
    %v2468 = vpop.permute.xlu0 %2467
    %v2471 = vsel %vm150, %v2306, 0
    %2473 = vmatpush.msra.mxu0 0.0
    %2474 = vmatpush.msra.mxu0 0.0
    %2475 = vmatpush.msra.mxu0 0.0
    %2476 = vmatpush.msra.mxu0 0.0
    %2477 = vmatpush.msra.mxu0 0.0
    %2478 = vmatpush.msra.mxu0 0.0
    %2479 = vmatpush.msra.mxu0 0.0
    %2480 = vmatpush.msra.mxu0 0.0
    %2481 = vmatpush.msra.mxu0 0.0
    %2482 = vmatpush.msra.mxu0 0.0
    %2483 = vmatpush.msra.mxu0 0.0
    %2484 = vmatpush.msra.mxu0 0.0
    %2485 = vmatpush.msra.mxu0 0.0
    %2486 = vmatpush.msra.mxu0 0.0
    %2487 = vmatpush.msra.mxu0 0.0
    %2488 = vmatpush.msra.mxu0 %v2468
    %2489 = vmatmul.f32.gmra.mxu0 %v2471
    %v2490 = vpop.f32.mrf.mxu0
    %v2491 = vadd.f32 0.0, %v2490
    %2492 = vdwg.mxu0
    %2493 = vrot.lane.b32.xlu0 %v1926, 64
    %v2494 = vpop.permute.xlu0 %2493
    %v2497 = vsel %vm150, %v2321, 0
    %2499 = vmatpush.msra.mxu0 0.0
    %2500 = vmatpush.msra.mxu0 0.0
    %2501 = vmatpush.msra.mxu0 0.0
    %2502 = vmatpush.msra.mxu0 0.0
    %2503 = vmatpush.msra.mxu0 0.0
    %2504 = vmatpush.msra.mxu0 0.0
    %2505 = vmatpush.msra.mxu0 0.0
    %2506 = vmatpush.msra.mxu0 0.0
    %2507 = vmatpush.msra.mxu0 0.0
    %2508 = vmatpush.msra.mxu0 0.0
    %2509 = vmatpush.msra.mxu0 0.0
    %2510 = vmatpush.msra.mxu0 0.0
    %2511 = vmatpush.msra.mxu0 0.0
    %2512 = vmatpush.msra.mxu0 0.0
    %2513 = vmatpush.msra.mxu0 0.0
    %2514 = vmatpush.msra.mxu0 %v2494
    %2515 = vmatmul.f32.gmra.mxu0 %v2497
    %v2516 = vpop.f32.mrf.mxu0
    %v2517 = vadd.f32 0.0, %v2516
    %2518 = vdwg.mxu0
    %2519 = vrot.lane.b32.xlu0 %v1928, 64
    %v2520 = vpop.permute.xlu0 %2519
    %v2523 = vsel %vm150, %v2336, 0
    %2525 = vmatpush.msra.mxu0 0.0
    %2526 = vmatpush.msra.mxu0 0.0
    %2527 = vmatpush.msra.mxu0 0.0
    %2528 = vmatpush.msra.mxu0 0.0
    %2529 = vmatpush.msra.mxu0 0.0
    %2530 = vmatpush.msra.mxu0 0.0
    %2531 = vmatpush.msra.mxu0 0.0
    %2532 = vmatpush.msra.mxu0 0.0
    %2533 = vmatpush.msra.mxu0 0.0
    %2534 = vmatpush.msra.mxu0 0.0
    %2535 = vmatpush.msra.mxu0 0.0
    %2536 = vmatpush.msra.mxu0 0.0
    %2537 = vmatpush.msra.mxu0 0.0
    %2538 = vmatpush.msra.mxu0 0.0
    %2539 = vmatpush.msra.mxu0 0.0
    %2540 = vmatpush.msra.mxu0 %v2520
    %2541 = vmatmul.f32.gmra.mxu0 %v2523
    %v2542 = vpop.f32.mrf.mxu0
    %v2543 = vadd.f32 0.0, %v2542
    %2544 = vdwg.mxu0
    %2545 = vrot.lane.b32.xlu0 %v2246, 8
    %v2546 = vpop.permute.xlu0 %2545
    %2548 = vrot.lane.b32.xlu0 %v2261, 16
    %v2549 = vpop.permute.xlu0 %2548
    %2551 = vrot.lane.b32.xlu0 %v2276, 24
    %v2552 = vpop.permute.xlu0 %2551
    %2554 = vrot.lane.b32.xlu0 %v2291, 32
    %v2555 = vpop.permute.xlu0 %2554
    %2557 = vrot.lane.b32.xlu0 %v2306, 40
    %v2558 = vpop.permute.xlu0 %2557
    %2560 = vrot.lane.b32.xlu0 %v2321, 48
    %v2561 = vpop.permute.xlu0 %2560
    %2563 = vrot.lane.b32.xlu0 %v2336, 56
    %v2564 = vpop.permute.xlu0 %2563
    %v2566 = vsel %vm150, %v2231, %v2546
    %v2567 = vsel %vm787, %v2566, %v2549
    %v2568 = vsel %vm789, %v2567, %v2552
    %v2569 = vsel %vm92, %v2568, %v2555
    %v2570 = vsel %vm792, %v2569, %v2558
    %v2571 = vsel %vm794, %v2570, %v2561
    %v2572 = vsel %vm796, %v2571, %v2564
    %2574 = vrot.lane.b32.xlu0 %v2387, 8
    %v2575 = vpop.permute.xlu0 %2574
    %2578 = vrot.lane.b32.xlu0 %v2413, 16
    %v2579 = vpop.permute.xlu0 %2578
    %2582 = vrot.lane.b32.xlu0 %v2439, 24
    %v2583 = vpop.permute.xlu0 %2582
    %v2585 = vsel %vm150, %v2361, %v2575
    %v2586 = vsel %vm787, %v2585, %v2579
    %v2587 = vsel %vm789, %v2586, %v2583
    %2589 = vrot.lane.b32.xlu0 %v2491, 8
    %v2590 = vpop.permute.xlu0 %2589
    %2593 = vrot.lane.b32.xlu0 %v2517, 16
    %v2594 = vpop.permute.xlu0 %2593
    %2597 = vrot.lane.b32.xlu0 %v2543, 24
    %v2598 = vpop.permute.xlu0 %2597
    %v2600 = vsel %vm150, %v2465, %v2590
    %v2601 = vsel %vm787, %v2600, %v2594
    %v2602 = vsel %vm789, %v2601, %v2598
    %v2603 = vperm.slane %v1878, 0
    %v2605 = vsel %vm92, %v2587, 0
    %v2608 = vsel %vm92, %v2602, 0
    %2610 = vmatpush.msra.mxu0 0.0
    %2611 = vmatpush.msra.mxu0 0.0
    %2612 = vmatpush.msra.mxu0 0.0
    %2613 = vmatpush.msra.mxu0 0.0
    %2614 = vmatpush.msra.mxu0 0.0
    %2615 = vmatpush.msra.mxu0 0.0
    %2616 = vmatpush.msra.mxu0 0.0
    %2617 = vmatpush.msra.mxu0 0.0
    %2618 = vmatpush.msra.mxu0 0.0
    %2619 = vmatpush.msra.mxu0 0.0
    %2620 = vmatpush.msra.mxu0 0.0
    %2621 = vmatpush.msra.mxu0 0.0
    %2622 = vmatpush.msra.mxu0 %v1875
    %2623 = vmatpush.msra.mxu0 %v1874
    %2624 = vmatpush.msra.mxu0 %v1873
    %2625 = vmatpush.msra.mxu0 %v1872
    %2626 = vmatmul.f32.gmra.mxu0 %v2605
    %v2627 = vpop.f32.mrf.mxu0
    %v2628 = vadd.f32 %v2603, %v2627
    %2629 = vmatmul.f32.gmra.mxu0 %v2608
    %v2630 = vpop.f32.mrf.mxu0
    %v2631 = vadd.f32 %v2603, %v2630
    %2632 = vdwg.mxu0
    %v2633 = vadd.f32 %v1864, %v2628
    %v2634 = vadd.f32 %v1865, %v2631
    %v2635 = vld [vmem:[%s1876 + $0x2] sm:$0x1]
    %v2636 = vld [vmem:[%s1876 + $0x3] sm:$0x1]
    %v2637 = vsel %vm92, %v2633, 0.0
    %2638 = vadd.xlane.f32.xlu0 %v2637
    %v2639 = vpop.xlane.xlu0 %2638
    %v2640 = vsel %vm92, %v2634, 0.0
    %2641 = vadd.xlane.f32.xlu0 %v2640
    %v2642 = vpop.xlane.xlu0 %2641
    %v2643 = vmul.f32 %v2639, %v874
    %v2644 = vmul.f32 %v2642, %v874
    %v2645 = vsub.f32 %v2633, %v2643
    %v2646 = vsub.f32 %v2634, %v2644
    %v2647 = vmul.f32 %v2645, %v2645
    %v2648 = vmul.f32 %v2646, %v2646
    %v2649 = vsel %vm92, %v2647, 0.0
    %2650 = vadd.xlane.f32.xlu0 %v2649
    %v2651 = vpop.xlane.xlu0 %2650
    %v2652 = vsel %vm92, %v2648, 0.0
    %2653 = vadd.xlane.f32.xlu0 %v2652
    %v2654 = vpop.xlane.xlu0 %2653
    %v2655 = vmul.f32 %v2651, %v874
    %v2656 = vmul.f32 %v2654, %v874
    %v2657 = vadd.f32 %v2655, 1e-05
    %v2658 = vadd.f32 %v2656, 1e-05
    %v2659 = vrsqrt.pop %v2657
    %v2660 = vmul.f32 %v2659, %v2657
    %v2661 = vmul.f32 %v2660, %v2659
    %v2662 = vmul.f32 0.5, %v2661
    %v2663 = vsub.f32 1.5, %v2662
    %v2664 = vmul.f32 %v2659, %v2663
    %vm2665 = vweird.f32 %v2657
    %vm2666 = vweird.f32 %v2659
    %vm2667 = vmor %vm2665, %vm2666
    %v2668 = vsel %vm2667, %v2659, %v2664
    %v2669 = vrsqrt.pop %v2658
    %v2670 = vmul.f32 %v2669, %v2658
    %v2671 = vmul.f32 %v2670, %v2669
    %v2672 = vmul.f32 0.5, %v2671
    %v2673 = vsub.f32 1.5, %v2672
    %v2674 = vmul.f32 %v2669, %v2673
    %vm2675 = vweird.f32 %v2658
    %vm2676 = vweird.f32 %v2669
    %vm2677 = vmor %vm2675, %vm2676
    %v2678 = vsel %vm2677, %v2669, %v2674
    %v2679 = vmul.f32 %v2645, %v2668
    %v2680 = vmul.f32 %v2646, %v2678
    %v2681 = vperm.slane %v2635, 0
    %v2682 = vmul.f32 %v2679, %v2681
    %v2683 = vmul.f32 %v2680, %v2681
    %v2684 = vperm.slane %v2636, 0
    %v2685 = vadd.f32 %v2682, %v2684
    %v2686 = vadd.f32 %v2683, %v2684
    %v2687 = vld [vmem:[%s1876] sm:$0x1]
    %v2688 = vperm.slane %v2687, 0
    %v2690 = vsel %vm92, %v2685, 0
    %v2693 = vsel %vm92, %v2686, 0
    %2695 = vmatpush.msra.mxu0 0.0
    %2696 = vmatpush.msra.mxu0 0.0
    %2697 = vmatpush.msra.mxu0 0.0
    %2698 = vmatpush.msra.mxu0 0.0
    %2699 = vmatpush.msra.mxu0 0.0
    %2700 = vmatpush.msra.mxu0 0.0
    %2701 = vmatpush.msra.mxu0 0.0
    %2702 = vmatpush.msra.mxu0 0.0
    %2703 = vmatpush.msra.mxu0 0.0
    %2704 = vmatpush.msra.mxu0 0.0
    %2705 = vmatpush.msra.mxu0 0.0
    %2706 = vmatpush.msra.mxu0 0.0
    %2707 = vmatpush.msra.mxu0 %v1870
    %2708 = vmatpush.msra.mxu0 %v1869
    %2709 = vmatpush.msra.mxu0 %v1868
    %2710 = vmatpush.msra.mxu0 %v1867
    %2711 = vmatmul.f32.gmra.mxu0 %v2690
    %v2712 = vpop.f32.mrf.mxu0
    %v2713 = vadd.f32 %v2688, %v2712
    %2714 = vmatmul.f32.gmra.mxu0 %v2693
    %v2715 = vpop.f32.mrf.mxu0
    %v2716 = vadd.f32 %v2688, %v2715
    %2717 = vdwg.mxu0
    %2719 = vrot.lane.b32.xlu0 %v2713, 120
    %v2720 = vpop.permute.xlu0 %2719
    %2721 = vrot.lane.b32.xlu0 %v2713, 112
    %v2722 = vpop.permute.xlu0 %2721
    %2723 = vrot.lane.b32.xlu0 %v2713, 104
    %v2724 = vpop.permute.xlu0 %2723
    %2726 = vrot.lane.b32.xlu0 %v2716, 120
    %v2727 = vpop.permute.xlu0 %2726
    %2728 = vrot.lane.b32.xlu0 %v2716, 112
    %v2729 = vpop.permute.xlu0 %2728
    %2730 = vrot.lane.b32.xlu0 %v2716, 104
    %v2731 = vpop.permute.xlu0 %2730
    %2733 = vrot.lane.b32.xlu0 %v1910, 120
    %v2734 = vpop.permute.xlu0 %2733
    %2735 = vrot.lane.b32.xlu0 %v1910, 112
    %v2736 = vpop.permute.xlu0 %2735
    %2737 = vrot.lane.b32.xlu0 %v1910, 104
    %v2738 = vpop.permute.xlu0 %2737
    %2740 = vrot.lane.b32.xlu0 %v1913, 120
    %v2741 = vpop.permute.xlu0 %2740
    %2742 = vrot.lane.b32.xlu0 %v1913, 112
    %v2743 = vpop.permute.xlu0 %2742
    %2744 = vrot.lane.b32.xlu0 %v1913, 104
    %v2745 = vpop.permute.xlu0 %2744
    %2746 = vrot.lane.b32.xlu0 %v1910, 96
    %v2747 = vpop.permute.xlu0 %2746
    %v2748 = vsel %vm150, %v2713, 0
    %v2750 = vsel %vm150, %v2747, 0
    %2752 = vmatpush.xpose.msra.mxu0 0.0
    %2753 = vmatpush.xpose.msra.mxu0 0.0
    %2754 = vmatpush.xpose.msra.mxu0 0.0
    %2755 = vmatpush.xpose.msra.mxu0 0.0
    %2756 = vmatpush.xpose.msra.mxu0 0.0
    %2757 = vmatpush.xpose.msra.mxu0 0.0
    %2758 = vmatpush.xpose.msra.mxu0 0.0
    %2759 = vmatpush.xpose.msra.mxu0 0.0
    %2760 = vmatpush.xpose.msra.mxu0 0.0
    %2761 = vmatpush.xpose.msra.mxu0 0.0
    %2762 = vmatpush.xpose.msra.mxu0 0.0
    %2763 = vmatpush.xpose.msra.mxu0 0.0
    %2764 = vmatpush.xpose.msra.mxu0 0.0
    %2765 = vmatpush.xpose.msra.mxu0 0.0
    %2766 = vmatpush.xpose.msra.mxu0 0.0
    %2767 = vmatpush.xpose.msra.mxu0 %v2750
    %2768 = vmatmul.f32.gmra.mxu0 %v2748
    %v2769 = vpop.f32.mrf.mxu0
    %v2770 = vadd.f32 0.0, %v2769
    %2771 = vdwg.mxu0
    %2772 = vrot.lane.b32.xlu0 %v2734, 96
    %v2773 = vpop.permute.xlu0 %2772
    %v2774 = vsel %vm150, %v2720, 0
    %v2776 = vsel %vm150, %v2773, 0
    %2778 = vmatpush.xpose.msra.mxu0 0.0
    %2779 = vmatpush.xpose.msra.mxu0 0.0
    %2780 = vmatpush.xpose.msra.mxu0 0.0
    %2781 = vmatpush.xpose.msra.mxu0 0.0
    %2782 = vmatpush.xpose.msra.mxu0 0.0
    %2783 = vmatpush.xpose.msra.mxu0 0.0
    %2784 = vmatpush.xpose.msra.mxu0 0.0
    %2785 = vmatpush.xpose.msra.mxu0 0.0
    %2786 = vmatpush.xpose.msra.mxu0 0.0
    %2787 = vmatpush.xpose.msra.mxu0 0.0
    %2788 = vmatpush.xpose.msra.mxu0 0.0
    %2789 = vmatpush.xpose.msra.mxu0 0.0
    %2790 = vmatpush.xpose.msra.mxu0 0.0
    %2791 = vmatpush.xpose.msra.mxu0 0.0
    %2792 = vmatpush.xpose.msra.mxu0 0.0
    %2793 = vmatpush.xpose.msra.mxu0 %v2776
    %2794 = vmatmul.f32.gmra.mxu0 %v2774
    %v2795 = vpop.f32.mrf.mxu0
    %v2796 = vadd.f32 0.0, %v2795
    %2797 = vdwg.mxu0
    %2798 = vrot.lane.b32.xlu0 %v2736, 96
    %v2799 = vpop.permute.xlu0 %2798
    %v2800 = vsel %vm150, %v2722, 0
    %v2802 = vsel %vm150, %v2799, 0
    %2804 = vmatpush.xpose.msra.mxu0 0.0
    %2805 = vmatpush.xpose.msra.mxu0 0.0
    %2806 = vmatpush.xpose.msra.mxu0 0.0
    %2807 = vmatpush.xpose.msra.mxu0 0.0
    %2808 = vmatpush.xpose.msra.mxu0 0.0
    %2809 = vmatpush.xpose.msra.mxu0 0.0
    %2810 = vmatpush.xpose.msra.mxu0 0.0
    %2811 = vmatpush.xpose.msra.mxu0 0.0
    %2812 = vmatpush.xpose.msra.mxu0 0.0
    %2813 = vmatpush.xpose.msra.mxu0 0.0
    %2814 = vmatpush.xpose.msra.mxu0 0.0
    %2815 = vmatpush.xpose.msra.mxu0 0.0
    %2816 = vmatpush.xpose.msra.mxu0 0.0
    %2817 = vmatpush.xpose.msra.mxu0 0.0
    %2818 = vmatpush.xpose.msra.mxu0 0.0
    %2819 = vmatpush.xpose.msra.mxu0 %v2802
    %2820 = vmatmul.f32.gmra.mxu0 %v2800
    %v2821 = vpop.f32.mrf.mxu0
    %v2822 = vadd.f32 0.0, %v2821
    %2823 = vdwg.mxu0
    %2824 = vrot.lane.b32.xlu0 %v2738, 96
    %v2825 = vpop.permute.xlu0 %2824
    %v2826 = vsel %vm150, %v2724, 0
    %v2828 = vsel %vm150, %v2825, 0
    %2830 = vmatpush.xpose.msra.mxu0 0.0
    %2831 = vmatpush.xpose.msra.mxu0 0.0
    %2832 = vmatpush.xpose.msra.mxu0 0.0
    %2833 = vmatpush.xpose.msra.mxu0 0.0
    %2834 = vmatpush.xpose.msra.mxu0 0.0
    %2835 = vmatpush.xpose.msra.mxu0 0.0
    %2836 = vmatpush.xpose.msra.mxu0 0.0
    %2837 = vmatpush.xpose.msra.mxu0 0.0
    %2838 = vmatpush.xpose.msra.mxu0 0.0
    %2839 = vmatpush.xpose.msra.mxu0 0.0
    %2840 = vmatpush.xpose.msra.mxu0 0.0
    %2841 = vmatpush.xpose.msra.mxu0 0.0
    %2842 = vmatpush.xpose.msra.mxu0 0.0
    %2843 = vmatpush.xpose.msra.mxu0 0.0
    %2844 = vmatpush.xpose.msra.mxu0 0.0
    %2845 = vmatpush.xpose.msra.mxu0 %v2828
    %2846 = vmatmul.f32.gmra.mxu0 %v2826
    %v2847 = vpop.f32.mrf.mxu0
    %v2848 = vadd.f32 0.0, %v2847
    %2849 = vdwg.mxu0
    %2850 = vrot.lane.b32.xlu0 %v1913, 96
    %v2851 = vpop.permute.xlu0 %2850
    %v2852 = vsel %vm150, %v2716, 0
    %v2854 = vsel %vm150, %v2851, 0
    %2856 = vmatpush.xpose.msra.mxu0 0.0
    %2857 = vmatpush.xpose.msra.mxu0 0.0
    %2858 = vmatpush.xpose.msra.mxu0 0.0
    %2859 = vmatpush.xpose.msra.mxu0 0.0
    %2860 = vmatpush.xpose.msra.mxu0 0.0
    %2861 = vmatpush.xpose.msra.mxu0 0.0
    %2862 = vmatpush.xpose.msra.mxu0 0.0
    %2863 = vmatpush.xpose.msra.mxu0 0.0
    %2864 = vmatpush.xpose.msra.mxu0 0.0
    %2865 = vmatpush.xpose.msra.mxu0 0.0
    %2866 = vmatpush.xpose.msra.mxu0 0.0
    %2867 = vmatpush.xpose.msra.mxu0 0.0
    %2868 = vmatpush.xpose.msra.mxu0 0.0
    %2869 = vmatpush.xpose.msra.mxu0 0.0
    %2870 = vmatpush.xpose.msra.mxu0 0.0
    %2871 = vmatpush.xpose.msra.mxu0 %v2854
    %2872 = vmatmul.f32.gmra.mxu0 %v2852
    %v2873 = vpop.f32.mrf.mxu0
    %v2874 = vadd.f32 0.0, %v2873
    %2875 = vdwg.mxu0
    %2876 = vrot.lane.b32.xlu0 %v2741, 96
    %v2877 = vpop.permute.xlu0 %2876
    %v2878 = vsel %vm150, %v2727, 0
    %v2880 = vsel %vm150, %v2877, 0
    %2882 = vmatpush.xpose.msra.mxu0 0.0
    %2883 = vmatpush.xpose.msra.mxu0 0.0
    %2884 = vmatpush.xpose.msra.mxu0 0.0
    %2885 = vmatpush.xpose.msra.mxu0 0.0
    %2886 = vmatpush.xpose.msra.mxu0 0.0
    %2887 = vmatpush.xpose.msra.mxu0 0.0
    %2888 = vmatpush.xpose.msra.mxu0 0.0
    %2889 = vmatpush.xpose.msra.mxu0 0.0
    %2890 = vmatpush.xpose.msra.mxu0 0.0
    %2891 = vmatpush.xpose.msra.mxu0 0.0
    %2892 = vmatpush.xpose.msra.mxu0 0.0
    %2893 = vmatpush.xpose.msra.mxu0 0.0
    %2894 = vmatpush.xpose.msra.mxu0 0.0
    %2895 = vmatpush.xpose.msra.mxu0 0.0
    %2896 = vmatpush.xpose.msra.mxu0 0.0
    %2897 = vmatpush.xpose.msra.mxu0 %v2880
    %2898 = vmatmul.f32.gmra.mxu0 %v2878
    %v2899 = vpop.f32.mrf.mxu0
    %v2900 = vadd.f32 0.0, %v2899
    %2901 = vdwg.mxu0
    %2902 = vrot.lane.b32.xlu0 %v2743, 96
    %v2903 = vpop.permute.xlu0 %2902
    %v2904 = vsel %vm150, %v2729, 0
    %v2906 = vsel %vm150, %v2903, 0
    %2908 = vmatpush.xpose.msra.mxu0 0.0
    %2909 = vmatpush.xpose.msra.mxu0 0.0
    %2910 = vmatpush.xpose.msra.mxu0 0.0
    %2911 = vmatpush.xpose.msra.mxu0 0.0
    %2912 = vmatpush.xpose.msra.mxu0 0.0
    %2913 = vmatpush.xpose.msra.mxu0 0.0
    %2914 = vmatpush.xpose.msra.mxu0 0.0
    %2915 = vmatpush.xpose.msra.mxu0 0.0
    %2916 = vmatpush.xpose.msra.mxu0 0.0
    %2917 = vmatpush.xpose.msra.mxu0 0.0
    %2918 = vmatpush.xpose.msra.mxu0 0.0
    %2919 = vmatpush.xpose.msra.mxu0 0.0
    %2920 = vmatpush.xpose.msra.mxu0 0.0
    %2921 = vmatpush.xpose.msra.mxu0 0.0
    %2922 = vmatpush.xpose.msra.mxu0 0.0
    %2923 = vmatpush.xpose.msra.mxu0 %v2906
    %2924 = vmatmul.f32.gmra.mxu0 %v2904
    %v2925 = vpop.f32.mrf.mxu0
    %v2926 = vadd.f32 0.0, %v2925
    %2927 = vdwg.mxu0
    %2928 = vrot.lane.b32.xlu0 %v2745, 96
    %v2929 = vpop.permute.xlu0 %2928
    %v2930 = vsel %vm150, %v2731, 0
    %v2932 = vsel %vm150, %v2929, 0
    %2934 = vmatpush.xpose.msra.mxu0 0.0
    %2935 = vmatpush.xpose.msra.mxu0 0.0
    %2936 = vmatpush.xpose.msra.mxu0 0.0
    %2937 = vmatpush.xpose.msra.mxu0 0.0
    %2938 = vmatpush.xpose.msra.mxu0 0.0
    %2939 = vmatpush.xpose.msra.mxu0 0.0
    %2940 = vmatpush.xpose.msra.mxu0 0.0
    %2941 = vmatpush.xpose.msra.mxu0 0.0
    %2942 = vmatpush.xpose.msra.mxu0 0.0
    %2943 = vmatpush.xpose.msra.mxu0 0.0
    %2944 = vmatpush.xpose.msra.mxu0 0.0
    %2945 = vmatpush.xpose.msra.mxu0 0.0
    %2946 = vmatpush.xpose.msra.mxu0 0.0
    %2947 = vmatpush.xpose.msra.mxu0 0.0
    %2948 = vmatpush.xpose.msra.mxu0 0.0
    %2949 = vmatpush.xpose.msra.mxu0 %v2932
    %2950 = vmatmul.f32.gmra.mxu0 %v2930
    %v2951 = vpop.f32.mrf.mxu0
    %v2952 = vadd.f32 0.0, %v2951
    %2953 = vdwg.mxu0
    %v2954 = vmul.f32 %v2770, 0.35355338
    %v2955 = vmul.f32 %v2796, 0.35355338
    %v2956 = vmul.f32 %v2822, 0.35355338
    %v2957 = vmul.f32 %v2848, 0.35355338
    %v2958 = vmul.f32 %v2874, 0.35355338
    %v2959 = vmul.f32 %v2900, 0.35355338
    %v2960 = vmul.f32 %v2926, 0.35355338
    %v2961 = vmul.f32 %v2952, 0.35355338
    %v2962 = vsel %vm150, %v2954, -inf
    %2963 = vmax.xlane.f32.xlu0 %v2962
    %v2964 = vpop.xlane.xlu0 %2963
    %v2965 = vsel %vm150, %v2955, -inf
    %2966 = vmax.xlane.f32.xlu0 %v2965
    %v2967 = vpop.xlane.xlu0 %2966
    %v2968 = vsel %vm150, %v2956, -inf
    %2969 = vmax.xlane.f32.xlu0 %v2968
    %v2970 = vpop.xlane.xlu0 %2969
    %v2971 = vsel %vm150, %v2957, -inf
    %2972 = vmax.xlane.f32.xlu0 %v2971
    %v2973 = vpop.xlane.xlu0 %2972
    %v2974 = vsel %vm150, %v2958, -inf
    %2975 = vmax.xlane.f32.xlu0 %v2974
    %v2976 = vpop.xlane.xlu0 %2975
    %v2977 = vsel %vm150, %v2959, -inf
    %2978 = vmax.xlane.f32.xlu0 %v2977
    %v2979 = vpop.xlane.xlu0 %2978
    %v2980 = vsel %vm150, %v2960, -inf
    %2981 = vmax.xlane.f32.xlu0 %v2980
    %v2982 = vpop.xlane.xlu0 %2981
    %v2983 = vsel %vm150, %v2961, -inf
    %2984 = vmax.xlane.f32.xlu0 %v2983
    %v2985 = vpop.xlane.xlu0 %2984
    %v2986 = vsub.f32 %v2954, %v2964
    %v2987 = vsub.f32 %v2955, %v2967
    %v2988 = vsub.f32 %v2956, %v2970
    %v2989 = vsub.f32 %v2957, %v2973
    %v2990 = vsub.f32 %v2958, %v2976
    %v2991 = vsub.f32 %v2959, %v2979
    %v2992 = vsub.f32 %v2960, %v2982
    %v2993 = vsub.f32 %v2961, %v2985
    %v2994 = vmul.f32 %v2986, 1.442695
    %v2995 = vpow.pop %v2994
    %v2996 = vmul.f32 %v2987, 1.442695
    %v2997 = vpow.pop %v2996
    %v2998 = vmul.f32 %v2988, 1.442695
    %v2999 = vpow.pop %v2998
    %v3000 = vmul.f32 %v2989, 1.442695
    %v3001 = vpow.pop %v3000
    %v3002 = vmul.f32 %v2990, 1.442695
    %v3003 = vpow.pop %v3002
    %v3004 = vmul.f32 %v2991, 1.442695
    %v3005 = vpow.pop %v3004
    %v3006 = vmul.f32 %v2992, 1.442695
    %v3007 = vpow.pop %v3006
    %v3008 = vmul.f32 %v2993, 1.442695
    %v3009 = vpow.pop %v3008
    %v3010 = vsel %vm150, %v2995, 0.0
    %3011 = vadd.xlane.f32.xlu0 %v3010
    %v3012 = vpop.xlane.xlu0 %3011
    %v3013 = vsel %vm150, %v2997, 0.0
    %3014 = vadd.xlane.f32.xlu0 %v3013
    %v3015 = vpop.xlane.xlu0 %3014
    %v3016 = vsel %vm150, %v2999, 0.0
    %3017 = vadd.xlane.f32.xlu0 %v3016
    %v3018 = vpop.xlane.xlu0 %3017
    %v3019 = vsel %vm150, %v3001, 0.0
    %3020 = vadd.xlane.f32.xlu0 %v3019
    %v3021 = vpop.xlane.xlu0 %3020
    %v3022 = vsel %vm150, %v3003, 0.0
    %3023 = vadd.xlane.f32.xlu0 %v3022
    %v3024 = vpop.xlane.xlu0 %3023
    %v3025 = vsel %vm150, %v3005, 0.0
    %3026 = vadd.xlane.f32.xlu0 %v3025
    %v3027 = vpop.xlane.xlu0 %3026
    %v3028 = vsel %vm150, %v3007, 0.0
    %3029 = vadd.xlane.f32.xlu0 %v3028
    %v3030 = vpop.xlane.xlu0 %3029
    %v3031 = vsel %vm150, %v3009, 0.0
    %3032 = vadd.xlane.f32.xlu0 %v3031
    %v3033 = vpop.xlane.xlu0 %3032
    %v3034 = vrcp.pop %v3012
    %v3035 = vmul.f32 %v3012, %v3034
    %v3036 = vsub.f32 1.0, %v3035
    %v3037 = vmul.f32 %v3034, %v3036
    %v3038 = vadd.f32 %v3034, %v3037
    %vm3039 = vweird.f32 %v3012
    %vm3040 = vweird.f32 %v3034
    %vm3041 = vmor %vm3039, %vm3040
    %v3042 = vsel %vm3041, %v3034, %v3038
    %v3043 = vand.u32 2147483647, %v3012
    %vm3044 = vcmp.eq.f32.partialorder %v3043, 8.507059e+37
    %v3045 = vand.u32 %v3012, 2147483648
    %v3046 = vor.u32 1.1754944e-38, %v3045
    %v3047 = vsel %vm3044, %v3046, %v3042
    %v3048 = vmul.f32 %v2995, %v3047
    %v3049 = vrcp.pop %v3015
    %v3050 = vmul.f32 %v3015, %v3049
    %v3051 = vsub.f32 1.0, %v3050
    %v3052 = vmul.f32 %v3049, %v3051
    %v3053 = vadd.f32 %v3049, %v3052
    %vm3054 = vweird.f32 %v3015
    %vm3055 = vweird.f32 %v3049
    %vm3056 = vmor %vm3054, %vm3055
    %v3057 = vsel %vm3056, %v3049, %v3053
    %v3058 = vand.u32 2147483647, %v3015
    %vm3059 = vcmp.eq.f32.partialorder %v3058, 8.507059e+37
    %v3060 = vand.u32 %v3015, 2147483648
    %v3061 = vor.u32 1.1754944e-38, %v3060
    %v3062 = vsel %vm3059, %v3061, %v3057
    %v3063 = vmul.f32 %v2997, %v3062
    %v3064 = vrcp.pop %v3018
    %v3065 = vmul.f32 %v3018, %v3064
    %v3066 = vsub.f32 1.0, %v3065
    %v3067 = vmul.f32 %v3064, %v3066
    %v3068 = vadd.f32 %v3064, %v3067
    %vm3069 = vweird.f32 %v3018
    %vm3070 = vweird.f32 %v3064
    %vm3071 = vmor %vm3069, %vm3070
    %v3072 = vsel %vm3071, %v3064, %v3068
    %v3073 = vand.u32 2147483647, %v3018
    %vm3074 = vcmp.eq.f32.partialorder %v3073, 8.507059e+37
    %v3075 = vand.u32 %v3018, 2147483648
    %v3076 = vor.u32 1.1754944e-38, %v3075
    %v3077 = vsel %vm3074, %v3076, %v3072
    %v3078 = vmul.f32 %v2999, %v3077
    %v3079 = vrcp.pop %v3021
    %v3080 = vmul.f32 %v3021, %v3079
    %v3081 = vsub.f32 1.0, %v3080
    %v3082 = vmul.f32 %v3079, %v3081
    %v3083 = vadd.f32 %v3079, %v3082
    %vm3084 = vweird.f32 %v3021
    %vm3085 = vweird.f32 %v3079
    %vm3086 = vmor %vm3084, %vm3085
    %v3087 = vsel %vm3086, %v3079, %v3083
    %v3088 = vand.u32 2147483647, %v3021
    %vm3089 = vcmp.eq.f32.partialorder %v3088, 8.507059e+37
    %v3090 = vand.u32 %v3021, 2147483648
    %v3091 = vor.u32 1.1754944e-38, %v3090
    %v3092 = vsel %vm3089, %v3091, %v3087
    %v3093 = vmul.f32 %v3001, %v3092
    %v3094 = vrcp.pop %v3024
    %v3095 = vmul.f32 %v3024, %v3094
    %v3096 = vsub.f32 1.0, %v3095
    %v3097 = vmul.f32 %v3094, %v3096
    %v3098 = vadd.f32 %v3094, %v3097
    %vm3099 = vweird.f32 %v3024
    %vm3100 = vweird.f32 %v3094
    %vm3101 = vmor %vm3099, %vm3100
    %v3102 = vsel %vm3101, %v3094, %v3098
    %v3103 = vand.u32 2147483647, %v3024
    %vm3104 = vcmp.eq.f32.partialorder %v3103, 8.507059e+37
    %v3105 = vand.u32 %v3024, 2147483648
    %v3106 = vor.u32 1.1754944e-38, %v3105
    %v3107 = vsel %vm3104, %v3106, %v3102
    %v3108 = vmul.f32 %v3003, %v3107
    %v3109 = vrcp.pop %v3027
    %v3110 = vmul.f32 %v3027, %v3109
    %v3111 = vsub.f32 1.0, %v3110
    %v3112 = vmul.f32 %v3109, %v3111
    %v3113 = vadd.f32 %v3109, %v3112
    %vm3114 = vweird.f32 %v3027
    %vm3115 = vweird.f32 %v3109
    %vm3116 = vmor %vm3114, %vm3115
    %v3117 = vsel %vm3116, %v3109, %v3113
    %v3118 = vand.u32 2147483647, %v3027
    %vm3119 = vcmp.eq.f32.partialorder %v3118, 8.507059e+37
    %v3120 = vand.u32 %v3027, 2147483648
    %v3121 = vor.u32 1.1754944e-38, %v3120
    %v3122 = vsel %vm3119, %v3121, %v3117
    %v3123 = vmul.f32 %v3005, %v3122
    %v3124 = vrcp.pop %v3030
    %v3125 = vmul.f32 %v3030, %v3124
    %v3126 = vsub.f32 1.0, %v3125
    %v3127 = vmul.f32 %v3124, %v3126
    %v3128 = vadd.f32 %v3124, %v3127
    %vm3129 = vweird.f32 %v3030
    %vm3130 = vweird.f32 %v3124
    %vm3131 = vmor %vm3129, %vm3130
    %v3132 = vsel %vm3131, %v3124, %v3128
    %v3133 = vand.u32 2147483647, %v3030
    %vm3134 = vcmp.eq.f32.partialorder %v3133, 8.507059e+37
    %v3135 = vand.u32 %v3030, 2147483648
    %v3136 = vor.u32 1.1754944e-38, %v3135
    %v3137 = vsel %vm3134, %v3136, %v3132
    %v3138 = vmul.f32 %v3007, %v3137
    %v3139 = vrcp.pop %v3033
    %v3140 = vmul.f32 %v3033, %v3139
    %v3141 = vsub.f32 1.0, %v3140
    %v3142 = vmul.f32 %v3139, %v3141
    %v3143 = vadd.f32 %v3139, %v3142
    %vm3144 = vweird.f32 %v3033
    %vm3145 = vweird.f32 %v3139
    %vm3146 = vmor %vm3144, %vm3145
    %v3147 = vsel %vm3146, %v3139, %v3143
    %v3148 = vand.u32 2147483647, %v3033
    %vm3149 = vcmp.eq.f32.partialorder %v3148, 8.507059e+37
    %v3150 = vand.u32 %v3033, 2147483648
    %v3151 = vor.u32 1.1754944e-38, %v3150
    %v3152 = vsel %vm3149, %v3151, %v3147
    %v3153 = vmul.f32 %v3009, %v3152
    %3154 = vrot.lane.b32.xlu0 %v1910, 64
    %v3155 = vpop.permute.xlu0 %3154
    %v3158 = vsel %vm150, %v3048, 0
    %3160 = vmatpush.msra.mxu0 0.0
    %3161 = vmatpush.msra.mxu0 0.0
    %3162 = vmatpush.msra.mxu0 0.0
    %3163 = vmatpush.msra.mxu0 0.0
    %3164 = vmatpush.msra.mxu0 0.0
    %3165 = vmatpush.msra.mxu0 0.0
    %3166 = vmatpush.msra.mxu0 0.0
    %3167 = vmatpush.msra.mxu0 0.0
    %3168 = vmatpush.msra.mxu0 0.0
    %3169 = vmatpush.msra.mxu0 0.0
    %3170 = vmatpush.msra.mxu0 0.0
    %3171 = vmatpush.msra.mxu0 0.0
    %3172 = vmatpush.msra.mxu0 0.0
    %3173 = vmatpush.msra.mxu0 0.0
    %3174 = vmatpush.msra.mxu0 0.0
    %3175 = vmatpush.msra.mxu0 %v3155
    %3176 = vmatmul.f32.gmra.mxu0 %v3158
    %v3177 = vpop.f32.mrf.mxu0
    %v3178 = vadd.f32 0.0, %v3177
    %3179 = vdwg.mxu0
    %3180 = vrot.lane.b32.xlu0 %v2734, 64
    %v3181 = vpop.permute.xlu0 %3180
    %v3184 = vsel %vm150, %v3063, 0
    %3186 = vmatpush.msra.mxu0 0.0
    %3187 = vmatpush.msra.mxu0 0.0
    %3188 = vmatpush.msra.mxu0 0.0
    %3189 = vmatpush.msra.mxu0 0.0
    %3190 = vmatpush.msra.mxu0 0.0
    %3191 = vmatpush.msra.mxu0 0.0
    %3192 = vmatpush.msra.mxu0 0.0
    %3193 = vmatpush.msra.mxu0 0.0
    %3194 = vmatpush.msra.mxu0 0.0
    %3195 = vmatpush.msra.mxu0 0.0
    %3196 = vmatpush.msra.mxu0 0.0
    %3197 = vmatpush.msra.mxu0 0.0
    %3198 = vmatpush.msra.mxu0 0.0
    %3199 = vmatpush.msra.mxu0 0.0
    %3200 = vmatpush.msra.mxu0 0.0
    %3201 = vmatpush.msra.mxu0 %v3181
    %3202 = vmatmul.f32.gmra.mxu0 %v3184
    %v3203 = vpop.f32.mrf.mxu0
    %v3204 = vadd.f32 0.0, %v3203
    %3205 = vdwg.mxu0
    %3206 = vrot.lane.b32.xlu0 %v2736, 64
    %v3207 = vpop.permute.xlu0 %3206
    %v3210 = vsel %vm150, %v3078, 0
    %3212 = vmatpush.msra.mxu0 0.0
    %3213 = vmatpush.msra.mxu0 0.0
    %3214 = vmatpush.msra.mxu0 0.0
    %3215 = vmatpush.msra.mxu0 0.0
    %3216 = vmatpush.msra.mxu0 0.0
    %3217 = vmatpush.msra.mxu0 0.0
    %3218 = vmatpush.msra.mxu0 0.0
    %3219 = vmatpush.msra.mxu0 0.0
    %3220 = vmatpush.msra.mxu0 0.0
    %3221 = vmatpush.msra.mxu0 0.0
    %3222 = vmatpush.msra.mxu0 0.0
    %3223 = vmatpush.msra.mxu0 0.0
    %3224 = vmatpush.msra.mxu0 0.0
    %3225 = vmatpush.msra.mxu0 0.0
    %3226 = vmatpush.msra.mxu0 0.0
    %3227 = vmatpush.msra.mxu0 %v3207
    %3228 = vmatmul.f32.gmra.mxu0 %v3210
    %v3229 = vpop.f32.mrf.mxu0
    %v3230 = vadd.f32 0.0, %v3229
    %3231 = vdwg.mxu0
    %3232 = vrot.lane.b32.xlu0 %v2738, 64
    %v3233 = vpop.permute.xlu0 %3232
    %v3236 = vsel %vm150, %v3093, 0
    %3238 = vmatpush.msra.mxu0 0.0
    %3239 = vmatpush.msra.mxu0 0.0
    %3240 = vmatpush.msra.mxu0 0.0
    %3241 = vmatpush.msra.mxu0 0.0
    %3242 = vmatpush.msra.mxu0 0.0
    %3243 = vmatpush.msra.mxu0 0.0
    %3244 = vmatpush.msra.mxu0 0.0
    %3245 = vmatpush.msra.mxu0 0.0
    %3246 = vmatpush.msra.mxu0 0.0
    %3247 = vmatpush.msra.mxu0 0.0
    %3248 = vmatpush.msra.mxu0 0.0
    %3249 = vmatpush.msra.mxu0 0.0
    %3250 = vmatpush.msra.mxu0 0.0
    %3251 = vmatpush.msra.mxu0 0.0
    %3252 = vmatpush.msra.mxu0 0.0
    %3253 = vmatpush.msra.mxu0 %v3233
    %3254 = vmatmul.f32.gmra.mxu0 %v3236
    %v3255 = vpop.f32.mrf.mxu0
    %v3256 = vadd.f32 0.0, %v3255
    %3257 = vdwg.mxu0
    %3258 = vrot.lane.b32.xlu0 %v1913, 64
    %v3259 = vpop.permute.xlu0 %3258
    %v3262 = vsel %vm150, %v3108, 0
    %3264 = vmatpush.msra.mxu0 0.0
    %3265 = vmatpush.msra.mxu0 0.0
    %3266 = vmatpush.msra.mxu0 0.0
    %3267 = vmatpush.msra.mxu0 0.0
    %3268 = vmatpush.msra.mxu0 0.0
    %3269 = vmatpush.msra.mxu0 0.0
    %3270 = vmatpush.msra.mxu0 0.0
    %3271 = vmatpush.msra.mxu0 0.0
    %3272 = vmatpush.msra.mxu0 0.0
    %3273 = vmatpush.msra.mxu0 0.0
    %3274 = vmatpush.msra.mxu0 0.0
    %3275 = vmatpush.msra.mxu0 0.0
    %3276 = vmatpush.msra.mxu0 0.0
    %3277 = vmatpush.msra.mxu0 0.0
    %3278 = vmatpush.msra.mxu0 0.0
    %3279 = vmatpush.msra.mxu0 %v3259
    %3280 = vmatmul.f32.gmra.mxu0 %v3262
    %v3281 = vpop.f32.mrf.mxu0
    %v3282 = vadd.f32 0.0, %v3281
    %3283 = vdwg.mxu0
    %3284 = vrot.lane.b32.xlu0 %v2741, 64
    %v3285 = vpop.permute.xlu0 %3284
    %v3288 = vsel %vm150, %v3123, 0
    %3290 = vmatpush.msra.mxu0 0.0
    %3291 = vmatpush.msra.mxu0 0.0
    %3292 = vmatpush.msra.mxu0 0.0
    %3293 = vmatpush.msra.mxu0 0.0
    %3294 = vmatpush.msra.mxu0 0.0
    %3295 = vmatpush.msra.mxu0 0.0
    %3296 = vmatpush.msra.mxu0 0.0
    %3297 = vmatpush.msra.mxu0 0.0
    %3298 = vmatpush.msra.mxu0 0.0
    %3299 = vmatpush.msra.mxu0 0.0
    %3300 = vmatpush.msra.mxu0 0.0
    %3301 = vmatpush.msra.mxu0 0.0
    %3302 = vmatpush.msra.mxu0 0.0
    %3303 = vmatpush.msra.mxu0 0.0
    %3304 = vmatpush.msra.mxu0 0.0
    %3305 = vmatpush.msra.mxu0 %v3285
    %3306 = vmatmul.f32.gmra.mxu0 %v3288
    %v3307 = vpop.f32.mrf.mxu0
    %v3308 = vadd.f32 0.0, %v3307
    %3309 = vdwg.mxu0
    %3310 = vrot.lane.b32.xlu0 %v2743, 64
    %v3311 = vpop.permute.xlu0 %3310
    %v3314 = vsel %vm150, %v3138, 0
    %3316 = vmatpush.msra.mxu0 0.0
    %3317 = vmatpush.msra.mxu0 0.0
    %3318 = vmatpush.msra.mxu0 0.0
    %3319 = vmatpush.msra.mxu0 0.0
    %3320 = vmatpush.msra.mxu0 0.0
    %3321 = vmatpush.msra.mxu0 0.0
    %3322 = vmatpush.msra.mxu0 0.0
    %3323 = vmatpush.msra.mxu0 0.0
    %3324 = vmatpush.msra.mxu0 0.0
    %3325 = vmatpush.msra.mxu0 0.0
    %3326 = vmatpush.msra.mxu0 0.0
    %3327 = vmatpush.msra.mxu0 0.0
    %3328 = vmatpush.msra.mxu0 0.0
    %3329 = vmatpush.msra.mxu0 0.0
    %3330 = vmatpush.msra.mxu0 0.0
    %3331 = vmatpush.msra.mxu0 %v3311
    %3332 = vmatmul.f32.gmra.mxu0 %v3314
    %v3333 = vpop.f32.mrf.mxu0
    %v3334 = vadd.f32 0.0, %v3333
    %3335 = vdwg.mxu0
    %3336 = vrot.lane.b32.xlu0 %v2745, 64
    %v3337 = vpop.permute.xlu0 %3336
    %v3340 = vsel %vm150, %v3153, 0
    %3342 = vmatpush.msra.mxu0 0.0
    %3343 = vmatpush.msra.mxu0 0.0
    %3344 = vmatpush.msra.mxu0 0.0
    %3345 = vmatpush.msra.mxu0 0.0
    %3346 = vmatpush.msra.mxu0 0.0
    %3347 = vmatpush.msra.mxu0 0.0
    %3348 = vmatpush.msra.mxu0 0.0
    %3349 = vmatpush.msra.mxu0 0.0
    %3350 = vmatpush.msra.mxu0 0.0
    %3351 = vmatpush.msra.mxu0 0.0
    %3352 = vmatpush.msra.mxu0 0.0
    %3353 = vmatpush.msra.mxu0 0.0
    %3354 = vmatpush.msra.mxu0 0.0
    %3355 = vmatpush.msra.mxu0 0.0
    %3356 = vmatpush.msra.mxu0 0.0
    %3357 = vmatpush.msra.mxu0 %v3337
    %3358 = vmatmul.f32.gmra.mxu0 %v3340
    %v3359 = vpop.f32.mrf.mxu0
    %v3360 = vadd.f32 0.0, %v3359
    %3361 = vdwg.mxu0
    %3362 = vrot.lane.b32.xlu0 %v3063, 8
    %v3363 = vpop.permute.xlu0 %3362
    %3365 = vrot.lane.b32.xlu0 %v3078, 16
    %v3366 = vpop.permute.xlu0 %3365
    %3368 = vrot.lane.b32.xlu0 %v3093, 24
    %v3369 = vpop.permute.xlu0 %3368
    %3371 = vrot.lane.b32.xlu0 %v3108, 32
    %v3372 = vpop.permute.xlu0 %3371
    %3374 = vrot.lane.b32.xlu0 %v3123, 40
    %v3375 = vpop.permute.xlu0 %3374
    %3377 = vrot.lane.b32.xlu0 %v3138, 48
    %v3378 = vpop.permute.xlu0 %3377
    %3380 = vrot.lane.b32.xlu0 %v3153, 56
    %v3381 = vpop.permute.xlu0 %3380
    %v3383 = vsel %vm150, %v3048, %v3363
    %v3384 = vsel %vm787, %v3383, %v3366
    %v3385 = vsel %vm789, %v3384, %v3369
    %v3386 = vsel %vm92, %v3385, %v3372
    %v3387 = vsel %vm792, %v3386, %v3375
    %v3388 = vsel %vm794, %v3387, %v3378
    %v3389 = vsel %vm796, %v3388, %v3381
    %3391 = vrot.lane.b32.xlu0 %v3204, 8
    %v3392 = vpop.permute.xlu0 %3391
    %3395 = vrot.lane.b32.xlu0 %v3230, 16
    %v3396 = vpop.permute.xlu0 %3395
    %3399 = vrot.lane.b32.xlu0 %v3256, 24
    %v3400 = vpop.permute.xlu0 %3399
    %v3402 = vsel %vm150, %v3178, %v3392
    %v3403 = vsel %vm787, %v3402, %v3396
    %v3404 = vsel %vm789, %v3403, %v3400
    %3406 = vrot.lane.b32.xlu0 %v3308, 8
    %v3407 = vpop.permute.xlu0 %3406
    %3410 = vrot.lane.b32.xlu0 %v3334, 16
    %v3411 = vpop.permute.xlu0 %3410
    %3414 = vrot.lane.b32.xlu0 %v3360, 24
    %v3415 = vpop.permute.xlu0 %3414
    %v3417 = vsel %vm150, %v3282, %v3407
    %v3418 = vsel %vm787, %v3417, %v3411
    %v3419 = vsel %vm789, %v3418, %v3415
    %v3421 = vsel %vm92, %v3404, 0
    %v3424 = vsel %vm92, %v3419, 0
    %3426 = vmatpush.msra.mxu0 0.0
    %3427 = vmatpush.msra.mxu0 0.0
    %3428 = vmatpush.msra.mxu0 0.0
    %3429 = vmatpush.msra.mxu0 0.0
    %3430 = vmatpush.msra.mxu0 0.0
    %3431 = vmatpush.msra.mxu0 0.0
    %3432 = vmatpush.msra.mxu0 0.0
    %3433 = vmatpush.msra.mxu0 0.0
    %3434 = vmatpush.msra.mxu0 0.0
    %3435 = vmatpush.msra.mxu0 0.0
    %3436 = vmatpush.msra.mxu0 0.0
    %3437 = vmatpush.msra.mxu0 0.0
    %3438 = vmatpush.msra.mxu0 %v1875
    %3439 = vmatpush.msra.mxu0 %v1874
    %3440 = vmatpush.msra.mxu0 %v1873
    %3441 = vmatpush.msra.mxu0 %v1872
    %3442 = vmatmul.f32.gmra.mxu0 %v3421
    %v3443 = vpop.f32.mrf.mxu0
    %v3444 = vadd.f32 %v2603, %v3443
    %3445 = vmatmul.f32.gmra.mxu0 %v3424
    %v3446 = vpop.f32.mrf.mxu0
    %v3447 = vadd.f32 %v2603, %v3446
    %3448 = vdwg.mxu0
    %v3449 = vadd.f32 %v2685, %v3444
    %v3450 = vadd.f32 %v2686, %v3447
    %v3451 = vld [vmem:[%s1876 + $0x2] sm:$0x1]
    %v3452 = vld [vmem:[%s1876 + $0x3] sm:$0x1]
    %v3453 = vsel %vm92, %v3449, 0.0
    %3454 = vadd.xlane.f32.xlu0 %v3453
    %v3455 = vpop.xlane.xlu0 %3454
    %v3456 = vsel %vm92, %v3450, 0.0
    %3457 = vadd.xlane.f32.xlu0 %v3456
    %v3458 = vpop.xlane.xlu0 %3457
    %v3459 = vmul.f32 %v3455, %v874
    %v3460 = vmul.f32 %v3458, %v874
    %v3461 = vsub.f32 %v3449, %v3459
    %v3462 = vsub.f32 %v3450, %v3460
    %v3463 = vmul.f32 %v3461, %v3461
    %v3464 = vmul.f32 %v3462, %v3462
    %v3465 = vsel %vm92, %v3463, 0.0
    %3466 = vadd.xlane.f32.xlu0 %v3465
    %v3467 = vpop.xlane.xlu0 %3466
    %v3468 = vsel %vm92, %v3464, 0.0
    %3469 = vadd.xlane.f32.xlu0 %v3468
    %v3470 = vpop.xlane.xlu0 %3469
    %v3471 = vmul.f32 %v3467, %v874
    %v3472 = vmul.f32 %v3470, %v874
    %v3473 = vadd.f32 %v3471, 1e-05
    %v3474 = vadd.f32 %v3472, 1e-05
    %v3475 = vrsqrt.pop %v3473
    %v3476 = vmul.f32 %v3475, %v3473
    %v3477 = vmul.f32 %v3476, %v3475
    %v3478 = vmul.f32 0.5, %v3477
    %v3479 = vsub.f32 1.5, %v3478
    %v3480 = vmul.f32 %v3475, %v3479
    %vm3481 = vweird.f32 %v3473
    %vm3482 = vweird.f32 %v3475
    %vm3483 = vmor %vm3481, %vm3482
    %v3484 = vsel %vm3483, %v3475, %v3480
    %v3485 = vrsqrt.pop %v3474
    %v3486 = vmul.f32 %v3485, %v3474
    %v3487 = vmul.f32 %v3486, %v3485
    %v3488 = vmul.f32 0.5, %v3487
    %v3489 = vsub.f32 1.5, %v3488
    %v3490 = vmul.f32 %v3485, %v3489
    %vm3491 = vweird.f32 %v3474
    %vm3492 = vweird.f32 %v3485
    %vm3493 = vmor %vm3491, %vm3492
    %v3494 = vsel %vm3493, %v3485, %v3490
    %v3495 = vmul.f32 %v3461, %v3484
    %v3496 = vmul.f32 %v3462, %v3494
    %v3497 = vperm.slane %v3451, 0
    %v3498 = vmul.f32 %v3495, %v3497
    %v3499 = vmul.f32 %v3496, %v3497
    %v3500 = vperm.slane %v3452, 0
    %v3501 = vadd.f32 %v3498, %v3500
    %v3502 = vadd.f32 %v3499, %v3500
    %s3503 = scalar_lea.vmem %s4, 32
    %v3504 = vld [vmem:[%s3503] sm:$0xff]
    %v3505 = vld [vmem:[%s3503 + $0x8] sm:$0xff]
    %v3506 = vld [vmem:[%s3503 + $0x10] sm:$0xff]
    %v3507 = vld [vmem:[%s3503 + $0x18] sm:$0xff]
    %v3508 = vld [vmem:[%s1876 + $0x4] sm:$0x1]
    %v3509 = vperm.slane %v3508, 0
    %v3511 = vsel %vm92, %v3501, 0
    %v3514 = vsel %vm92, %v3502, 0
    %3516 = vmatpush.msra.mxu0 0.0
    %3517 = vmatpush.msra.mxu0 0.0
    %3518 = vmatpush.msra.mxu0 0.0
    %3519 = vmatpush.msra.mxu0 0.0
    %3520 = vmatpush.msra.mxu0 0.0
    %3521 = vmatpush.msra.mxu0 0.0
    %3522 = vmatpush.msra.mxu0 0.0
    %3523 = vmatpush.msra.mxu0 0.0
    %3524 = vmatpush.msra.mxu0 0.0
    %3525 = vmatpush.msra.mxu0 0.0
    %3526 = vmatpush.msra.mxu0 0.0
    %3527 = vmatpush.msra.mxu0 0.0
    %3528 = vmatpush.msra.mxu0 %v3507
    %3529 = vmatpush.msra.mxu0 %v3506
    %3530 = vmatpush.msra.mxu0 %v3505
    %3531 = vmatpush.msra.mxu0 %v3504
    %3532 = vmatmul.f32.gmra.mxu0 %v3511
    %v3533 = vpop.f32.mrf.mxu0
    %v3534 = vadd.f32 %v3509, %v3533
    %3535 = vmatmul.f32.gmra.mxu0 %v3514
    %v3536 = vpop.f32.mrf.mxu0
    %v3537 = vadd.f32 %v3509, %v3536
    %3538 = vdwg.mxu0
    %v3539 = vmax.f32 %v3534, 0.0
    %v3540 = vmax.f32 %v3537, 0.0
    %s3541 = scalar_lea.vmem %s5, 64
    %v3542 = vld [vmem:[%s3541] sm:$0xff]
    %v3543 = vld [vmem:[%s3541 + $0x8] sm:$0xff]
    %v3544 = vld [vmem:[%s3541 + $0x10] sm:$0xff]
    %v3545 = vld [vmem:[%s3541 + $0x18] sm:$0xff]
    %v3546 = vld [vmem:[%s3541 + $0x20] sm:$0xff]
    %v3547 = vld [vmem:[%s3541 + $0x28] sm:$0xff]
    %v3548 = vld [vmem:[%s3541 + $0x30] sm:$0xff]
    %v3549 = vld [vmem:[%s3541 + $0x38] sm:$0xff]
    %v3550 = vld [vmem:[%s1876 + $0x5] sm:$0x1]
    %v3551 = vperm.slane %v3550, 0
    %v3553 = vsel %vm1782, %v3539, 0
    %v3556 = vsel %vm1782, %v3540, 0
    %3558 = vmatpush.msra.mxu0 0.0
    %3559 = vmatpush.msra.mxu0 0.0
    %3560 = vmatpush.msra.mxu0 0.0
    %3561 = vmatpush.msra.mxu0 0.0
    %3562 = vmatpush.msra.mxu0 0.0
    %3563 = vmatpush.msra.mxu0 0.0
    %3564 = vmatpush.msra.mxu0 0.0
    %3565 = vmatpush.msra.mxu0 0.0
    %3566 = vmatpush.msra.mxu0 %v3549
    %3567 = vmatpush.msra.mxu0 %v3548
    %3568 = vmatpush.msra.mxu0 %v3547
    %3569 = vmatpush.msra.mxu0 %v3546
    %3570 = vmatpush.msra.mxu0 %v3545
    %3571 = vmatpush.msra.mxu0 %v3544
    %3572 = vmatpush.msra.mxu0 %v3543
    %3573 = vmatpush.msra.mxu0 %v3542
    %3574 = vmatmul.f32.gmra.mxu0 %v3553
    %v3575 = vpop.f32.mrf.mxu0
    %v3576 = vadd.f32 %v3551, %v3575
    %3577 = vmatmul.f32.gmra.mxu0 %v3556
    %v3578 = vpop.f32.mrf.mxu0
    %v3579 = vadd.f32 %v3551, %v3578
    %3580 = vdwg.mxu0
    %v3581 = vadd.f32 %v3501, %v3576
    %v3582 = vadd.f32 %v3502, %v3579
    %v3583 = vld [vmem:[%s1876 + $0x6] sm:$0x1]
    %v3584 = vld [vmem:[%s1876 + $0x7] sm:$0x1]
    %v3585 = vsel %vm92, %v3581, 0.0
    %3586 = vadd.xlane.f32.xlu0 %v3585
    %v3587 = vpop.xlane.xlu0 %3586
    %v3588 = vsel %vm92, %v3582, 0.0
    %3589 = vadd.xlane.f32.xlu0 %v3588
    %v3590 = vpop.xlane.xlu0 %3589
    %v3591 = vmul.f32 %v3587, %v874
    %v3592 = vmul.f32 %v3590, %v874
    %v3593 = vsub.f32 %v3581, %v3591
    %v3594 = vsub.f32 %v3582, %v3592
    %v3595 = vmul.f32 %v3593, %v3593
    %v3596 = vmul.f32 %v3594, %v3594
    %v3597 = vsel %vm92, %v3595, 0.0
    %3598 = vadd.xlane.f32.xlu0 %v3597
    %v3599 = vpop.xlane.xlu0 %3598
    %v3600 = vsel %vm92, %v3596, 0.0
    %3601 = vadd.xlane.f32.xlu0 %v3600
    %v3602 = vpop.xlane.xlu0 %3601
    %v3603 = vmul.f32 %v3599, %v874
    %v3604 = vmul.f32 %v3602, %v874
    %v3605 = vadd.f32 %v3603, 1e-05
    %v3606 = vadd.f32 %v3604, 1e-05
    %v3607 = vrsqrt.pop %v3605
    %v3608 = vmul.f32 %v3607, %v3605
    %v3609 = vmul.f32 %v3608, %v3607
    %v3610 = vmul.f32 0.5, %v3609
    %v3611 = vsub.f32 1.5, %v3610
    %v3612 = vmul.f32 %v3607, %v3611
    %vm3613 = vweird.f32 %v3605
    %vm3614 = vweird.f32 %v3607
    %vm3615 = vmor %vm3613, %vm3614
    %v3616 = vsel %vm3615, %v3607, %v3612
    %v3617 = vrsqrt.pop %v3606
    %v3618 = vmul.f32 %v3617, %v3606
    %v3619 = vmul.f32 %v3618, %v3617
    %v3620 = vmul.f32 0.5, %v3619
    %v3621 = vsub.f32 1.5, %v3620
    %v3622 = vmul.f32 %v3617, %v3621
    %vm3623 = vweird.f32 %v3606
    %vm3624 = vweird.f32 %v3617
    %vm3625 = vmor %vm3623, %vm3624
    %v3626 = vsel %vm3625, %v3617, %v3622
    %v3627 = vmul.f32 %v3593, %v3616
    %v3628 = vmul.f32 %v3594, %v3626
    %v3629 = vperm.slane %v3583, 0
    %v3630 = vmul.f32 %v3627, %v3629
    %v3631 = vmul.f32 %v3628, %v3629
    %v3632 = vperm.slane %v3584, 0
    %v3633 = vadd.f32 %v3630, %v3632
    %v3634 = vadd.f32 %v3631, %v3632
    %3635 = vst.msk [vmem:[#allocation8] sm:$0xff] %vm92, %v3633
    %3636 = vst.msk [vmem:[#allocation8 + $0x8] sm:$0xff] %vm92, %v3634
    %3638 = vrot.lane.b32.xlu0 %v2572, 64
    %v3639 = vpop.permute.xlu0 %3638
    %v3641 = vsel %vm1782, %v797, %v3639
    %3642 = vst [vmem:[%s8] sm:$0xff] %v3641
    %3644 = vrot.lane.b32.xlu0 %v3389, 64
    %v3645 = vpop.permute.xlu0 %3644
    %v3647 = vsel %vm1782, %v1621, %v3645
    %3648 = vst [vmem:[%s9] sm:$0xff] %v3647
    // Predicated region
    $region42: #{decoder_forward.1} parent=1 // pred_check
      _
    $region43: #{decoder_forward.1} parent=1 // pred_check_branch
      %3650 = sbr.rel (0) target = $region45
    $region44: #{decoder_forward.1} parent=1 // pred_region
      %3652 = vsyncadd [#allocation4], 0
      %s3653 = sshll.u32 [#allocation8], 4
      %s3654 = int_to_ptr.vmem [resolvable:$true] %s3653
      %s3655 = sshll.u32 %s7, 4
      %s3656 = int_to_ptr.hbm [resolvable:$true] %s3655
      %3661 = dma.vmem_to_hbm [thread:$0]  %s3654, 256, %s3656, [#allocation4], 128, 128, 8
    $region45: #{decoder_forward.1} parent=1 // pred_fallthru
      _
    // Predicated region
    $region46: #{decoder_forward.1} parent=1 // pred_check
      _
    $region47: #{decoder_forward.1} parent=1 // pred_check_branch
      %3663 = sbr.rel (0) target = $region49
    $region48: #{decoder_forward.1} parent=1 // pred_region
      _
    $region49: #{decoder_forward.1} parent=1 // pred_fallthru
      _
    // Predicated region
    $region50: #{decoder_forward.1} parent=1 // pred_check
      _
    $region51: #{decoder_forward.1} parent=1 // pred_check_branch
      %3665 = sbr.rel (0) target = $region53
    $region52: #{decoder_forward.1} parent=1 // pred_region
      _
    $region53: #{decoder_forward.1} parent=1 // pred_fallthru
      _
    // Predicated region
    $region54: #{decoder_forward.1} parent=1 // pred_check
      _
    $region55: #{decoder_forward.1} parent=1 // pred_check_branch
      %3667 = sbr.rel (0) target = $region57
    $region56: #{decoder_forward.1} parent=1 // pred_region
      %3669 = dma.done [#allocation4], 256
    $region57: #{decoder_forward.1} parent=1 // pred_fallthru
      _
    // Predicated region
    $region58: #{decoder_forward.1} parent=1 // pred_check
      _
    $region59: #{decoder_forward.1} parent=1 // pred_check_branch
      %3671 = sbr.rel (0) target = $region61
    $region60: #{decoder_forward.1} parent=1 // pred_region
      _
    $region61: #{decoder_forward.1} parent=1 // pred_fallthru
      _
    // Predicated region
    $region62: #{decoder_forward.1} parent=1 // pred_check
      _
    $region63: #{decoder_forward.1} parent=1 // pred_check_branch
      %3673 = sbr.rel (0) target = $region65
    $region64: #{decoder_forward.1} parent=1 // pred_region
      _
    $region65: #{decoder_forward.1} parent=1 // pred_fallthru
      _
    %3674 = vsyncpa [#allocation3], 1
    %3675 = vsyncpa [#allocation6], 1
    %3676 = vsyncpa [#allocation4], 1

</llo_original>
